<compile_context>
chip_gen: v6e
topology: v6e:2x2x1
jax: 0.10.0
libtpu: 0.0.40
codegen_flags: <defaults>
</compile_context>

<pallas_src>
import functools

import numpy as np

import jax
import jax.numpy as jnp
from jax.experimental import pallas as pl
from jax.experimental.pallas import tpu as pltpu


# 3x3 tap order (dy outer, dx inner) -- must match the host-side weight fold
# (kh, kw, Cin, Cout) -> (9, Cout, Cin).
_TAPS = tuple((dy, dx) for dy in (-1, 0, 1) for dx in (-1, 0, 1))
_CENTER = _TAPS.index((0, 0))


def _g_fused_kernel(x_ref, m_ref, w1_ref, b1_ref, w2_ref, b2_ref, w3_ref, b3_ref,
                    o_ref, *, img_w, lanes):
    """One chunk of images (folded along lanes), fully fused 3-layer conv net.

    x_ref : (1, 3, lanes)     input chunk, CHW-flat, images concatenated on lanes
    m_ref : (9, lanes)        {0,1} boundary masks per tap (tiled per image)
    w*_ref: (9, Cout, Cin)    per-tap weights
    b*_ref: (Cout, 1)         biases
    o_ref : (1, 3, lanes)     output chunk (lane-dense store)
    """
    masks = m_ref[...]                                     # (9, lanes) f32

    def conv3x3(a, w_ref, b_ref):
        """a: (Cin, lanes) f32 -> (Cout, lanes) f32 via per-tap MXU accumulation.

        No materialized im2col patch: each tap is a lane roll (XLU) + boundary-mask
        multiply (VPU) feeding one small MXU matmul; bias folds into the center tap.
        """
        acc = jnp.dot(w_ref[_CENTER], a,
                      preferred_element_type=jnp.float32) + b_ref[...]
        for t, (dy, dx) in enumerate(_TAPS):
            if t == _CENTER:                               # all-ones mask, no shift
                continue
            s = dy * img_w + dx
            tap = pltpu.roll(a, (-s) % lanes, axis=1) * masks[t:t + 1, :]
            acc = acc + jnp.dot(w_ref[t], tap, preferred_element_type=jnp.float32)
        return acc

    x = x_ref[0].astype(jnp.float32)                       # (3, lanes)
    h = jnp.maximum(conv3x3(x, w1_ref, b1_ref), 0.0)       # Conv(3->64)  + ReLU
    h = jnp.maximum(conv3x3(h, w2_ref, b2_ref), 0.0)       # Conv(64->64) + ReLU
    y = jnp.tanh(conv3x3(h, w3_ref, b3_ref))               # Conv(64->3)  + Tanh
    o_ref[0] = y.astype(o_ref.dtype)                       # lane-dense NCHW-flat store


def _tap_masks(H, W):
    """(9, H*W) {0,1}: mask[t, p] == 1 iff tap t at output pixel p hits a valid pixel."""
    h = np.arange(H)[:, None]
    w = np.arange(W)[None, :]
    out = np.zeros((9, H * W), np.float32)
    for t, (dy, dx) in enumerate(_TAPS):
        valid = (h + dy >= 0) & (h + dy < H) & (w + dx >= 0) & (w + dx < W)
        out[t] = valid.astype(np.float32).reshape(-1)
    return out


def _choose_batch_chunk(n, hw, max_lanes=2048):
    """Largest divisor of n such that chunk*hw <= max_lanes lanes and, for v7x
    megacore, the grid keeps >= 2 'parallel' steps whenever n >= 2."""
    best = 1
    for c in range(1, n + 1):
        if n % c:
            continue
        if c * hw > max_lanes:
            continue
        if n >= 2 and n // c < 2:
            continue
        best = c
    return best


@jax.jit
def g_forward(x_nchw, params):
    """x_nchw: (N, 3, H, W) float32 -> (N, 3, H, W), matching PyTorch G.forward."""
    N, Cin, H, W = x_nchw.shape
    HW = H * W
    (w1, b1), (w2, b2), (w3, b3) = params
    c1, c2, c3 = w1.shape[3], w2.shape[3], w3.shape[3]     # 64, 64, 3

    bchunk = _choose_batch_chunk(N, HW)
    n_chunks = N // bchunk
    lanes = bchunk * HW

    # Fold weights to per-tap form (9, Cout, Cin); biases to (Cout, 1). One-time, tiny.
    w1f = jnp.transpose(w1.reshape(9, Cin, c1), (0, 2, 1))
    w2f = jnp.transpose(w2.reshape(9, c1, c2), (0, 2, 1))
    w3f = jnp.transpose(w3.reshape(9, c2, c3), (0, 2, 1))
    b1c, b2c, b3c = b1.reshape(-1, 1), b2.reshape(-1, 1), b3.reshape(-1, 1)

    # Fold the batch chunk into the lane axis: (n_chunks, Cin, bchunk*HW).
    # For bchunk == 1 this is a free reshape; otherwise a tiny 3-channel transpose.
    x_chunks = x_nchw.reshape(n_chunks, bchunk, Cin, HW).transpose(0, 2, 1, 3).reshape(
        n_chunks, Cin, lanes)
    masks = jnp.asarray(np.tile(_tap_masks(H, W), (1, bchunk)))   # (9, lanes) constant

    cost = pl.CostEstimate(
        flops=2 * N * HW * 9 * (c1 * Cin + c2 * c1 + c3 * c2),
        transcendentals=N * HW * c3,
        bytes_accessed=4 * (x_nchw.size + N * c3 * HW
                            + 9 * (c1 * Cin + c2 * c1 + c3 * c2) + c1 + c2 + c3),
    )

    kernel = functools.partial(_g_fused_kernel, img_w=W, lanes=lanes)
    out_chunks = pl.pallas_call(
        kernel,
        out_shape=jax.ShapeDtypeStruct((n_chunks, c3, lanes), x_nchw.dtype),
        grid_spec=pltpu.PrefetchScalarGridSpec(
            num_scalar_prefetch=0,
            grid=(n_chunks,),                              # one image-chunk per step
            in_specs=[
                pl.BlockSpec((1, Cin, lanes), lambda g: (g, 0, 0)),
                pl.BlockSpec((9, lanes), lambda g: (0, 0)),
                pl.BlockSpec((9, c1, Cin), lambda g: (0, 0, 0)),
                pl.BlockSpec((c1, 1), lambda g: (0, 0)),
                pl.BlockSpec((9, c2, c1), lambda g: (0, 0, 0)),
                pl.BlockSpec((c2, 1), lambda g: (0, 0)),
                pl.BlockSpec((9, c3, c2), lambda g: (0, 0, 0)),
                pl.BlockSpec((c3, 1), lambda g: (0, 0)),
            ],
            out_specs=pl.BlockSpec((1, c3, lanes), lambda g: (g, 0, 0)),
        ),
        compiler_params=pltpu.CompilerParams(
            dimension_semantics=("parallel",),             # chunk axis -> both v7x TCs
        ),
        cost_estimate=cost,
    )(x_chunks, masks, w1f, b1c, w2f, b2c, w3f, b3c)

    out = out_chunks.reshape(n_chunks, c3, bchunk, HW).transpose(0, 2, 1, 3)
    return out.reshape(N, c3, H, W)


def init_params(key):
    """Deterministic synthetic init matching PyTorch Conv2d shapes (stored as (kh,kw,Cin,Cout))."""
    shapes = [(3, 3, 3, 64), (3, 3, 64, 64), (3, 3, 64, 3)]
    params = []
    for i, (kh, kw, cin, cout) in enumerate(shapes):
        kw_key, kb_key = jax.random.split(jax.random.fold_in(key, i))
        fan_in = kh * kw * cin
        bound = 1.0 / jnp.sqrt(fan_in)
        w = jax.random.uniform(kw_key, (kh, kw, cin, cout), jnp.float32, -bound, bound)
        b = jax.random.uniform(kb_key, (cout,), jnp.float32, -bound, bound)
        params.append((w, b))
    return params


def _reference(x_nchw, params):
    """Pure-JAX reference (XLA conv) for sanity checking."""
    x = x_nchw
    dn = jax.lax.conv_dimension_numbers(x.shape, (1, 1, 3, 3), ("NCHW", "OIHW", "NCHW"))
    acts = [jax.nn.relu, jax.nn.relu, jnp.tanh]
    for (w, b), act in zip(params, acts):
        w_oihw = jnp.transpose(w, (3, 2, 0, 1))  # (kh,kw,Cin,Cout) -> (Cout,Cin,kh,kw)
        x = jax.lax.conv_general_dilated(x, w_oihw, (1, 1), ((1, 1), (1, 1)),
                                         dimension_numbers=dn)
        x = act(x + b[None, :, None, None])
    return x


if __name__ == "__main__":
    key = jax.random.PRNGKey(0)
    params = init_params(jax.random.fold_in(key, 100))
    x = jax.random.normal(jax.random.fold_in(key, 200), (2, 3, 16, 16), jnp.float32)

    out = jax.block_until_ready(g_forward(x, params))

    ref = jax.block_until_ready(_reference(x, params))
    assert out.shape == (2, 3, 16, 16)
    err = jnp.max(jnp.abs(out - ref))
    assert jnp.allclose(out, ref, rtol=1e-3, atol=1e-3), f"max abs err {err}"

    print("KERNEL_OK")
</pallas_src>

<mosaic_0001>
module attributes {stable_mosaic.version = 11 : i64} {
  func.func @_g_fused_kernel(%arg0: i32, %arg1: memref<1x3x256xf32, #tpu.memory_space<vmem>>, %arg2: memref<9x256xf32, #tpu.memory_space<vmem>>, %arg3: memref<9x64x3xf32, #tpu.memory_space<vmem>>, %arg4: memref<64x1xf32, #tpu.memory_space<vmem>>, %arg5: memref<9x64x64xf32, #tpu.memory_space<vmem>>, %arg6: memref<64x1xf32, #tpu.memory_space<vmem>>, %arg7: memref<9x3x64xf32, #tpu.memory_space<vmem>>, %arg8: memref<3x1xf32, #tpu.memory_space<vmem>>, %arg9: memref<1x3x256xf32, #tpu.memory_space<vmem>>) attributes {dimension_semantics = [#tpu.dimension_semantics<parallel>], iteration_bounds = array<i64: 2>, scalar_prefetch = 0 : i64, scratch_operands = 0 : i64, tpu.core_type = #tpu.core_type<tc>, window_params = [{transform_indices = @transform_0, window_bounds = array<i64: 1, 3, 256>}, {pipeline_mode = #tpu.pipeline_mode<synchronous>, transform_indices = @transform_1, window_bounds = array<i64: 9, 256>}, {pipeline_mode = #tpu.pipeline_mode<synchronous>, transform_indices = @transform_2, window_bounds = array<i64: 9, 64, 3>}, {pipeline_mode = #tpu.pipeline_mode<synchronous>, transform_indices = @transform_3, window_bounds = array<i64: 64, 1>}, {pipeline_mode = #tpu.pipeline_mode<synchronous>, transform_indices = @transform_4, window_bounds = array<i64: 9, 64, 64>}, {pipeline_mode = #tpu.pipeline_mode<synchronous>, transform_indices = @transform_5, window_bounds = array<i64: 64, 1>}, {pipeline_mode = #tpu.pipeline_mode<synchronous>, transform_indices = @transform_6, window_bounds = array<i64: 9, 3, 64>}, {pipeline_mode = #tpu.pipeline_mode<synchronous>, transform_indices = @transform_7, window_bounds = array<i64: 3, 1>}, {transform_indices = @transform_8, window_bounds = array<i64: 1, 3, 256>}]} {
    %c0 = arith.constant 0 : index
    %c0_0 = arith.constant 0 : index
    %0 = vector.load %arg2[%c0, %c0_0] : memref<9x256xf32, #tpu.memory_space<vmem>>, vector<9x256xf32>
    %c0_1 = arith.constant 0 : index
    %c0_2 = arith.constant 0 : index
    %c0_3 = arith.constant 0 : index
    %1 = vector.load %arg1[%c0_1, %c0_2, %c0_3] : memref<1x3x256xf32, #tpu.memory_space<vmem>>, vector<1x3x256xf32>
    %2 = vector.shape_cast %1 : vector<1x3x256xf32> to vector<3x256xf32>
    %c4 = arith.constant 4 : index
    %c0_4 = arith.constant 0 : index
    %c0_5 = arith.constant 0 : index
    %3 = vector.load %arg3[%c4, %c0_4, %c0_5] : memref<9x64x3xf32, #tpu.memory_space<vmem>>, vector<1x64x3xf32>
    %4 = vector.shape_cast %3 : vector<1x64x3xf32> to vector<64x3xf32>
    %cst = arith.constant dense<0.000000e+00> : vector<64x256xf32>
    %5 = tpu.matmul %4, %2, %cst {dimension_numbers = #tpu.dot_dimension_numbers<[1], [0], [0], [1], [0, 0, 1, 1], [], []>} : vector<64x3xf32>, vector<3x256xf32>, vector<64x256xf32> -> vector<64x256xf32>
    %c0_6 = arith.constant 0 : index
    %c0_7 = arith.constant 0 : index
    %6 = vector.load %arg4[%c0_6, %c0_7] : memref<64x1xf32, #tpu.memory_space<vmem>>, vector<64x1xf32>
    %7 = vector.broadcast %6 : vector<64x1xf32> to vector<64x256xf32>
    %8 = arith.addf %5, %7 : vector<64x256xf32>
    %c17_i32 = arith.constant 17 : i32
    %9 = tpu.dynamic_rotate %2 by %c17_i32 dim 1 : vector<3x256xf32>, i32 -> vector<3x256xf32>
    %10 = vector.extract_strided_slice %0 {offsets = [0, 0], sizes = [1, 256], strides = [1, 1]} : vector<9x256xf32> to vector<1x256xf32>
    %11 = vector.broadcast %10 : vector<1x256xf32> to vector<3x256xf32>
    %12 = arith.mulf %9, %11 : vector<3x256xf32>
    %c0_8 = arith.constant 0 : index
    %c0_9 = arith.constant 0 : index
    %c0_10 = arith.constant 0 : index
    %13 = vector.load %arg3[%c0_8, %c0_9, %c0_10] : memref<9x64x3xf32, #tpu.memory_space<vmem>>, vector<1x64x3xf32>
    %14 = vector.shape_cast %13 : vector<1x64x3xf32> to vector<64x3xf32>
    %cst_11 = arith.constant dense<0.000000e+00> : vector<64x256xf32>
    %15 = tpu.matmul %14, %12, %cst_11 {dimension_numbers = #tpu.dot_dimension_numbers<[1], [0], [0], [1], [0, 0, 1, 1], [], []>} : vector<64x3xf32>, vector<3x256xf32>, vector<64x256xf32> -> vector<64x256xf32>
    %16 = arith.addf %8, %15 : vector<64x256xf32>
    %c16_i32 = arith.constant 16 : i32
    %17 = tpu.dynamic_rotate %2 by %c16_i32 dim 1 : vector<3x256xf32>, i32 -> vector<3x256xf32>
    %18 = vector.extract_strided_slice %0 {offsets = [1, 0], sizes = [1, 256], strides = [1, 1]} : vector<9x256xf32> to vector<1x256xf32>
    %19 = vector.broadcast %18 : vector<1x256xf32> to vector<3x256xf32>
    %20 = arith.mulf %17, %19 : vector<3x256xf32>
    %c1 = arith.constant 1 : index
    %c0_12 = arith.constant 0 : index
    %c0_13 = arith.constant 0 : index
    %21 = vector.load %arg3[%c1, %c0_12, %c0_13] : memref<9x64x3xf32, #tpu.memory_space<vmem>>, vector<1x64x3xf32>
    %22 = vector.shape_cast %21 : vector<1x64x3xf32> to vector<64x3xf32>
    %cst_14 = arith.constant dense<0.000000e+00> : vector<64x256xf32>
    %23 = tpu.matmul %22, %20, %cst_14 {dimension_numbers = #tpu.dot_dimension_numbers<[1], [0], [0], [1], [0, 0, 1, 1], [], []>} : vector<64x3xf32>, vector<3x256xf32>, vector<64x256xf32> -> vector<64x256xf32>
    %24 = arith.addf %16, %23 : vector<64x256xf32>
    %c15_i32 = arith.constant 15 : i32
    %25 = tpu.dynamic_rotate %2 by %c15_i32 dim 1 : vector<3x256xf32>, i32 -> vector<3x256xf32>
    %26 = vector.extract_strided_slice %0 {offsets = [2, 0], sizes = [1, 256], strides = [1, 1]} : vector<9x256xf32> to vector<1x256xf32>
    %27 = vector.broadcast %26 : vector<1x256xf32> to vector<3x256xf32>
    %28 = arith.mulf %25, %27 : vector<3x256xf32>
    %c2 = arith.constant 2 : index
    %c0_15 = arith.constant 0 : index
    %c0_16 = arith.constant 0 : index
    %29 = vector.load %arg3[%c2, %c0_15, %c0_16] : memref<9x64x3xf32, #tpu.memory_space<vmem>>, vector<1x64x3xf32>
    %30 = vector.shape_cast %29 : vector<1x64x3xf32> to vector<64x3xf32>
    %cst_17 = arith.constant dense<0.000000e+00> : vector<64x256xf32>
    %31 = tpu.matmul %30, %28, %cst_17 {dimension_numbers = #tpu.dot_dimension_numbers<[1], [0], [0], [1], [0, 0, 1, 1], [], []>} : vector<64x3xf32>, vector<3x256xf32>, vector<64x256xf32> -> vector<64x256xf32>
    %32 = arith.addf %24, %31 : vector<64x256xf32>
    %c1_i32 = arith.constant 1 : i32
    %33 = tpu.dynamic_rotate %2 by %c1_i32 dim 1 : vector<3x256xf32>, i32 -> vector<3x256xf32>
    %34 = vector.extract_strided_slice %0 {offsets = [3, 0], sizes = [1, 256], strides = [1, 1]} : vector<9x256xf32> to vector<1x256xf32>
    %35 = vector.broadcast %34 : vector<1x256xf32> to vector<3x256xf32>
    %36 = arith.mulf %33, %35 : vector<3x256xf32>
    %c3 = arith.constant 3 : index
    %c0_18 = arith.constant 0 : index
    %c0_19 = arith.constant 0 : index
    %37 = vector.load %arg3[%c3, %c0_18, %c0_19] : memref<9x64x3xf32, #tpu.memory_space<vmem>>, vector<1x64x3xf32>
    %38 = vector.shape_cast %37 : vector<1x64x3xf32> to vector<64x3xf32>
    %cst_20 = arith.constant dense<0.000000e+00> : vector<64x256xf32>
    %39 = tpu.matmul %38, %36, %cst_20 {dimension_numbers = #tpu.dot_dimension_numbers<[1], [0], [0], [1], [0, 0, 1, 1], [], []>} : vector<64x3xf32>, vector<3x256xf32>, vector<64x256xf32> -> vector<64x256xf32>
    %40 = arith.addf %32, %39 : vector<64x256xf32>
    %c255_i32 = arith.constant 255 : i32
    %41 = tpu.dynamic_rotate %2 by %c255_i32 dim 1 : vector<3x256xf32>, i32 -> vector<3x256xf32>
    %42 = vector.extract_strided_slice %0 {offsets = [5, 0], sizes = [1, 256], strides = [1, 1]} : vector<9x256xf32> to vector<1x256xf32>
    %43 = vector.broadcast %42 : vector<1x256xf32> to vector<3x256xf32>
    %44 = arith.mulf %41, %43 : vector<3x256xf32>
    %c5 = arith.constant 5 : index
    %c0_21 = arith.constant 0 : index
    %c0_22 = arith.constant 0 : index
    %45 = vector.load %arg3[%c5, %c0_21, %c0_22] : memref<9x64x3xf32, #tpu.memory_space<vmem>>, vector<1x64x3xf32>
    %46 = vector.shape_cast %45 : vector<1x64x3xf32> to vector<64x3xf32>
    %cst_23 = arith.constant dense<0.000000e+00> : vector<64x256xf32>
    %47 = tpu.matmul %46, %44, %cst_23 {dimension_numbers = #tpu.dot_dimension_numbers<[1], [0], [0], [1], [0, 0, 1, 1], [], []>} : vector<64x3xf32>, vector<3x256xf32>, vector<64x256xf32> -> vector<64x256xf32>
    %48 = arith.addf %40, %47 : vector<64x256xf32>
    %c241_i32 = arith.constant 241 : i32
    %49 = tpu.dynamic_rotate %2 by %c241_i32 dim 1 : vector<3x256xf32>, i32 -> vector<3x256xf32>
    %50 = vector.extract_strided_slice %0 {offsets = [6, 0], sizes = [1, 256], strides = [1, 1]} : vector<9x256xf32> to vector<1x256xf32>
    %51 = vector.broadcast %50 : vector<1x256xf32> to vector<3x256xf32>
    %52 = arith.mulf %49, %51 : vector<3x256xf32>
    %c6 = arith.constant 6 : index
    %c0_24 = arith.constant 0 : index
    %c0_25 = arith.constant 0 : index
    %53 = vector.load %arg3[%c6, %c0_24, %c0_25] : memref<9x64x3xf32, #tpu.memory_space<vmem>>, vector<1x64x3xf32>
    %54 = vector.shape_cast %53 : vector<1x64x3xf32> to vector<64x3xf32>
    %cst_26 = arith.constant dense<0.000000e+00> : vector<64x256xf32>
    %55 = tpu.matmul %54, %52, %cst_26 {dimension_numbers = #tpu.dot_dimension_numbers<[1], [0], [0], [1], [0, 0, 1, 1], [], []>} : vector<64x3xf32>, vector<3x256xf32>, vector<64x256xf32> -> vector<64x256xf32>
    %56 = arith.addf %48, %55 : vector<64x256xf32>
    %c240_i32 = arith.constant 240 : i32
    %57 = tpu.dynamic_rotate %2 by %c240_i32 dim 1 : vector<3x256xf32>, i32 -> vector<3x256xf32>
    %58 = vector.extract_strided_slice %0 {offsets = [7, 0], sizes = [1, 256], strides = [1, 1]} : vector<9x256xf32> to vector<1x256xf32>
    %59 = vector.broadcast %58 : vector<1x256xf32> to vector<3x256xf32>
    %60 = arith.mulf %57, %59 : vector<3x256xf32>
    %c7 = arith.constant 7 : index
    %c0_27 = arith.constant 0 : index
    %c0_28 = arith.constant 0 : index
    %61 = vector.load %arg3[%c7, %c0_27, %c0_28] : memref<9x64x3xf32, #tpu.memory_space<vmem>>, vector<1x64x3xf32>
    %62 = vector.shape_cast %61 : vector<1x64x3xf32> to vector<64x3xf32>
    %cst_29 = arith.constant dense<0.000000e+00> : vector<64x256xf32>
    %63 = tpu.matmul %62, %60, %cst_29 {dimension_numbers = #tpu.dot_dimension_numbers<[1], [0], [0], [1], [0, 0, 1, 1], [], []>} : vector<64x3xf32>, vector<3x256xf32>, vector<64x256xf32> -> vector<64x256xf32>
    %64 = arith.addf %56, %63 : vector<64x256xf32>
    %c239_i32 = arith.constant 239 : i32
    %65 = tpu.dynamic_rotate %2 by %c239_i32 dim 1 : vector<3x256xf32>, i32 -> vector<3x256xf32>
    %66 = vector.extract_strided_slice %0 {offsets = [8, 0], sizes = [1, 256], strides = [1, 1]} : vector<9x256xf32> to vector<1x256xf32>
    %67 = vector.broadcast %66 : vector<1x256xf32> to vector<3x256xf32>
    %68 = arith.mulf %65, %67 : vector<3x256xf32>
    %c8 = arith.constant 8 : index
    %c0_30 = arith.constant 0 : index
    %c0_31 = arith.constant 0 : index
    %69 = vector.load %arg3[%c8, %c0_30, %c0_31] : memref<9x64x3xf32, #tpu.memory_space<vmem>>, vector<1x64x3xf32>
    %70 = vector.shape_cast %69 : vector<1x64x3xf32> to vector<64x3xf32>
    %cst_32 = arith.constant dense<0.000000e+00> : vector<64x256xf32>
    %71 = tpu.matmul %70, %68, %cst_32 {dimension_numbers = #tpu.dot_dimension_numbers<[1], [0], [0], [1], [0, 0, 1, 1], [], []>} : vector<64x3xf32>, vector<3x256xf32>, vector<64x256xf32> -> vector<64x256xf32>
    %72 = arith.addf %64, %71 : vector<64x256xf32>
    %cst_33 = arith.constant 0.000000e+00 : f32
    %73 = vector.broadcast %cst_33 : f32 to vector<64x256xf32>
    %74 = arith.maximumf %72, %73 : vector<64x256xf32>
    %c4_34 = arith.constant 4 : index
    %c0_35 = arith.constant 0 : index
    %c0_36 = arith.constant 0 : index
    %75 = vector.load %arg5[%c4_34, %c0_35, %c0_36] : memref<9x64x64xf32, #tpu.memory_space<vmem>>, vector<1x64x64xf32>
    %76 = vector.shape_cast %75 : vector<1x64x64xf32> to vector<64x64xf32>
    %cst_37 = arith.constant dense<0.000000e+00> : vector<64x256xf32>
    %77 = tpu.matmul %76, %74, %cst_37 {dimension_numbers = #tpu.dot_dimension_numbers<[1], [0], [0], [1], [0, 0, 1, 1], [], []>} : vector<64x64xf32>, vector<64x256xf32>, vector<64x256xf32> -> vector<64x256xf32>
    %c0_38 = arith.constant 0 : index
    %c0_39 = arith.constant 0 : index
    %78 = vector.load %arg6[%c0_38, %c0_39] : memref<64x1xf32, #tpu.memory_space<vmem>>, vector<64x1xf32>
    %79 = vector.broadcast %78 : vector<64x1xf32> to vector<64x256xf32>
    %80 = arith.addf %77, %79 : vector<64x256xf32>
    %c17_i32_40 = arith.constant 17 : i32
    %81 = tpu.dynamic_rotate %74 by %c17_i32_40 dim 1 : vector<64x256xf32>, i32 -> vector<64x256xf32>
    %82 = vector.extract_strided_slice %0 {offsets = [0, 0], sizes = [1, 256], strides = [1, 1]} : vector<9x256xf32> to vector<1x256xf32>
    %83 = vector.broadcast %82 : vector<1x256xf32> to vector<64x256xf32>
    %84 = arith.mulf %81, %83 : vector<64x256xf32>
    %c0_41 = arith.constant 0 : index
    %c0_42 = arith.constant 0 : index
    %c0_43 = arith.constant 0 : index
    %85 = vector.load %arg5[%c0_41, %c0_42, %c0_43] : memref<9x64x64xf32, #tpu.memory_space<vmem>>, vector<1x64x64xf32>
    %86 = vector.shape_cast %85 : vector<1x64x64xf32> to vector<64x64xf32>
    %cst_44 = arith.constant dense<0.000000e+00> : vector<64x256xf32>
    %87 = tpu.matmul %86, %84, %cst_44 {dimension_numbers = #tpu.dot_dimension_numbers<[1], [0], [0], [1], [0, 0, 1, 1], [], []>} : vector<64x64xf32>, vector<64x256xf32>, vector<64x256xf32> -> vector<64x256xf32>
    %88 = arith.addf %80, %87 : vector<64x256xf32>
    %c16_i32_45 = arith.constant 16 : i32
    %89 = tpu.dynamic_rotate %74 by %c16_i32_45 dim 1 : vector<64x256xf32>, i32 -> vector<64x256xf32>
    %90 = vector.extract_strided_slice %0 {offsets = [1, 0], sizes = [1, 256], strides = [1, 1]} : vector<9x256xf32> to vector<1x256xf32>
    %91 = vector.broadcast %90 : vector<1x256xf32> to vector<64x256xf32>
    %92 = arith.mulf %89, %91 : vector<64x256xf32>
    %c1_46 = arith.constant 1 : index
    %c0_47 = arith.constant 0 : index
    %c0_48 = arith.constant 0 : index
    %93 = vector.load %arg5[%c1_46, %c0_47, %c0_48] : memref<9x64x64xf32, #tpu.memory_space<vmem>>, vector<1x64x64xf32>
    %94 = vector.shape_cast %93 : vector<1x64x64xf32> to vector<64x64xf32>
    %cst_49 = arith.constant dense<0.000000e+00> : vector<64x256xf32>
    %95 = tpu.matmul %94, %92, %cst_49 {dimension_numbers = #tpu.dot_dimension_numbers<[1], [0], [0], [1], [0, 0, 1, 1], [], []>} : vector<64x64xf32>, vector<64x256xf32>, vector<64x256xf32> -> vector<64x256xf32>
    %96 = arith.addf %88, %95 : vector<64x256xf32>
    %c15_i32_50 = arith.constant 15 : i32
    %97 = tpu.dynamic_rotate %74 by %c15_i32_50 dim 1 : vector<64x256xf32>, i32 -> vector<64x256xf32>
    %98 = vector.extract_strided_slice %0 {offsets = [2, 0], sizes = [1, 256], strides = [1, 1]} : vector<9x256xf32> to vector<1x256xf32>
    %99 = vector.broadcast %98 : vector<1x256xf32> to vector<64x256xf32>
    %100 = arith.mulf %97, %99 : vector<64x256xf32>
    %c2_51 = arith.constant 2 : index
    %c0_52 = arith.constant 0 : index
    %c0_53 = arith.constant 0 : index
    %101 = vector.load %arg5[%c2_51, %c0_52, %c0_53] : memref<9x64x64xf32, #tpu.memory_space<vmem>>, vector<1x64x64xf32>
    %102 = vector.shape_cast %101 : vector<1x64x64xf32> to vector<64x64xf32>
    %cst_54 = arith.constant dense<0.000000e+00> : vector<64x256xf32>
    %103 = tpu.matmul %102, %100, %cst_54 {dimension_numbers = #tpu.dot_dimension_numbers<[1], [0], [0], [1], [0, 0, 1, 1], [], []>} : vector<64x64xf32>, vector<64x256xf32>, vector<64x256xf32> -> vector<64x256xf32>
    %104 = arith.addf %96, %103 : vector<64x256xf32>
    %c1_i32_55 = arith.constant 1 : i32
    %105 = tpu.dynamic_rotate %74 by %c1_i32_55 dim 1 : vector<64x256xf32>, i32 -> vector<64x256xf32>
    %106 = vector.extract_strided_slice %0 {offsets = [3, 0], sizes = [1, 256], strides = [1, 1]} : vector<9x256xf32> to vector<1x256xf32>
    %107 = vector.broadcast %106 : vector<1x256xf32> to vector<64x256xf32>
    %108 = arith.mulf %105, %107 : vector<64x256xf32>
    %c3_56 = arith.constant 3 : index
    %c0_57 = arith.constant 0 : index
    %c0_58 = arith.constant 0 : index
    %109 = vector.load %arg5[%c3_56, %c0_57, %c0_58] : memref<9x64x64xf32, #tpu.memory_space<vmem>>, vector<1x64x64xf32>
    %110 = vector.shape_cast %109 : vector<1x64x64xf32> to vector<64x64xf32>
    %cst_59 = arith.constant dense<0.000000e+00> : vector<64x256xf32>
    %111 = tpu.matmul %110, %108, %cst_59 {dimension_numbers = #tpu.dot_dimension_numbers<[1], [0], [0], [1], [0, 0, 1, 1], [], []>} : vector<64x64xf32>, vector<64x256xf32>, vector<64x256xf32> -> vector<64x256xf32>
    %112 = arith.addf %104, %111 : vector<64x256xf32>
    %c255_i32_60 = arith.constant 255 : i32
    %113 = tpu.dynamic_rotate %74 by %c255_i32_60 dim 1 : vector<64x256xf32>, i32 -> vector<64x256xf32>
    %114 = vector.extract_strided_slice %0 {offsets = [5, 0], sizes = [1, 256], strides = [1, 1]} : vector<9x256xf32> to vector<1x256xf32>
    %115 = vector.broadcast %114 : vector<1x256xf32> to vector<64x256xf32>
    %116 = arith.mulf %113, %115 : vector<64x256xf32>
    %c5_61 = arith.constant 5 : index
    %c0_62 = arith.constant 0 : index
    %c0_63 = arith.constant 0 : index
    %117 = vector.load %arg5[%c5_61, %c0_62, %c0_63] : memref<9x64x64xf32, #tpu.memory_space<vmem>>, vector<1x64x64xf32>
    %118 = vector.shape_cast %117 : vector<1x64x64xf32> to vector<64x64xf32>
    %cst_64 = arith.constant dense<0.000000e+00> : vector<64x256xf32>
    %119 = tpu.matmul %118, %116, %cst_64 {dimension_numbers = #tpu.dot_dimension_numbers<[1], [0], [0], [1], [0, 0, 1, 1], [], []>} : vector<64x64xf32>, vector<64x256xf32>, vector<64x256xf32> -> vector<64x256xf32>
    %120 = arith.addf %112, %119 : vector<64x256xf32>
    %c241_i32_65 = arith.constant 241 : i32
    %121 = tpu.dynamic_rotate %74 by %c241_i32_65 dim 1 : vector<64x256xf32>, i32 -> vector<64x256xf32>
    %122 = vector.extract_strided_slice %0 {offsets = [6, 0], sizes = [1, 256], strides = [1, 1]} : vector<9x256xf32> to vector<1x256xf32>
    %123 = vector.broadcast %122 : vector<1x256xf32> to vector<64x256xf32>
    %124 = arith.mulf %121, %123 : vector<64x256xf32>
    %c6_66 = arith.constant 6 : index
    %c0_67 = arith.constant 0 : index
    %c0_68 = arith.constant 0 : index
    %125 = vector.load %arg5[%c6_66, %c0_67, %c0_68] : memref<9x64x64xf32, #tpu.memory_space<vmem>>, vector<1x64x64xf32>
    %126 = vector.shape_cast %125 : vector<1x64x64xf32> to vector<64x64xf32>
    %cst_69 = arith.constant dense<0.000000e+00> : vector<64x256xf32>
    %127 = tpu.matmul %126, %124, %cst_69 {dimension_numbers = #tpu.dot_dimension_numbers<[1], [0], [0], [1], [0, 0, 1, 1], [], []>} : vector<64x64xf32>, vector<64x256xf32>, vector<64x256xf32> -> vector<64x256xf32>
    %128 = arith.addf %120, %127 : vector<64x256xf32>
    %c240_i32_70 = arith.constant 240 : i32
    %129 = tpu.dynamic_rotate %74 by %c240_i32_70 dim 1 : vector<64x256xf32>, i32 -> vector<64x256xf32>
    %130 = vector.extract_strided_slice %0 {offsets = [7, 0], sizes = [1, 256], strides = [1, 1]} : vector<9x256xf32> to vector<1x256xf32>
    %131 = vector.broadcast %130 : vector<1x256xf32> to vector<64x256xf32>
    %132 = arith.mulf %129, %131 : vector<64x256xf32>
    %c7_71 = arith.constant 7 : index
    %c0_72 = arith.constant 0 : index
    %c0_73 = arith.constant 0 : index
    %133 = vector.load %arg5[%c7_71, %c0_72, %c0_73] : memref<9x64x64xf32, #tpu.memory_space<vmem>>, vector<1x64x64xf32>
    %134 = vector.shape_cast %133 : vector<1x64x64xf32> to vector<64x64xf32>
    %cst_74 = arith.constant dense<0.000000e+00> : vector<64x256xf32>
    %135 = tpu.matmul %134, %132, %cst_74 {dimension_numbers = #tpu.dot_dimension_numbers<[1], [0], [0], [1], [0, 0, 1, 1], [], []>} : vector<64x64xf32>, vector<64x256xf32>, vector<64x256xf32> -> vector<64x256xf32>
    %136 = arith.addf %128, %135 : vector<64x256xf32>
    %c239_i32_75 = arith.constant 239 : i32
    %137 = tpu.dynamic_rotate %74 by %c239_i32_75 dim 1 : vector<64x256xf32>, i32 -> vector<64x256xf32>
    %138 = vector.extract_strided_slice %0 {offsets = [8, 0], sizes = [1, 256], strides = [1, 1]} : vector<9x256xf32> to vector<1x256xf32>
    %139 = vector.broadcast %138 : vector<1x256xf32> to vector<64x256xf32>
    %140 = arith.mulf %137, %139 : vector<64x256xf32>
    %c8_76 = arith.constant 8 : index
    %c0_77 = arith.constant 0 : index
    %c0_78 = arith.constant 0 : index
    %141 = vector.load %arg5[%c8_76, %c0_77, %c0_78] : memref<9x64x64xf32, #tpu.memory_space<vmem>>, vector<1x64x64xf32>
    %142 = vector.shape_cast %141 : vector<1x64x64xf32> to vector<64x64xf32>
    %cst_79 = arith.constant dense<0.000000e+00> : vector<64x256xf32>
    %143 = tpu.matmul %142, %140, %cst_79 {dimension_numbers = #tpu.dot_dimension_numbers<[1], [0], [0], [1], [0, 0, 1, 1], [], []>} : vector<64x64xf32>, vector<64x256xf32>, vector<64x256xf32> -> vector<64x256xf32>
    %144 = arith.addf %136, %143 : vector<64x256xf32>
    %cst_80 = arith.constant 0.000000e+00 : f32
    %145 = vector.broadcast %cst_80 : f32 to vector<64x256xf32>
    %146 = arith.maximumf %144, %145 : vector<64x256xf32>
    %c4_81 = arith.constant 4 : index
    %c0_82 = arith.constant 0 : index
    %c0_83 = arith.constant 0 : index
    %147 = vector.load %arg7[%c4_81, %c0_82, %c0_83] : memref<9x3x64xf32, #tpu.memory_space<vmem>>, vector<1x3x64xf32>
    %148 = vector.shape_cast %147 : vector<1x3x64xf32> to vector<3x64xf32>
    %cst_84 = arith.constant dense<0.000000e+00> : vector<3x256xf32>
    %149 = tpu.matmul %148, %146, %cst_84 {dimension_numbers = #tpu.dot_dimension_numbers<[1], [0], [0], [1], [0, 0, 1, 1], [], []>} : vector<3x64xf32>, vector<64x256xf32>, vector<3x256xf32> -> vector<3x256xf32>
    %c0_85 = arith.constant 0 : index
    %c0_86 = arith.constant 0 : index
    %150 = vector.load %arg8[%c0_85, %c0_86] : memref<3x1xf32, #tpu.memory_space<vmem>>, vector<3x1xf32>
    %151 = vector.broadcast %150 : vector<3x1xf32> to vector<3x256xf32>
    %152 = arith.addf %149, %151 : vector<3x256xf32>
    %c17_i32_87 = arith.constant 17 : i32
    %153 = tpu.dynamic_rotate %146 by %c17_i32_87 dim 1 : vector<64x256xf32>, i32 -> vector<64x256xf32>
    %154 = vector.extract_strided_slice %0 {offsets = [0, 0], sizes = [1, 256], strides = [1, 1]} : vector<9x256xf32> to vector<1x256xf32>
    %155 = vector.broadcast %154 : vector<1x256xf32> to vector<64x256xf32>
    %156 = arith.mulf %153, %155 : vector<64x256xf32>
    %c0_88 = arith.constant 0 : index
    %c0_89 = arith.constant 0 : index
    %c0_90 = arith.constant 0 : index
    %157 = vector.load %arg7[%c0_88, %c0_89, %c0_90] : memref<9x3x64xf32, #tpu.memory_space<vmem>>, vector<1x3x64xf32>
    %158 = vector.shape_cast %157 : vector<1x3x64xf32> to vector<3x64xf32>
    %cst_91 = arith.constant dense<0.000000e+00> : vector<3x256xf32>
    %159 = tpu.matmul %158, %156, %cst_91 {dimension_numbers = #tpu.dot_dimension_numbers<[1], [0], [0], [1], [0, 0, 1, 1], [], []>} : vector<3x64xf32>, vector<64x256xf32>, vector<3x256xf32> -> vector<3x256xf32>
    %160 = arith.addf %152, %159 : vector<3x256xf32>
    %c16_i32_92 = arith.constant 16 : i32
    %161 = tpu.dynamic_rotate %146 by %c16_i32_92 dim 1 : vector<64x256xf32>, i32 -> vector<64x256xf32>
    %162 = vector.extract_strided_slice %0 {offsets = [1, 0], sizes = [1, 256], strides = [1, 1]} : vector<9x256xf32> to vector<1x256xf32>
    %163 = vector.broadcast %162 : vector<1x256xf32> to vector<64x256xf32>
    %164 = arith.mulf %161, %163 : vector<64x256xf32>
    %c1_93 = arith.constant 1 : index
    %c0_94 = arith.constant 0 : index
    %c0_95 = arith.constant 0 : index
    %165 = vector.load %arg7[%c1_93, %c0_94, %c0_95] : memref<9x3x64xf32, #tpu.memory_space<vmem>>, vector<1x3x64xf32>
    %166 = vector.shape_cast %165 : vector<1x3x64xf32> to vector<3x64xf32>
    %cst_96 = arith.constant dense<0.000000e+00> : vector<3x256xf32>
    %167 = tpu.matmul %166, %164, %cst_96 {dimension_numbers = #tpu.dot_dimension_numbers<[1], [0], [0], [1], [0, 0, 1, 1], [], []>} : vector<3x64xf32>, vector<64x256xf32>, vector<3x256xf32> -> vector<3x256xf32>
    %168 = arith.addf %160, %167 : vector<3x256xf32>
    %c15_i32_97 = arith.constant 15 : i32
    %169 = tpu.dynamic_rotate %146 by %c15_i32_97 dim 1 : vector<64x256xf32>, i32 -> vector<64x256xf32>
    %170 = vector.extract_strided_slice %0 {offsets = [2, 0], sizes = [1, 256], strides = [1, 1]} : vector<9x256xf32> to vector<1x256xf32>
    %171 = vector.broadcast %170 : vector<1x256xf32> to vector<64x256xf32>
    %172 = arith.mulf %169, %171 : vector<64x256xf32>
    %c2_98 = arith.constant 2 : index
    %c0_99 = arith.constant 0 : index
    %c0_100 = arith.constant 0 : index
    %173 = vector.load %arg7[%c2_98, %c0_99, %c0_100] : memref<9x3x64xf32, #tpu.memory_space<vmem>>, vector<1x3x64xf32>
    %174 = vector.shape_cast %173 : vector<1x3x64xf32> to vector<3x64xf32>
    %cst_101 = arith.constant dense<0.000000e+00> : vector<3x256xf32>
    %175 = tpu.matmul %174, %172, %cst_101 {dimension_numbers = #tpu.dot_dimension_numbers<[1], [0], [0], [1], [0, 0, 1, 1], [], []>} : vector<3x64xf32>, vector<64x256xf32>, vector<3x256xf32> -> vector<3x256xf32>
    %176 = arith.addf %168, %175 : vector<3x256xf32>
    %c1_i32_102 = arith.constant 1 : i32
    %177 = tpu.dynamic_rotate %146 by %c1_i32_102 dim 1 : vector<64x256xf32>, i32 -> vector<64x256xf32>
    %178 = vector.extract_strided_slice %0 {offsets = [3, 0], sizes = [1, 256], strides = [1, 1]} : vector<9x256xf32> to vector<1x256xf32>
    %179 = vector.broadcast %178 : vector<1x256xf32> to vector<64x256xf32>
    %180 = arith.mulf %177, %179 : vector<64x256xf32>
    %c3_103 = arith.constant 3 : index
    %c0_104 = arith.constant 0 : index
    %c0_105 = arith.constant 0 : index
    %181 = vector.load %arg7[%c3_103, %c0_104, %c0_105] : memref<9x3x64xf32, #tpu.memory_space<vmem>>, vector<1x3x64xf32>
    %182 = vector.shape_cast %181 : vector<1x3x64xf32> to vector<3x64xf32>
    %cst_106 = arith.constant dense<0.000000e+00> : vector<3x256xf32>
    %183 = tpu.matmul %182, %180, %cst_106 {dimension_numbers = #tpu.dot_dimension_numbers<[1], [0], [0], [1], [0, 0, 1, 1], [], []>} : vector<3x64xf32>, vector<64x256xf32>, vector<3x256xf32> -> vector<3x256xf32>
    %184 = arith.addf %176, %183 : vector<3x256xf32>
    %c255_i32_107 = arith.constant 255 : i32
    %185 = tpu.dynamic_rotate %146 by %c255_i32_107 dim 1 : vector<64x256xf32>, i32 -> vector<64x256xf32>
    %186 = vector.extract_strided_slice %0 {offsets = [5, 0], sizes = [1, 256], strides = [1, 1]} : vector<9x256xf32> to vector<1x256xf32>
    %187 = vector.broadcast %186 : vector<1x256xf32> to vector<64x256xf32>
    %188 = arith.mulf %185, %187 : vector<64x256xf32>
    %c5_108 = arith.constant 5 : index
    %c0_109 = arith.constant 0 : index
    %c0_110 = arith.constant 0 : index
    %189 = vector.load %arg7[%c5_108, %c0_109, %c0_110] : memref<9x3x64xf32, #tpu.memory_space<vmem>>, vector<1x3x64xf32>
    %190 = vector.shape_cast %189 : vector<1x3x64xf32> to vector<3x64xf32>
    %cst_111 = arith.constant dense<0.000000e+00> : vector<3x256xf32>
    %191 = tpu.matmul %190, %188, %cst_111 {dimension_numbers = #tpu.dot_dimension_numbers<[1], [0], [0], [1], [0, 0, 1, 1], [], []>} : vector<3x64xf32>, vector<64x256xf32>, vector<3x256xf32> -> vector<3x256xf32>
    %192 = arith.addf %184, %191 : vector<3x256xf32>
    %c241_i32_112 = arith.constant 241 : i32
    %193 = tpu.dynamic_rotate %146 by %c241_i32_112 dim 1 : vector<64x256xf32>, i32 -> vector<64x256xf32>
    %194 = vector.extract_strided_slice %0 {offsets = [6, 0], sizes = [1, 256], strides = [1, 1]} : vector<9x256xf32> to vector<1x256xf32>
    %195 = vector.broadcast %194 : vector<1x256xf32> to vector<64x256xf32>
    %196 = arith.mulf %193, %195 : vector<64x256xf32>
    %c6_113 = arith.constant 6 : index
    %c0_114 = arith.constant 0 : index
    %c0_115 = arith.constant 0 : index
    %197 = vector.load %arg7[%c6_113, %c0_114, %c0_115] : memref<9x3x64xf32, #tpu.memory_space<vmem>>, vector<1x3x64xf32>
    %198 = vector.shape_cast %197 : vector<1x3x64xf32> to vector<3x64xf32>
    %cst_116 = arith.constant dense<0.000000e+00> : vector<3x256xf32>
    %199 = tpu.matmul %198, %196, %cst_116 {dimension_numbers = #tpu.dot_dimension_numbers<[1], [0], [0], [1], [0, 0, 1, 1], [], []>} : vector<3x64xf32>, vector<64x256xf32>, vector<3x256xf32> -> vector<3x256xf32>
    %200 = arith.addf %192, %199 : vector<3x256xf32>
    %c240_i32_117 = arith.constant 240 : i32
    %201 = tpu.dynamic_rotate %146 by %c240_i32_117 dim 1 : vector<64x256xf32>, i32 -> vector<64x256xf32>
    %202 = vector.extract_strided_slice %0 {offsets = [7, 0], sizes = [1, 256], strides = [1, 1]} : vector<9x256xf32> to vector<1x256xf32>
    %203 = vector.broadcast %202 : vector<1x256xf32> to vector<64x256xf32>
    %204 = arith.mulf %201, %203 : vector<64x256xf32>
    %c7_118 = arith.constant 7 : index
    %c0_119 = arith.constant 0 : index
    %c0_120 = arith.constant 0 : index
    %205 = vector.load %arg7[%c7_118, %c0_119, %c0_120] : memref<9x3x64xf32, #tpu.memory_space<vmem>>, vector<1x3x64xf32>
    %206 = vector.shape_cast %205 : vector<1x3x64xf32> to vector<3x64xf32>
    %cst_121 = arith.constant dense<0.000000e+00> : vector<3x256xf32>
    %207 = tpu.matmul %206, %204, %cst_121 {dimension_numbers = #tpu.dot_dimension_numbers<[1], [0], [0], [1], [0, 0, 1, 1], [], []>} : vector<3x64xf32>, vector<64x256xf32>, vector<3x256xf32> -> vector<3x256xf32>
    %208 = arith.addf %200, %207 : vector<3x256xf32>
    %c239_i32_122 = arith.constant 239 : i32
    %209 = tpu.dynamic_rotate %146 by %c239_i32_122 dim 1 : vector<64x256xf32>, i32 -> vector<64x256xf32>
    %210 = vector.extract_strided_slice %0 {offsets = [8, 0], sizes = [1, 256], strides = [1, 1]} : vector<9x256xf32> to vector<1x256xf32>
    %211 = vector.broadcast %210 : vector<1x256xf32> to vector<64x256xf32>
    %212 = arith.mulf %209, %211 : vector<64x256xf32>
    %c8_123 = arith.constant 8 : index
    %c0_124 = arith.constant 0 : index
    %c0_125 = arith.constant 0 : index
    %213 = vector.load %arg7[%c8_123, %c0_124, %c0_125] : memref<9x3x64xf32, #tpu.memory_space<vmem>>, vector<1x3x64xf32>
    %214 = vector.shape_cast %213 : vector<1x3x64xf32> to vector<3x64xf32>
    %cst_126 = arith.constant dense<0.000000e+00> : vector<3x256xf32>
    %215 = tpu.matmul %214, %212, %cst_126 {dimension_numbers = #tpu.dot_dimension_numbers<[1], [0], [0], [1], [0, 0, 1, 1], [], []>} : vector<3x64xf32>, vector<64x256xf32>, vector<3x256xf32> -> vector<3x256xf32>
    %216 = arith.addf %208, %215 : vector<3x256xf32>
    %217 = math.tanh %216 : vector<3x256xf32>
    %c0_127 = arith.constant 0 : index
    %c0_128 = arith.constant 0 : index
    %c0_129 = arith.constant 0 : index
    %218 = vector.load %arg9[%c0_127, %c0_128, %c0_129] : memref<1x3x256xf32, #tpu.memory_space<vmem>>, vector<1x3x256xf32>
    %219 = vector.shape_cast %218 : vector<1x3x256xf32> to vector<3x256xf32>
    %220 = vector.shape_cast %217 : vector<3x256xf32> to vector<1x3x256xf32>
    tpu.vector_store %arg9[%c0_127, %c0_128, %c0_129], %220 {strides = array<i32>} : memref<1x3x256xf32, #tpu.memory_space<vmem>>, vector<1x3x256xf32>,
    return
  }
  func.func @transform_0(%arg0: i32) -> (i32, i32, i32) {
    %c0_i32 = arith.constant 0 : i32
    %c0_i32_0 = arith.constant 0 : i32
    %c0_i32_1 = arith.constant 0 : i32
    return %arg0, %c0_i32, %c0_i32_0 : i32, i32, i32
  }
  func.func @transform_1(%arg0: i32) -> (i32, i32) {
    %c0_i32 = arith.constant 0 : i32
    %c0_i32_0 = arith.constant 0 : i32
    %c0_i32_1 = arith.constant 0 : i32
    return %c0_i32, %c0_i32_0 : i32, i32
  }
  func.func @transform_2(%arg0: i32) -> (i32, i32, i32) {
    %c0_i32 = arith.constant 0 : i32
    %c0_i32_0 = arith.constant 0 : i32
    %c0_i32_1 = arith.constant 0 : i32
    %c0_i32_2 = arith.constant 0 : i32
    return %c0_i32, %c0_i32_0, %c0_i32_1 : i32, i32, i32
  }
  func.func @transform_3(%arg0: i32) -> (i32, i32) {
    %c0_i32 = arith.constant 0 : i32
    %c0_i32_0 = arith.constant 0 : i32
    %c0_i32_1 = arith.constant 0 : i32
    return %c0_i32, %c0_i32_0 : i32, i32
  }
  func.func @transform_4(%arg0: i32) -> (i32, i32, i32) {
    %c0_i32 = arith.constant 0 : i32
    %c0_i32_0 = arith.constant 0 : i32
    %c0_i32_1 = arith.constant 0 : i32
    %c0_i32_2 = arith.constant 0 : i32
    return %c0_i32, %c0_i32_0, %c0_i32_1 : i32, i32, i32
  }
  func.func @transform_5(%arg0: i32) -> (i32, i32) {
    %c0_i32 = arith.constant 0 : i32
    %c0_i32_0 = arith.constant 0 : i32
    %c0_i32_1 = arith.constant 0 : i32
    return %c0_i32, %c0_i32_0 : i32, i32
  }
  func.func @transform_6(%arg0: i32) -> (i32, i32, i32) {
    %c0_i32 = arith.constant 0 : i32
    %c0_i32_0 = arith.constant 0 : i32
    %c0_i32_1 = arith.constant 0 : i32
    %c0_i32_2 = arith.constant 0 : i32
    return %c0_i32, %c0_i32_0, %c0_i32_1 : i32, i32, i32
  }
  func.func @transform_7(%arg0: i32) -> (i32, i32) {
    %c0_i32 = arith.constant 0 : i32
    %c0_i32_0 = arith.constant 0 : i32
    %c0_i32_1 = arith.constant 0 : i32
    return %c0_i32, %c0_i32_0 : i32, i32
  }
  func.func @transform_8(%arg0: i32) -> (i32, i32, i32) {
    %c0_i32 = arith.constant 0 : i32
    %c0_i32_0 = arith.constant 0 : i32
    %c0_i32_1 = arith.constant 0 : i32
    return %arg0, %c0_i32, %c0_i32_0 : i32, i32, i32
  }
}

</mosaic_0001>

<llo_original>
// kernel: g_forward.1
$region0: #{g_forward.1}
  #allocation0 [shape = 'u32[]', space=smem, size = 0x4, offset = 0x4, fixed_abs, tag = 'smem constant byte address 0x4 - core index']
  #allocation1 [shape = 'u32[144,128]{1,0:T(1,128)}', space=vmem, size = 0x12000, scoped, tag = 'internal scratch']
  %s0 = inlined_call_operand.vmem [shape: f32[2,3,256], index: 0, kind: input, shape index: {}]
  %s1 = inlined_call_operand.vmem [shape: f32[9,256], index: 1, kind: input, shape index: {}]
  %s2 = inlined_call_operand.vmem [shape: f32[9,64,3], index: 2, kind: input, shape index: {}]
  %s3 = inlined_call_operand.vmem [shape: f32[64,1], index: 3, kind: input, shape index: {}]
  %s4 = inlined_call_operand.vmem [shape: f32[9,64,64], index: 4, kind: input, shape index: {}]
  %s5 = inlined_call_operand.vmem [shape: f32[64,1], index: 5, kind: input, shape index: {}]
  %s6 = inlined_call_operand.vmem [shape: f32[9,3,64], index: 6, kind: input, shape index: {}]
  %s7 = inlined_call_operand.vmem [shape: f32[3,1], index: 7, kind: input, shape index: {}]
  %s8 = inlined_call_operand.vmem [shape: f32[2,3,256], index: 8, kind: output, shape index: {}]
  %s9 = sld [smem:[#allocation0]]
  $region65: #{g_forward.1} parent=0
    _
  %s11 = ssub.s32 1, %s9
  %s12 = scalar_select 0, %s11, %s9
  loop: start=0, step=1, limit=4
  $region2: #{g_forward.1} parent=0 // loop_pre_header
    _
  $region3: #{g_forward.1} parent=0 // loop_header
    %s14 = sphi 0, %s18
    %p15 = scmp.ge.s32.totalorder %s14, 4
    %s24 = sphi 0, %s26
    %s27 = sphi 0, %s24
    %s28 = sphi 0, %s27
    %s44 = sphi 0, %s28
    %s48 = sphi 0, %s48
    %s50 = sphi 0, %s48
    %s51 = sphi 0, %s50
    %s65 = sphi 0, %s51
    %s69 = sphi 0, %s69
    %s71 = sphi 0, %s69
    %s72 = sphi 0, %s71
    %s86 = sphi 0, %s72
    %s90 = sphi 0, %s90
    %s92 = sphi 0, %s90
    %s93 = sphi 0, %s92
    %s107 = sphi 0, %s93
    %s111 = sphi 0, %s111
    %s113 = sphi 0, %s111
    %s114 = sphi 0, %s113
    %s128 = sphi 0, %s114
    %s132 = sphi 0, %s132
    %s134 = sphi 0, %s132
    %s135 = sphi 0, %s134
    %s149 = sphi 0, %s135
    %s153 = sphi 0, %s153
    %s155 = sphi 0, %s153
    %s156 = sphi 0, %s155
    %s170 = sphi 0, %s156
    %s174 = sphi 0, %s174
    %s176 = sphi 0, %s174
    %s177 = sphi 0, %s176
    %s191 = sphi 0, %s177
    %s197 = sphi 0, %s199
    %s200 = sphi 0, %s197
    %s201 = sphi 0, %s200
    %s217 = sphi 0, %s201
  $region4: #{g_forward.1} parent=0 // loop_header_branch
    %17 = sbr.rel (%p15) target = $region8
  $region5: #{g_forward.1} parent=0 // loop_body
    %s19 = ssub.s32 %s14, 1
    %s20 = ssub.s32 %s14, 2
    %s21 = sadd.s32 %s14, 1
    %s22 = ssub.s32 %s14, %s21
    %p23 = scmp.eq.s32.totalorder %s22, 0
    %s25 = sadd.s32 %s24, 1
    %s26 = scalar_select %p23, %s24, %s25
    %p29 = pneg %p23
    %p30 = scmp.eq.s32.totalorder %s14, 1
    %p31 = por %p29, %p30
    %p32 = scmp.ne.s32.totalorder %s24, %s27
    %p33 = scmp.eq.s32.totalorder %s14, 0
    %p34 = por %p32, %p33
    %p35 = scmp.ne.s32.totalorder %s24, %s27
    %p36 = scmp.eq.s32.totalorder %s19, 1
    %p37 = por %p35, %p36
    %p38 = scmp.ne.s32.totalorder %s27, %s28
    %p39 = scmp.eq.s32.totalorder %s19, 0
    %p40 = por %p38, %p39
    %p41 = scmp.ne.s32.totalorder %s27, %s28
    %p42 = scmp.eq.s32.totalorder %s20, 1
    %p43 = por %p41, %p42
    %p45 = scmp.ne.s32.totalorder %s28, %s44
    %p46 = scmp.eq.s32.totalorder %s20, 0
    %p47 = por %p45, %p46
    %s49 = sadd.s32 %s48, 1
    %p52 = scmp.eq.s32.totalorder %s14, 1
    %p53 = scmp.ne.s32.totalorder %s48, %s50
    %p54 = scmp.eq.s32.totalorder %s14, 0
    %p55 = por %p53, %p54
    %p56 = scmp.ne.s32.totalorder %s48, %s50
    %p57 = scmp.eq.s32.totalorder %s19, 1
    %p58 = por %p56, %p57
    %p59 = scmp.ne.s32.totalorder %s50, %s51
    %p60 = scmp.eq.s32.totalorder %s19, 0
    %p61 = por %p59, %p60
    %p62 = scmp.ne.s32.totalorder %s50, %s51
    %p63 = scmp.eq.s32.totalorder %s20, 1
    %p64 = por %p62, %p63
    %p66 = scmp.ne.s32.totalorder %s51, %s65
    %p67 = scmp.eq.s32.totalorder %s20, 0
    %p68 = por %p66, %p67
    %s70 = sadd.s32 %s69, 1
    %p73 = scmp.eq.s32.totalorder %s14, 1
    %p74 = scmp.ne.s32.totalorder %s69, %s71
    %p75 = scmp.eq.s32.totalorder %s14, 0
    %p76 = por %p74, %p75
    %p77 = scmp.ne.s32.totalorder %s69, %s71
    %p78 = scmp.eq.s32.totalorder %s19, 1
    %p79 = por %p77, %p78
    %p80 = scmp.ne.s32.totalorder %s71, %s72
    %p81 = scmp.eq.s32.totalorder %s19, 0
    %p82 = por %p80, %p81
    %p83 = scmp.ne.s32.totalorder %s71, %s72
    %p84 = scmp.eq.s32.totalorder %s20, 1
    %p85 = por %p83, %p84
    %p87 = scmp.ne.s32.totalorder %s72, %s86
    %p88 = scmp.eq.s32.totalorder %s20, 0
    %p89 = por %p87, %p88
    %s91 = sadd.s32 %s90, 1
    %p94 = scmp.eq.s32.totalorder %s14, 1
    %p95 = scmp.ne.s32.totalorder %s90, %s92
    %p96 = scmp.eq.s32.totalorder %s14, 0
    %p97 = por %p95, %p96
    %p98 = scmp.ne.s32.totalorder %s90, %s92
    %p99 = scmp.eq.s32.totalorder %s19, 1
    %p100 = por %p98, %p99
    %p101 = scmp.ne.s32.totalorder %s92, %s93
    %p102 = scmp.eq.s32.totalorder %s19, 0
    %p103 = por %p101, %p102
    %p104 = scmp.ne.s32.totalorder %s92, %s93
    %p105 = scmp.eq.s32.totalorder %s20, 1
    %p106 = por %p104, %p105
    %p108 = scmp.ne.s32.totalorder %s93, %s107
    %p109 = scmp.eq.s32.totalorder %s20, 0
    %p110 = por %p108, %p109
    %s112 = sadd.s32 %s111, 1
    %p115 = scmp.eq.s32.totalorder %s14, 1
    %p116 = scmp.ne.s32.totalorder %s111, %s113
    %p117 = scmp.eq.s32.totalorder %s14, 0
    %p118 = por %p116, %p117
    %p119 = scmp.ne.s32.totalorder %s111, %s113
    %p120 = scmp.eq.s32.totalorder %s19, 1
    %p121 = por %p119, %p120
    %p122 = scmp.ne.s32.totalorder %s113, %s114
    %p123 = scmp.eq.s32.totalorder %s19, 0
    %p124 = por %p122, %p123
    %p125 = scmp.ne.s32.totalorder %s113, %s114
    %p126 = scmp.eq.s32.totalorder %s20, 1
    %p127 = por %p125, %p126
    %p129 = scmp.ne.s32.totalorder %s114, %s128
    %p130 = scmp.eq.s32.totalorder %s20, 0
    %p131 = por %p129, %p130
    %s133 = sadd.s32 %s132, 1
    %p136 = scmp.eq.s32.totalorder %s14, 1
    %p137 = scmp.ne.s32.totalorder %s132, %s134
    %p138 = scmp.eq.s32.totalorder %s14, 0
    %p139 = por %p137, %p138
    %p140 = scmp.ne.s32.totalorder %s132, %s134
    %p141 = scmp.eq.s32.totalorder %s19, 1
    %p142 = por %p140, %p141
    %p143 = scmp.ne.s32.totalorder %s134, %s135
    %p144 = scmp.eq.s32.totalorder %s19, 0
    %p145 = por %p143, %p144
    %p146 = scmp.ne.s32.totalorder %s134, %s135
    %p147 = scmp.eq.s32.totalorder %s20, 1
    %p148 = por %p146, %p147
    %p150 = scmp.ne.s32.totalorder %s135, %s149
    %p151 = scmp.eq.s32.totalorder %s20, 0
    %p152 = por %p150, %p151
    %s154 = sadd.s32 %s153, 1
    %p157 = scmp.eq.s32.totalorder %s14, 1
    %p158 = scmp.ne.s32.totalorder %s153, %s155
    %p159 = scmp.eq.s32.totalorder %s14, 0
    %p160 = por %p158, %p159
    %p161 = scmp.ne.s32.totalorder %s153, %s155
    %p162 = scmp.eq.s32.totalorder %s19, 1
    %p163 = por %p161, %p162
    %p164 = scmp.ne.s32.totalorder %s155, %s156
    %p165 = scmp.eq.s32.totalorder %s19, 0
    %p166 = por %p164, %p165
    %p167 = scmp.ne.s32.totalorder %s155, %s156
    %p168 = scmp.eq.s32.totalorder %s20, 1
    %p169 = por %p167, %p168
    %p171 = scmp.ne.s32.totalorder %s156, %s170
    %p172 = scmp.eq.s32.totalorder %s20, 0
    %p173 = por %p171, %p172
    %s175 = sadd.s32 %s174, 1
    %p178 = scmp.eq.s32.totalorder %s14, 1
    %p179 = scmp.ne.s32.totalorder %s174, %s176
    %p180 = scmp.eq.s32.totalorder %s14, 0
    %p181 = por %p179, %p180
    %p182 = scmp.ne.s32.totalorder %s174, %s176
    %p183 = scmp.eq.s32.totalorder %s19, 1
    %p184 = por %p182, %p183
    %p185 = scmp.ne.s32.totalorder %s176, %s177
    %p186 = scmp.eq.s32.totalorder %s19, 0
    %p187 = por %p185, %p186
    %p188 = scmp.ne.s32.totalorder %s176, %s177
    %p189 = scmp.eq.s32.totalorder %s20, 1
    %p190 = por %p188, %p189
    %p192 = scmp.ne.s32.totalorder %s177, %s191
    %p193 = scmp.eq.s32.totalorder %s20, 0
    %p194 = por %p192, %p193
    %s195 = ssub.s32 %s14, %s21
    %p196 = scmp.eq.s32.totalorder %s195, 0
    %s198 = sadd.s32 %s197, 1
    %s199 = scalar_select %p196, %s197, %s198
    %p202 = pneg %p196
    %p203 = scmp.eq.s32.totalorder %s14, 1
    %p204 = por %p202, %p203
    %p205 = scmp.ne.s32.totalorder %s197, %s200
    %p206 = scmp.eq.s32.totalorder %s14, 0
    %p207 = por %p205, %p206
    %p208 = scmp.ne.s32.totalorder %s197, %s200
    %p209 = scmp.eq.s32.totalorder %s19, 1
    %p210 = por %p208, %p209
    %p211 = scmp.ne.s32.totalorder %s200, %s201
    %p212 = scmp.eq.s32.totalorder %s19, 0
    %p213 = por %p211, %p212
    %p214 = scmp.ne.s32.totalorder %s200, %s201
    %p215 = scmp.eq.s32.totalorder %s20, 1
    %p216 = por %p214, %p215
    %p218 = scmp.ne.s32.totalorder %s201, %s217
    %p219 = scmp.eq.s32.totalorder %s20, 0
    %p220 = por %p218, %p219
    %p221 = scmp.le.s32.totalorder 1, %s14
    %p222 = scmp.lt.s32.totalorder %s14, 3
    %p223 = pnand %p221, %p222
    %p224 = pneg %p223
    // Predicated region
    $region9: #{g_forward.1} parent=5 // pred_check
      _
    $region10: #{g_forward.1} parent=5 // pred_check_branch
      %226 = sbr.rel (%p223) target = $region12
    $region11: #{g_forward.1} parent=5 // pred_region
      %s227 = ssub.s32 %s14, 1
      // Predicated region
      $region13: #{g_forward.1} parent=11 // pred_check
        %p228 = pneg %p61
      $region14: #{g_forward.1} parent=11 // pred_check_branch
        %230 = sbr.rel (%p228) target = $region16
      $region15: #{g_forward.1} parent=11 // pred_region
        _
      $region16: #{g_forward.1} parent=11 // pred_fallthru
        _
      // Predicated region
      $region17: #{g_forward.1} parent=11 // pred_check
        %p231 = pneg %p82
      $region18: #{g_forward.1} parent=11 // pred_check_branch
        %233 = sbr.rel (%p231) target = $region20
      $region19: #{g_forward.1} parent=11 // pred_region
        _
      $region20: #{g_forward.1} parent=11 // pred_fallthru
        _
      // Predicated region
      $region21: #{g_forward.1} parent=11 // pred_check
        %p234 = pneg %p103
      $region22: #{g_forward.1} parent=11 // pred_check_branch
        %236 = sbr.rel (%p234) target = $region24
      $region23: #{g_forward.1} parent=11 // pred_region
        _
      $region24: #{g_forward.1} parent=11 // pred_fallthru
        _
      // Predicated region
      $region25: #{g_forward.1} parent=11 // pred_check
        %p237 = pneg %p124
      $region26: #{g_forward.1} parent=11 // pred_check_branch
        %239 = sbr.rel (%p237) target = $region28
      $region27: #{g_forward.1} parent=11 // pred_region
        _
      $region28: #{g_forward.1} parent=11 // pred_fallthru
        _
      // Predicated region
      $region29: #{g_forward.1} parent=11 // pred_check
        %p240 = pneg %p145
      $region30: #{g_forward.1} parent=11 // pred_check_branch
        %242 = sbr.rel (%p240) target = $region32
      $region31: #{g_forward.1} parent=11 // pred_region
        _
      $region32: #{g_forward.1} parent=11 // pred_fallthru
        _
      // Predicated region
      $region33: #{g_forward.1} parent=11 // pred_check
        %p243 = pneg %p166
      $region34: #{g_forward.1} parent=11 // pred_check_branch
        %245 = sbr.rel (%p243) target = $region36
      $region35: #{g_forward.1} parent=11 // pred_region
        _
      $region36: #{g_forward.1} parent=11 // pred_fallthru
        _
      // Predicated region
      $region37: #{g_forward.1} parent=11 // pred_check
        %p246 = pneg %p187
      $region38: #{g_forward.1} parent=11 // pred_check_branch
        %248 = sbr.rel (%p246) target = $region40
      $region39: #{g_forward.1} parent=11 // pred_region
        _
      $region40: #{g_forward.1} parent=11 // pred_fallthru
        _
    $region12: #{g_forward.1} parent=5 // pred_fallthru
      _
    %p249 = scmp.lt.s32.totalorder %s14, 2
    // Predicated region
    $region41: #{g_forward.1} parent=5 // pred_check
      %p250 = pneg %p249
    $region42: #{g_forward.1} parent=5 // pred_check_branch
      %252 = sbr.rel (%p250) target = $region44
    $region43: #{g_forward.1} parent=5 // pred_region
      // Predicated region
      $region45: #{g_forward.1} parent=43 // pred_check
        %p253 = pneg %p34
      $region46: #{g_forward.1} parent=43 // pred_check_branch
        %255 = sbr.rel (%p253) target = $region48
      $region47: #{g_forward.1} parent=43 // pred_region
        %p256 = scmp.lt.s32.totalorder %s14, 1
        %s257 = scalar_select %p256, %s14, 1
        %s258 = smul.addr %s257, 2
        %s259 = smul.addr %s258, 4
        %s260 = scalar_lea.vmem %s0, %s259
      $region48: #{g_forward.1} parent=43 // pred_fallthru
        _
    $region44: #{g_forward.1} parent=5 // pred_fallthru
      _
    %p261 = scmp.le.s32.totalorder 1, %s14
    %p262 = scmp.lt.s32.totalorder %s14, 3
    %p263 = pnand %p261, %p262
    %p264 = pneg %p263
    // Predicated region
    $region49: #{g_forward.1} parent=5 // pred_check
      _
    $region50: #{g_forward.1} parent=5 // pred_check_branch
      %266 = sbr.rel (%p263) target = $region52
    $region51: #{g_forward.1} parent=5 // pred_region
      %s267 = ssub.s32 %s14, 1
      %p268 = scmp.lt.s32.totalorder %s19, 1
      %s269 = scalar_select %p268, %s19, 1
      %s270 = smul.addr %s269, 2
      %s271 = smul.addr %s270, 4
      %s272 = scalar_lea.vmem %s0, %s271
      %p273 = pneg %p40
      %p274 = pneg %p37
      %p275 = pneg %p61
      %p276 = pneg %p58
      %p277 = pneg %p82
      %p278 = pneg %p79
      %p279 = pneg %p103
      %p280 = pneg %p100
      %p281 = pneg %p124
      %p282 = pneg %p121
      %p283 = pneg %p145
      %p284 = pneg %p142
      %p285 = pneg %p166
      %p286 = pneg %p163
      %p287 = pneg %p187
      %p288 = pneg %p184
      %p289 = pneg %p213
      %p290 = pneg %p210
      %p291 = scmp.lt.s32.totalorder %s19, 1
      %s292 = scalar_select %p291, %s19, 1
      %s293 = smul.addr %s292, 2
      %s294 = smul.addr %s293, 4
      %s295 = scalar_lea.vmem %s8, %s294
      %p296 = scmp.lt.s32.totalorder %s19, 1
      %s297 = scalar_select %p296, %s19, 1
      %s298 = smul.addr %s297, 2
      %s299 = smul.addr %s298, 4
      %s300 = scalar_lea.vmem %s0, %s299
      %p301 = scmp.lt.s32.totalorder %s19, 1
      %s302 = scalar_select %p301, %s19, 1
      %s303 = smul.addr %s302, 2
      %s304 = smul.addr %s303, 4
      %s305 = scalar_lea.vmem %s8, %s304
      %v306 = vld [vmem:[%s1] sm:$0xff]
      %v307 = vld [vmem:[%s1 + $0x8] sm:$0xff]
      %v308 = vld [vmem:[%s1 + $0x10] sm:$0x1]
      %v309 = vld [vmem:[%s1 + $0x18] sm:$0x1]
      %v310 = vld [vmem:[%s300] sm:$0x77]
      %s311 = scalar_lea.vmem %s2, 256
      %v312 = vld [vmem:[%s311] sm:$0xff]
      %v313 = vld [vmem:[%s311 + $0x8] sm:$0xff]
      %v314 = vld [vmem:[%s311 + $0x10] sm:$0xff]
      %v315 = vld [vmem:[%s311 + $0x18] sm:$0xff]
      %v316 = vld [vmem:[%s311 + $0x20] sm:$0xff]
      %v317 = vld [vmem:[%s311 + $0x28] sm:$0xff]
      %v318 = vld [vmem:[%s311 + $0x30] sm:$0xff]
      %v319 = vld [vmem:[%s311 + $0x38] sm:$0xff]
      %v320 = vld [vmem:[%s3] sm:$0xff]
      %v321 = vld [vmem:[%s3 + $0x8] sm:$0xff]
      %v322 = vld [vmem:[%s3 + $0x10] sm:$0xff]
      %v323 = vld [vmem:[%s3 + $0x18] sm:$0xff]
      %v324 = vld [vmem:[%s3 + $0x20] sm:$0xff]
      %v325 = vld [vmem:[%s3 + $0x28] sm:$0xff]
      %v326 = vld [vmem:[%s3 + $0x30] sm:$0xff]
      %v327 = vld [vmem:[%s3 + $0x38] sm:$0xff]
      %329 = vset.pattern.permute.xlu0 0
      %330 = vperm.xlu0 %329, %v320
      %v331 = vpop.permute.xlu0 %330
      %334 = vset.pattern.permute.xlu0 0
      %335 = vperm.xlu0 %334, %v321
      %v336 = vpop.permute.xlu0 %335
      %339 = vset.pattern.permute.xlu0 0
      %340 = vperm.xlu0 %339, %v322
      %v341 = vpop.permute.xlu0 %340
      %344 = vset.pattern.permute.xlu0 0
      %345 = vperm.xlu0 %344, %v323
      %v346 = vpop.permute.xlu0 %345
      %349 = vset.pattern.permute.xlu0 0
      %350 = vperm.xlu0 %349, %v324
      %v351 = vpop.permute.xlu0 %350
      %354 = vset.pattern.permute.xlu0 0
      %355 = vperm.xlu0 %354, %v325
      %v356 = vpop.permute.xlu0 %355
      %359 = vset.pattern.permute.xlu0 0
      %360 = vperm.xlu0 %359, %v326
      %v361 = vpop.permute.xlu0 %360
      %364 = vset.pattern.permute.xlu0 0
      %365 = vperm.xlu0 %364, %v327
      %v366 = vpop.permute.xlu0 %365
      %v369 = vcombine.high %v310, %v310
      %vm370 = vcmask 23552
      %v372 = vsel %vm370, %v312, 0
      %v375 = vsel %vm370, %v313, 0
      %v378 = vsel %vm370, %v314, 0
      %v381 = vsel %vm370, %v315, 0
      %v384 = vsel %vm370, %v316, 0
      %v387 = vsel %vm370, %v317, 0
      %v390 = vsel %vm370, %v318, 0
      %v393 = vsel %vm370, %v319, 0
      %vm395 = vcmask 1042432
      %v396 = vsel %vm395, %v310, 0
      %v398 = vsel %vm395, %v369, 0
      %400 = vmatprep.subr.mxu0 0.0
      %401 = vmatpush1.msra.mxu0 0.0
      %402 = vmatprep.subr.mxu0 0.0
      %403 = vmatpush1.msra.mxu0 0.0
      %404 = vmatprep.subr.mxu0 0.0
      %405 = vmatpush1.msra.mxu0 0.0
      %406 = vmatprep.subr.mxu0 0.0
      %407 = vmatpush1.msra.mxu0 0.0
      %408 = vmatprep.subr.mxu0 0.0
      %409 = vmatpush1.msra.mxu0 0.0
      %410 = vmatprep.subr.mxu0 0.0
      %411 = vmatpush1.msra.mxu0 0.0
      %412 = vmatprep.subr.mxu0 0.0
      %413 = vmatpush1.msra.mxu0 0.0
      %414 = vmatprep.subr.mxu0 0.0
      %415 = vmatpush1.msra.mxu0 0.0
      %416 = vmatprep.subr.mxu0 0.0
      %417 = vmatpush1.msra.mxu0 0.0
      %418 = vmatprep.subr.mxu0 0.0
      %419 = vmatpush1.msra.mxu0 0.0
      %420 = vmatprep.subr.mxu0 0.0
      %421 = vmatpush1.msra.mxu0 0.0
      %422 = vmatprep.subr.mxu0 0.0
      %423 = vmatpush1.msra.mxu0 0.0
      %424 = vmatprep.subr.mxu0 0.0
      %425 = vmatpush1.msra.mxu0 0.0
      %426 = vmatprep.subr.mxu0 0.0
      %427 = vmatpush1.msra.mxu0 0.0
      %428 = vmatprep.subr.mxu0 0.0
      %429 = vmatpush1.msra.mxu0 0.0
      %430 = vmatprep.subr.mxu0 %v398
      %431 = vmatpush1.msra.mxu0 %v396
      %432 = vmatprep.subr.mxu0 0.0
      %433 = vmatpush2.msra.mxu0 0.0
      %434 = vmatprep.subr.mxu0 0.0
      %435 = vmatpush2.msra.mxu0 0.0
      %436 = vmatprep.subr.mxu0 0.0
      %437 = vmatpush2.msra.mxu0 0.0
      %438 = vmatprep.subr.mxu0 0.0
      %439 = vmatpush2.msra.mxu0 0.0
      %440 = vmatprep.subr.mxu0 0.0
      %441 = vmatpush2.msra.mxu0 0.0
      %442 = vmatprep.subr.mxu0 0.0
      %443 = vmatpush2.msra.mxu0 0.0
      %444 = vmatprep.subr.mxu0 0.0
      %445 = vmatpush2.msra.mxu0 0.0
      %446 = vmatprep.subr.mxu0 0.0
      %447 = vmatpush2.msra.mxu0 0.0
      %448 = vmatprep.subr.mxu0 0.0
      %449 = vmatpush2.msra.mxu0 0.0
      %450 = vmatprep.subr.mxu0 0.0
      %451 = vmatpush2.msra.mxu0 0.0
      %452 = vmatprep.subr.mxu0 0.0
      %453 = vmatpush2.msra.mxu0 0.0
      %454 = vmatprep.subr.mxu0 0.0
      %455 = vmatpush2.msra.mxu0 0.0
      %456 = vmatprep.subr.mxu0 0.0
      %457 = vmatpush2.msra.mxu0 0.0
      %458 = vmatprep.subr.mxu0 0.0
      %459 = vmatpush2.msra.mxu0 0.0
      %460 = vmatprep.subr.mxu0 0.0
      %461 = vmatpush2.msra.mxu0 0.0
      %462 = vmatprep.subr.mxu0 0.0
      %463 = vmatpush2.msra.mxu0 0.0
      %464 = vmatprep.mubr.f32.mxu0 0.0
      %465 = vmatmul.mubr.f32.gmra.mxu0 %v372
      %v466 = vpop.f32.mrf.mxu0
      %v467 = vadd.f32 %v331, %v466
      %v468 = vpop.f32.mrf.mxu0
      %v469 = vadd.f32 %v331, %v468
      %470 = vmatprep.mubr.f32.mxu0 0.0
      %471 = vmatmul.mubr.f32.gmra.mxu0 %v375
      %v472 = vpop.f32.mrf.mxu0
      %v473 = vadd.f32 %v336, %v472
      %v474 = vpop.f32.mrf.mxu0
      %v475 = vadd.f32 %v336, %v474
      %476 = vmatprep.mubr.f32.mxu0 0.0
      %477 = vmatmul.mubr.f32.gmra.mxu0 %v378
      %v478 = vpop.f32.mrf.mxu0
      %v479 = vadd.f32 %v341, %v478
      %v480 = vpop.f32.mrf.mxu0
      %v481 = vadd.f32 %v341, %v480
      %482 = vmatprep.mubr.f32.mxu0 0.0
      %483 = vmatmul.mubr.f32.gmra.mxu0 %v381
      %v484 = vpop.f32.mrf.mxu0
      %v485 = vadd.f32 %v346, %v484
      %v486 = vpop.f32.mrf.mxu0
      %v487 = vadd.f32 %v346, %v486
      %488 = vmatprep.mubr.f32.mxu0 0.0
      %489 = vmatmul.mubr.f32.gmra.mxu0 %v384
      %v490 = vpop.f32.mrf.mxu0
      %v491 = vadd.f32 %v351, %v490
      %v492 = vpop.f32.mrf.mxu0
      %v493 = vadd.f32 %v351, %v492
      %494 = vmatprep.mubr.f32.mxu0 0.0
      %495 = vmatmul.mubr.f32.gmra.mxu0 %v387
      %v496 = vpop.f32.mrf.mxu0
      %v497 = vadd.f32 %v356, %v496
      %v498 = vpop.f32.mrf.mxu0
      %v499 = vadd.f32 %v356, %v498
      %500 = vmatprep.mubr.f32.mxu0 0.0
      %501 = vmatmul.mubr.f32.gmra.mxu0 %v390
      %v502 = vpop.f32.mrf.mxu0
      %v503 = vadd.f32 %v361, %v502
      %v504 = vpop.f32.mrf.mxu0
      %v505 = vadd.f32 %v361, %v504
      %506 = vmatprep.mubr.f32.mxu0 0.0
      %507 = vmatmul.mubr.f32.gmra.mxu0 %v393
      %v508 = vpop.f32.mrf.mxu0
      %v509 = vadd.f32 %v366, %v508
      %v510 = vpop.f32.mrf.mxu0
      %v511 = vadd.f32 %v366, %v510
      %512 = vdwg.mxu0
      %514 = vrot.lane.b32.xlu0 %v310, 17
      %v515 = vpop.permute.xlu0 %514
      %516 = vrot.lane.b32.xlu0 %v369, 17
      %v517 = vpop.permute.xlu0 %516
      %v518 = vlaneseq
      %v519 = vand.u32 %v518, 127
      %vm520 = vcmp.lt.s32.totalorder %v519, 17
      %v521 = vsel %vm520, %v515, %v517
      %v522 = vsel %vm520, %v517, %v515
      %v523 = vlaneseq
      %v524 = vshrl.u32 %v523, 7
      %v525 = vsub.s32 0, %v524
      %v526 = vrot.slane %v306, %v525
      %v527 = vlaneseq
      %v528 = vshrl.u32 %v527, 7
      %v529 = vsub.s32 0, %v528
      %v530 = vrot.slane %v307, %v529
      %v531 = vmul.f32 %v522, %v526
      %v532 = vmul.f32 %v521, %v530
      %v533 = vld [vmem:[%s2] sm:$0xff]
      %v534 = vld [vmem:[%s2 + $0x8] sm:$0xff]
      %v535 = vld [vmem:[%s2 + $0x10] sm:$0xff]
      %v536 = vld [vmem:[%s2 + $0x18] sm:$0xff]
      %v537 = vld [vmem:[%s2 + $0x20] sm:$0xff]
      %v538 = vld [vmem:[%s2 + $0x28] sm:$0xff]
      %v539 = vld [vmem:[%s2 + $0x30] sm:$0xff]
      %v540 = vld [vmem:[%s2 + $0x38] sm:$0xff]
      %v542 = vsel %vm370, %v533, 0
      %v545 = vsel %vm370, %v534, 0
      %v548 = vsel %vm370, %v535, 0
      %v551 = vsel %vm370, %v536, 0
      %v554 = vsel %vm370, %v537, 0
      %v557 = vsel %vm370, %v538, 0
      %v560 = vsel %vm370, %v539, 0
      %v563 = vsel %vm370, %v540, 0
      %v566 = vsel %vm395, %v531, 0
      %v569 = vsel %vm395, %v532, 0
      %571 = vmatprep.subr.mxu0 0.0
      %572 = vmatpush1.msra.mxu0 0.0
      %573 = vmatprep.subr.mxu0 0.0
      %574 = vmatpush1.msra.mxu0 0.0
      %575 = vmatprep.subr.mxu0 0.0
      %576 = vmatpush1.msra.mxu0 0.0
      %577 = vmatprep.subr.mxu0 0.0
      %578 = vmatpush1.msra.mxu0 0.0
      %579 = vmatprep.subr.mxu0 0.0
      %580 = vmatpush1.msra.mxu0 0.0
      %581 = vmatprep.subr.mxu0 0.0
      %582 = vmatpush1.msra.mxu0 0.0
      %583 = vmatprep.subr.mxu0 0.0
      %584 = vmatpush1.msra.mxu0 0.0
      %585 = vmatprep.subr.mxu0 0.0
      %586 = vmatpush1.msra.mxu0 0.0
      %587 = vmatprep.subr.mxu0 0.0
      %588 = vmatpush1.msra.mxu0 0.0
      %589 = vmatprep.subr.mxu0 0.0
      %590 = vmatpush1.msra.mxu0 0.0
      %591 = vmatprep.subr.mxu0 0.0
      %592 = vmatpush1.msra.mxu0 0.0
      %593 = vmatprep.subr.mxu0 0.0
      %594 = vmatpush1.msra.mxu0 0.0
      %595 = vmatprep.subr.mxu0 0.0
      %596 = vmatpush1.msra.mxu0 0.0
      %597 = vmatprep.subr.mxu0 0.0
      %598 = vmatpush1.msra.mxu0 0.0
      %599 = vmatprep.subr.mxu0 0.0
      %600 = vmatpush1.msra.mxu0 0.0
      %601 = vmatprep.subr.mxu0 %v569
      %602 = vmatpush1.msra.mxu0 %v566
      %603 = vmatprep.subr.mxu0 0.0
      %604 = vmatpush2.msra.mxu0 0.0
      %605 = vmatprep.subr.mxu0 0.0
      %606 = vmatpush2.msra.mxu0 0.0
      %607 = vmatprep.subr.mxu0 0.0
      %608 = vmatpush2.msra.mxu0 0.0
      %609 = vmatprep.subr.mxu0 0.0
      %610 = vmatpush2.msra.mxu0 0.0
      %611 = vmatprep.subr.mxu0 0.0
      %612 = vmatpush2.msra.mxu0 0.0
      %613 = vmatprep.subr.mxu0 0.0
      %614 = vmatpush2.msra.mxu0 0.0
      %615 = vmatprep.subr.mxu0 0.0
      %616 = vmatpush2.msra.mxu0 0.0
      %617 = vmatprep.subr.mxu0 0.0
      %618 = vmatpush2.msra.mxu0 0.0
      %619 = vmatprep.subr.mxu0 0.0
      %620 = vmatpush2.msra.mxu0 0.0
      %621 = vmatprep.subr.mxu0 0.0
      %622 = vmatpush2.msra.mxu0 0.0
      %623 = vmatprep.subr.mxu0 0.0
      %624 = vmatpush2.msra.mxu0 0.0
      %625 = vmatprep.subr.mxu0 0.0
      %626 = vmatpush2.msra.mxu0 0.0
      %627 = vmatprep.subr.mxu0 0.0
      %628 = vmatpush2.msra.mxu0 0.0
      %629 = vmatprep.subr.mxu0 0.0
      %630 = vmatpush2.msra.mxu0 0.0
      %631 = vmatprep.subr.mxu0 0.0
      %632 = vmatpush2.msra.mxu0 0.0
      %633 = vmatprep.subr.mxu0 0.0
      %634 = vmatpush2.msra.mxu0 0.0
      %635 = vmatprep.mubr.f32.mxu0 0.0
      %636 = vmatmul.mubr.f32.gmra.mxu0 %v542
      %v637 = vpop.f32.mrf.mxu0
      %v638 = vadd.f32 0.0, %v637
      %v639 = vpop.f32.mrf.mxu0
      %v640 = vadd.f32 0.0, %v639
      %641 = vmatprep.mubr.f32.mxu0 0.0
      %642 = vmatmul.mubr.f32.gmra.mxu0 %v545
      %v643 = vpop.f32.mrf.mxu0
      %v644 = vadd.f32 0.0, %v643
      %v645 = vpop.f32.mrf.mxu0
      %v646 = vadd.f32 0.0, %v645
      %647 = vmatprep.mubr.f32.mxu0 0.0
      %648 = vmatmul.mubr.f32.gmra.mxu0 %v548
      %v649 = vpop.f32.mrf.mxu0
      %v650 = vadd.f32 0.0, %v649
      %v651 = vpop.f32.mrf.mxu0
      %v652 = vadd.f32 0.0, %v651
      %653 = vmatprep.mubr.f32.mxu0 0.0
      %654 = vmatmul.mubr.f32.gmra.mxu0 %v551
      %v655 = vpop.f32.mrf.mxu0
      %v656 = vadd.f32 0.0, %v655
      %v657 = vpop.f32.mrf.mxu0
      %v658 = vadd.f32 0.0, %v657
      %659 = vmatprep.mubr.f32.mxu0 0.0
      %660 = vmatmul.mubr.f32.gmra.mxu0 %v554
      %v661 = vpop.f32.mrf.mxu0
      %v662 = vadd.f32 0.0, %v661
      %v663 = vpop.f32.mrf.mxu0
      %v664 = vadd.f32 0.0, %v663
      %665 = vmatprep.mubr.f32.mxu0 0.0
      %666 = vmatmul.mubr.f32.gmra.mxu0 %v557
      %v667 = vpop.f32.mrf.mxu0
      %v668 = vadd.f32 0.0, %v667
      %v669 = vpop.f32.mrf.mxu0
      %v670 = vadd.f32 0.0, %v669
      %671 = vmatprep.mubr.f32.mxu0 0.0
      %672 = vmatmul.mubr.f32.gmra.mxu0 %v560
      %v673 = vpop.f32.mrf.mxu0
      %v674 = vadd.f32 0.0, %v673
      %v675 = vpop.f32.mrf.mxu0
      %v676 = vadd.f32 0.0, %v675
      %677 = vmatprep.mubr.f32.mxu0 0.0
      %678 = vmatmul.mubr.f32.gmra.mxu0 %v563
      %v679 = vpop.f32.mrf.mxu0
      %v680 = vadd.f32 0.0, %v679
      %v681 = vpop.f32.mrf.mxu0
      %v682 = vadd.f32 0.0, %v681
      %683 = vdwg.mxu0
      %v684 = vadd.f32 %v467, %v638
      %v685 = vadd.f32 %v469, %v640
      %v686 = vadd.f32 %v473, %v644
      %v687 = vadd.f32 %v475, %v646
      %v688 = vadd.f32 %v479, %v650
      %v689 = vadd.f32 %v481, %v652
      %v690 = vadd.f32 %v485, %v656
      %v691 = vadd.f32 %v487, %v658
      %v692 = vadd.f32 %v491, %v662
      %v693 = vadd.f32 %v493, %v664
      %v694 = vadd.f32 %v497, %v668
      %v695 = vadd.f32 %v499, %v670
      %v696 = vadd.f32 %v503, %v674
      %v697 = vadd.f32 %v505, %v676
      %v698 = vadd.f32 %v509, %v680
      %v699 = vadd.f32 %v511, %v682
      %700 = vrot.lane.b32.xlu0 %v310, 16
      %v701 = vpop.permute.xlu0 %700
      %702 = vrot.lane.b32.xlu0 %v369, 16
      %v703 = vpop.permute.xlu0 %702
      %vm704 = vcmp.lt.s32.totalorder %v519, 16
      %v705 = vsel %vm704, %v701, %v703
      %v706 = vsel %vm704, %v703, %v701
      %v707 = vlaneseq
      %v708 = vshrl.u32 %v707, 7
      %v709 = vsub.s32 1, %v708
      %v710 = vrot.slane %v306, %v709
      %v711 = vlaneseq
      %v712 = vshrl.u32 %v711, 7
      %v713 = vsub.s32 1, %v712
      %v714 = vrot.slane %v307, %v713
      %v715 = vmul.f32 %v706, %v710
      %v716 = vmul.f32 %v705, %v714
      %s717 = scalar_lea.vmem %s2, 64
      %v718 = vld [vmem:[%s717] sm:$0xff]
      %v719 = vld [vmem:[%s717 + $0x8] sm:$0xff]
      %v720 = vld [vmem:[%s717 + $0x10] sm:$0xff]
      %v721 = vld [vmem:[%s717 + $0x18] sm:$0xff]
      %v722 = vld [vmem:[%s717 + $0x20] sm:$0xff]
      %v723 = vld [vmem:[%s717 + $0x28] sm:$0xff]
      %v724 = vld [vmem:[%s717 + $0x30] sm:$0xff]
      %v725 = vld [vmem:[%s717 + $0x38] sm:$0xff]
      %v727 = vsel %vm370, %v718, 0
      %v730 = vsel %vm370, %v719, 0
      %v733 = vsel %vm370, %v720, 0
      %v736 = vsel %vm370, %v721, 0
      %v739 = vsel %vm370, %v722, 0
      %v742 = vsel %vm370, %v723, 0
      %v745 = vsel %vm370, %v724, 0
      %v748 = vsel %vm370, %v725, 0
      %v751 = vsel %vm395, %v715, 0
      %v754 = vsel %vm395, %v716, 0
      %756 = vmatprep.subr.mxu0 0.0
      %757 = vmatpush1.msra.mxu0 0.0
      %758 = vmatprep.subr.mxu0 0.0
      %759 = vmatpush1.msra.mxu0 0.0
      %760 = vmatprep.subr.mxu0 0.0
      %761 = vmatpush1.msra.mxu0 0.0
      %762 = vmatprep.subr.mxu0 0.0
      %763 = vmatpush1.msra.mxu0 0.0
      %764 = vmatprep.subr.mxu0 0.0
      %765 = vmatpush1.msra.mxu0 0.0
      %766 = vmatprep.subr.mxu0 0.0
      %767 = vmatpush1.msra.mxu0 0.0
      %768 = vmatprep.subr.mxu0 0.0
      %769 = vmatpush1.msra.mxu0 0.0
      %770 = vmatprep.subr.mxu0 0.0
      %771 = vmatpush1.msra.mxu0 0.0
      %772 = vmatprep.subr.mxu0 0.0
      %773 = vmatpush1.msra.mxu0 0.0
      %774 = vmatprep.subr.mxu0 0.0
      %775 = vmatpush1.msra.mxu0 0.0
      %776 = vmatprep.subr.mxu0 0.0
      %777 = vmatpush1.msra.mxu0 0.0
      %778 = vmatprep.subr.mxu0 0.0
      %779 = vmatpush1.msra.mxu0 0.0
      %780 = vmatprep.subr.mxu0 0.0
      %781 = vmatpush1.msra.mxu0 0.0
      %782 = vmatprep.subr.mxu0 0.0
      %783 = vmatpush1.msra.mxu0 0.0
      %784 = vmatprep.subr.mxu0 0.0
      %785 = vmatpush1.msra.mxu0 0.0
      %786 = vmatprep.subr.mxu0 %v754
      %787 = vmatpush1.msra.mxu0 %v751
      %788 = vmatprep.subr.mxu0 0.0
      %789 = vmatpush2.msra.mxu0 0.0
      %790 = vmatprep.subr.mxu0 0.0
      %791 = vmatpush2.msra.mxu0 0.0
      %792 = vmatprep.subr.mxu0 0.0
      %793 = vmatpush2.msra.mxu0 0.0
      %794 = vmatprep.subr.mxu0 0.0
      %795 = vmatpush2.msra.mxu0 0.0
      %796 = vmatprep.subr.mxu0 0.0
      %797 = vmatpush2.msra.mxu0 0.0
      %798 = vmatprep.subr.mxu0 0.0
      %799 = vmatpush2.msra.mxu0 0.0
      %800 = vmatprep.subr.mxu0 0.0
      %801 = vmatpush2.msra.mxu0 0.0
      %802 = vmatprep.subr.mxu0 0.0
      %803 = vmatpush2.msra.mxu0 0.0
      %804 = vmatprep.subr.mxu0 0.0
      %805 = vmatpush2.msra.mxu0 0.0
      %806 = vmatprep.subr.mxu0 0.0
      %807 = vmatpush2.msra.mxu0 0.0
      %808 = vmatprep.subr.mxu0 0.0
      %809 = vmatpush2.msra.mxu0 0.0
      %810 = vmatprep.subr.mxu0 0.0
      %811 = vmatpush2.msra.mxu0 0.0
      %812 = vmatprep.subr.mxu0 0.0
      %813 = vmatpush2.msra.mxu0 0.0
      %814 = vmatprep.subr.mxu0 0.0
      %815 = vmatpush2.msra.mxu0 0.0
      %816 = vmatprep.subr.mxu0 0.0
      %817 = vmatpush2.msra.mxu0 0.0
      %818 = vmatprep.subr.mxu0 0.0
      %819 = vmatpush2.msra.mxu0 0.0
      %820 = vmatprep.mubr.f32.mxu0 0.0
      %821 = vmatmul.mubr.f32.gmra.mxu0 %v727
      %v822 = vpop.f32.mrf.mxu0
      %v823 = vadd.f32 0.0, %v822
      %v824 = vpop.f32.mrf.mxu0
      %v825 = vadd.f32 0.0, %v824
      %826 = vmatprep.mubr.f32.mxu0 0.0
      %827 = vmatmul.mubr.f32.gmra.mxu0 %v730
      %v828 = vpop.f32.mrf.mxu0
      %v829 = vadd.f32 0.0, %v828
      %v830 = vpop.f32.mrf.mxu0
      %v831 = vadd.f32 0.0, %v830
      %832 = vmatprep.mubr.f32.mxu0 0.0
      %833 = vmatmul.mubr.f32.gmra.mxu0 %v733
      %v834 = vpop.f32.mrf.mxu0
      %v835 = vadd.f32 0.0, %v834
      %v836 = vpop.f32.mrf.mxu0
      %v837 = vadd.f32 0.0, %v836
      %838 = vmatprep.mubr.f32.mxu0 0.0
      %839 = vmatmul.mubr.f32.gmra.mxu0 %v736
      %v840 = vpop.f32.mrf.mxu0
      %v841 = vadd.f32 0.0, %v840
      %v842 = vpop.f32.mrf.mxu0
      %v843 = vadd.f32 0.0, %v842
      %844 = vmatprep.mubr.f32.mxu0 0.0
      %845 = vmatmul.mubr.f32.gmra.mxu0 %v739
      %v846 = vpop.f32.mrf.mxu0
      %v847 = vadd.f32 0.0, %v846
      %v848 = vpop.f32.mrf.mxu0
      %v849 = vadd.f32 0.0, %v848
      %850 = vmatprep.mubr.f32.mxu0 0.0
      %851 = vmatmul.mubr.f32.gmra.mxu0 %v742
      %v852 = vpop.f32.mrf.mxu0
      %v853 = vadd.f32 0.0, %v852
      %v854 = vpop.f32.mrf.mxu0
      %v855 = vadd.f32 0.0, %v854
      %856 = vmatprep.mubr.f32.mxu0 0.0
      %857 = vmatmul.mubr.f32.gmra.mxu0 %v745
      %v858 = vpop.f32.mrf.mxu0
      %v859 = vadd.f32 0.0, %v858
      %v860 = vpop.f32.mrf.mxu0
      %v861 = vadd.f32 0.0, %v860
      %862 = vmatprep.mubr.f32.mxu0 0.0
      %863 = vmatmul.mubr.f32.gmra.mxu0 %v748
      %v864 = vpop.f32.mrf.mxu0
      %v865 = vadd.f32 0.0, %v864
      %v866 = vpop.f32.mrf.mxu0
      %v867 = vadd.f32 0.0, %v866
      %868 = vdwg.mxu0
      %v869 = vadd.f32 %v684, %v823
      %v870 = vadd.f32 %v685, %v825
      %v871 = vadd.f32 %v686, %v829
      %v872 = vadd.f32 %v687, %v831
      %v873 = vadd.f32 %v688, %v835
      %v874 = vadd.f32 %v689, %v837
      %v875 = vadd.f32 %v690, %v841
      %v876 = vadd.f32 %v691, %v843
      %v877 = vadd.f32 %v692, %v847
      %v878 = vadd.f32 %v693, %v849
      %v879 = vadd.f32 %v694, %v853
      %v880 = vadd.f32 %v695, %v855
      %v881 = vadd.f32 %v696, %v859
      %v882 = vadd.f32 %v697, %v861
      %v883 = vadd.f32 %v698, %v865
      %v884 = vadd.f32 %v699, %v867
      %885 = vrot.lane.b32.xlu0 %v310, 15
      %v886 = vpop.permute.xlu0 %885
      %887 = vrot.lane.b32.xlu0 %v369, 15
      %v888 = vpop.permute.xlu0 %887
      %vm889 = vcmp.lt.s32.totalorder %v519, 15
      %v890 = vsel %vm889, %v886, %v888
      %v891 = vsel %vm889, %v888, %v886
      %v892 = vlaneseq
      %v893 = vshrl.u32 %v892, 7
      %v894 = vsub.s32 2, %v893
      %v895 = vrot.slane %v306, %v894
      %v896 = vlaneseq
      %v897 = vshrl.u32 %v896, 7
      %v898 = vsub.s32 2, %v897
      %v899 = vrot.slane %v307, %v898
      %v900 = vmul.f32 %v891, %v895
      %v901 = vmul.f32 %v890, %v899
      %s902 = scalar_lea.vmem %s2, 128
      %v903 = vld [vmem:[%s902] sm:$0xff]
      %v904 = vld [vmem:[%s902 + $0x8] sm:$0xff]
      %v905 = vld [vmem:[%s902 + $0x10] sm:$0xff]
      %v906 = vld [vmem:[%s902 + $0x18] sm:$0xff]
      %v907 = vld [vmem:[%s902 + $0x20] sm:$0xff]
      %v908 = vld [vmem:[%s902 + $0x28] sm:$0xff]
      %v909 = vld [vmem:[%s902 + $0x30] sm:$0xff]
      %v910 = vld [vmem:[%s902 + $0x38] sm:$0xff]
      %v912 = vsel %vm370, %v903, 0
      %v915 = vsel %vm370, %v904, 0
      %v918 = vsel %vm370, %v905, 0
      %v921 = vsel %vm370, %v906, 0
      %v924 = vsel %vm370, %v907, 0
      %v927 = vsel %vm370, %v908, 0
      %v930 = vsel %vm370, %v909, 0
      %v933 = vsel %vm370, %v910, 0
      %v936 = vsel %vm395, %v900, 0
      %v939 = vsel %vm395, %v901, 0
      %941 = vmatprep.subr.mxu0 0.0
      %942 = vmatpush1.msra.mxu0 0.0
      %943 = vmatprep.subr.mxu0 0.0
      %944 = vmatpush1.msra.mxu0 0.0
      %945 = vmatprep.subr.mxu0 0.0
      %946 = vmatpush1.msra.mxu0 0.0
      %947 = vmatprep.subr.mxu0 0.0
      %948 = vmatpush1.msra.mxu0 0.0
      %949 = vmatprep.subr.mxu0 0.0
      %950 = vmatpush1.msra.mxu0 0.0
      %951 = vmatprep.subr.mxu0 0.0
      %952 = vmatpush1.msra.mxu0 0.0
      %953 = vmatprep.subr.mxu0 0.0
      %954 = vmatpush1.msra.mxu0 0.0
      %955 = vmatprep.subr.mxu0 0.0
      %956 = vmatpush1.msra.mxu0 0.0
      %957 = vmatprep.subr.mxu0 0.0
      %958 = vmatpush1.msra.mxu0 0.0
      %959 = vmatprep.subr.mxu0 0.0
      %960 = vmatpush1.msra.mxu0 0.0
      %961 = vmatprep.subr.mxu0 0.0
      %962 = vmatpush1.msra.mxu0 0.0
      %963 = vmatprep.subr.mxu0 0.0
      %964 = vmatpush1.msra.mxu0 0.0
      %965 = vmatprep.subr.mxu0 0.0
      %966 = vmatpush1.msra.mxu0 0.0
      %967 = vmatprep.subr.mxu0 0.0
      %968 = vmatpush1.msra.mxu0 0.0
      %969 = vmatprep.subr.mxu0 0.0
      %970 = vmatpush1.msra.mxu0 0.0
      %971 = vmatprep.subr.mxu0 %v939
      %972 = vmatpush1.msra.mxu0 %v936
      %973 = vmatprep.subr.mxu0 0.0
      %974 = vmatpush2.msra.mxu0 0.0
      %975 = vmatprep.subr.mxu0 0.0
      %976 = vmatpush2.msra.mxu0 0.0
      %977 = vmatprep.subr.mxu0 0.0
      %978 = vmatpush2.msra.mxu0 0.0
      %979 = vmatprep.subr.mxu0 0.0
      %980 = vmatpush2.msra.mxu0 0.0
      %981 = vmatprep.subr.mxu0 0.0
      %982 = vmatpush2.msra.mxu0 0.0
      %983 = vmatprep.subr.mxu0 0.0
      %984 = vmatpush2.msra.mxu0 0.0
      %985 = vmatprep.subr.mxu0 0.0
      %986 = vmatpush2.msra.mxu0 0.0
      %987 = vmatprep.subr.mxu0 0.0
      %988 = vmatpush2.msra.mxu0 0.0
      %989 = vmatprep.subr.mxu0 0.0
      %990 = vmatpush2.msra.mxu0 0.0
      %991 = vmatprep.subr.mxu0 0.0
      %992 = vmatpush2.msra.mxu0 0.0
      %993 = vmatprep.subr.mxu0 0.0
      %994 = vmatpush2.msra.mxu0 0.0
      %995 = vmatprep.subr.mxu0 0.0
      %996 = vmatpush2.msra.mxu0 0.0
      %997 = vmatprep.subr.mxu0 0.0
      %998 = vmatpush2.msra.mxu0 0.0
      %999 = vmatprep.subr.mxu0 0.0
      %1000 = vmatpush2.msra.mxu0 0.0
      %1001 = vmatprep.subr.mxu0 0.0
      %1002 = vmatpush2.msra.mxu0 0.0
      %1003 = vmatprep.subr.mxu0 0.0
      %1004 = vmatpush2.msra.mxu0 0.0
      %1005 = vmatprep.mubr.f32.mxu0 0.0
      %1006 = vmatmul.mubr.f32.gmra.mxu0 %v912
      %v1007 = vpop.f32.mrf.mxu0
      %v1008 = vadd.f32 0.0, %v1007
      %v1009 = vpop.f32.mrf.mxu0
      %v1010 = vadd.f32 0.0, %v1009
      %1011 = vmatprep.mubr.f32.mxu0 0.0
      %1012 = vmatmul.mubr.f32.gmra.mxu0 %v915
      %v1013 = vpop.f32.mrf.mxu0
      %v1014 = vadd.f32 0.0, %v1013
      %v1015 = vpop.f32.mrf.mxu0
      %v1016 = vadd.f32 0.0, %v1015
      %1017 = vmatprep.mubr.f32.mxu0 0.0
      %1018 = vmatmul.mubr.f32.gmra.mxu0 %v918
      %v1019 = vpop.f32.mrf.mxu0
      %v1020 = vadd.f32 0.0, %v1019
      %v1021 = vpop.f32.mrf.mxu0
      %v1022 = vadd.f32 0.0, %v1021
      %1023 = vmatprep.mubr.f32.mxu0 0.0
      %1024 = vmatmul.mubr.f32.gmra.mxu0 %v921
      %v1025 = vpop.f32.mrf.mxu0
      %v1026 = vadd.f32 0.0, %v1025
      %v1027 = vpop.f32.mrf.mxu0
      %v1028 = vadd.f32 0.0, %v1027
      %1029 = vmatprep.mubr.f32.mxu0 0.0
      %1030 = vmatmul.mubr.f32.gmra.mxu0 %v924
      %v1031 = vpop.f32.mrf.mxu0
      %v1032 = vadd.f32 0.0, %v1031
      %v1033 = vpop.f32.mrf.mxu0
      %v1034 = vadd.f32 0.0, %v1033
      %1035 = vmatprep.mubr.f32.mxu0 0.0
      %1036 = vmatmul.mubr.f32.gmra.mxu0 %v927
      %v1037 = vpop.f32.mrf.mxu0
      %v1038 = vadd.f32 0.0, %v1037
      %v1039 = vpop.f32.mrf.mxu0
      %v1040 = vadd.f32 0.0, %v1039
      %1041 = vmatprep.mubr.f32.mxu0 0.0
      %1042 = vmatmul.mubr.f32.gmra.mxu0 %v930
      %v1043 = vpop.f32.mrf.mxu0
      %v1044 = vadd.f32 0.0, %v1043
      %v1045 = vpop.f32.mrf.mxu0
      %v1046 = vadd.f32 0.0, %v1045
      %1047 = vmatprep.mubr.f32.mxu0 0.0
      %1048 = vmatmul.mubr.f32.gmra.mxu0 %v933
      %v1049 = vpop.f32.mrf.mxu0
      %v1050 = vadd.f32 0.0, %v1049
      %v1051 = vpop.f32.mrf.mxu0
      %v1052 = vadd.f32 0.0, %v1051
      %1053 = vdwg.mxu0
      %v1054 = vadd.f32 %v869, %v1008
      %v1055 = vadd.f32 %v870, %v1010
      %v1056 = vadd.f32 %v871, %v1014
      %v1057 = vadd.f32 %v872, %v1016
      %v1058 = vadd.f32 %v873, %v1020
      %v1059 = vadd.f32 %v874, %v1022
      %v1060 = vadd.f32 %v875, %v1026
      %v1061 = vadd.f32 %v876, %v1028
      %v1062 = vadd.f32 %v877, %v1032
      %v1063 = vadd.f32 %v878, %v1034
      %v1064 = vadd.f32 %v879, %v1038
      %v1065 = vadd.f32 %v880, %v1040
      %v1066 = vadd.f32 %v881, %v1044
      %v1067 = vadd.f32 %v882, %v1046
      %v1068 = vadd.f32 %v883, %v1050
      %v1069 = vadd.f32 %v884, %v1052
      %1070 = vrot.lane.b32.xlu0 %v310, 1
      %v1071 = vpop.permute.xlu0 %1070
      %1072 = vrot.lane.b32.xlu0 %v369, 1
      %v1073 = vpop.permute.xlu0 %1072
      %vm1074 = vcmp.lt.s32.totalorder %v519, 1
      %v1075 = vsel %vm1074, %v1071, %v1073
      %v1076 = vsel %vm1074, %v1073, %v1071
      %v1077 = vlaneseq
      %v1078 = vshrl.u32 %v1077, 7
      %v1079 = vsub.s32 3, %v1078
      %v1080 = vrot.slane %v306, %v1079
      %v1081 = vlaneseq
      %v1082 = vshrl.u32 %v1081, 7
      %v1083 = vsub.s32 3, %v1082
      %v1084 = vrot.slane %v307, %v1083
      %v1085 = vmul.f32 %v1076, %v1080
      %v1086 = vmul.f32 %v1075, %v1084
      %s1087 = scalar_lea.vmem %s2, 192
      %v1088 = vld [vmem:[%s1087] sm:$0xff]
      %v1089 = vld [vmem:[%s1087 + $0x8] sm:$0xff]
      %v1090 = vld [vmem:[%s1087 + $0x10] sm:$0xff]
      %v1091 = vld [vmem:[%s1087 + $0x18] sm:$0xff]
      %v1092 = vld [vmem:[%s1087 + $0x20] sm:$0xff]
      %v1093 = vld [vmem:[%s1087 + $0x28] sm:$0xff]
      %v1094 = vld [vmem:[%s1087 + $0x30] sm:$0xff]
      %v1095 = vld [vmem:[%s1087 + $0x38] sm:$0xff]
      %v1097 = vsel %vm370, %v1088, 0
      %v1100 = vsel %vm370, %v1089, 0
      %v1103 = vsel %vm370, %v1090, 0
      %v1106 = vsel %vm370, %v1091, 0
      %v1109 = vsel %vm370, %v1092, 0
      %v1112 = vsel %vm370, %v1093, 0
      %v1115 = vsel %vm370, %v1094, 0
      %v1118 = vsel %vm370, %v1095, 0
      %v1121 = vsel %vm395, %v1085, 0
      %v1124 = vsel %vm395, %v1086, 0
      %1126 = vmatprep.subr.mxu0 0.0
      %1127 = vmatpush1.msra.mxu0 0.0
      %1128 = vmatprep.subr.mxu0 0.0
      %1129 = vmatpush1.msra.mxu0 0.0
      %1130 = vmatprep.subr.mxu0 0.0
      %1131 = vmatpush1.msra.mxu0 0.0
      %1132 = vmatprep.subr.mxu0 0.0
      %1133 = vmatpush1.msra.mxu0 0.0
      %1134 = vmatprep.subr.mxu0 0.0
      %1135 = vmatpush1.msra.mxu0 0.0
      %1136 = vmatprep.subr.mxu0 0.0
      %1137 = vmatpush1.msra.mxu0 0.0
      %1138 = vmatprep.subr.mxu0 0.0
      %1139 = vmatpush1.msra.mxu0 0.0
      %1140 = vmatprep.subr.mxu0 0.0
      %1141 = vmatpush1.msra.mxu0 0.0
      %1142 = vmatprep.subr.mxu0 0.0
      %1143 = vmatpush1.msra.mxu0 0.0
      %1144 = vmatprep.subr.mxu0 0.0
      %1145 = vmatpush1.msra.mxu0 0.0
      %1146 = vmatprep.subr.mxu0 0.0
      %1147 = vmatpush1.msra.mxu0 0.0
      %1148 = vmatprep.subr.mxu0 0.0
      %1149 = vmatpush1.msra.mxu0 0.0
      %1150 = vmatprep.subr.mxu0 0.0
      %1151 = vmatpush1.msra.mxu0 0.0
      %1152 = vmatprep.subr.mxu0 0.0
      %1153 = vmatpush1.msra.mxu0 0.0
      %1154 = vmatprep.subr.mxu0 0.0
      %1155 = vmatpush1.msra.mxu0 0.0
      %1156 = vmatprep.subr.mxu0 %v1124
      %1157 = vmatpush1.msra.mxu0 %v1121
      %1158 = vmatprep.subr.mxu0 0.0
      %1159 = vmatpush2.msra.mxu0 0.0
      %1160 = vmatprep.subr.mxu0 0.0
      %1161 = vmatpush2.msra.mxu0 0.0
      %1162 = vmatprep.subr.mxu0 0.0
      %1163 = vmatpush2.msra.mxu0 0.0
      %1164 = vmatprep.subr.mxu0 0.0
      %1165 = vmatpush2.msra.mxu0 0.0
      %1166 = vmatprep.subr.mxu0 0.0
      %1167 = vmatpush2.msra.mxu0 0.0
      %1168 = vmatprep.subr.mxu0 0.0
      %1169 = vmatpush2.msra.mxu0 0.0
      %1170 = vmatprep.subr.mxu0 0.0
      %1171 = vmatpush2.msra.mxu0 0.0
      %1172 = vmatprep.subr.mxu0 0.0
      %1173 = vmatpush2.msra.mxu0 0.0
      %1174 = vmatprep.subr.mxu0 0.0
      %1175 = vmatpush2.msra.mxu0 0.0
      %1176 = vmatprep.subr.mxu0 0.0
      %1177 = vmatpush2.msra.mxu0 0.0
      %1178 = vmatprep.subr.mxu0 0.0
      %1179 = vmatpush2.msra.mxu0 0.0
      %1180 = vmatprep.subr.mxu0 0.0
      %1181 = vmatpush2.msra.mxu0 0.0
      %1182 = vmatprep.subr.mxu0 0.0
      %1183 = vmatpush2.msra.mxu0 0.0
      %1184 = vmatprep.subr.mxu0 0.0
      %1185 = vmatpush2.msra.mxu0 0.0
      %1186 = vmatprep.subr.mxu0 0.0
      %1187 = vmatpush2.msra.mxu0 0.0
      %1188 = vmatprep.subr.mxu0 0.0
      %1189 = vmatpush2.msra.mxu0 0.0
      %1190 = vmatprep.mubr.f32.mxu0 0.0
      %1191 = vmatmul.mubr.f32.gmra.mxu0 %v1097
      %v1192 = vpop.f32.mrf.mxu0
      %v1193 = vadd.f32 0.0, %v1192
      %v1194 = vpop.f32.mrf.mxu0
      %v1195 = vadd.f32 0.0, %v1194
      %1196 = vmatprep.mubr.f32.mxu0 0.0
      %1197 = vmatmul.mubr.f32.gmra.mxu0 %v1100
      %v1198 = vpop.f32.mrf.mxu0
      %v1199 = vadd.f32 0.0, %v1198
      %v1200 = vpop.f32.mrf.mxu0
      %v1201 = vadd.f32 0.0, %v1200
      %1202 = vmatprep.mubr.f32.mxu0 0.0
      %1203 = vmatmul.mubr.f32.gmra.mxu0 %v1103
      %v1204 = vpop.f32.mrf.mxu0
      %v1205 = vadd.f32 0.0, %v1204
      %v1206 = vpop.f32.mrf.mxu0
      %v1207 = vadd.f32 0.0, %v1206
      %1208 = vmatprep.mubr.f32.mxu0 0.0
      %1209 = vmatmul.mubr.f32.gmra.mxu0 %v1106
      %v1210 = vpop.f32.mrf.mxu0
      %v1211 = vadd.f32 0.0, %v1210
      %v1212 = vpop.f32.mrf.mxu0
      %v1213 = vadd.f32 0.0, %v1212
      %1214 = vmatprep.mubr.f32.mxu0 0.0
      %1215 = vmatmul.mubr.f32.gmra.mxu0 %v1109
      %v1216 = vpop.f32.mrf.mxu0
      %v1217 = vadd.f32 0.0, %v1216
      %v1218 = vpop.f32.mrf.mxu0
      %v1219 = vadd.f32 0.0, %v1218
      %1220 = vmatprep.mubr.f32.mxu0 0.0
      %1221 = vmatmul.mubr.f32.gmra.mxu0 %v1112
      %v1222 = vpop.f32.mrf.mxu0
      %v1223 = vadd.f32 0.0, %v1222
      %v1224 = vpop.f32.mrf.mxu0
      %v1225 = vadd.f32 0.0, %v1224
      %1226 = vmatprep.mubr.f32.mxu0 0.0
      %1227 = vmatmul.mubr.f32.gmra.mxu0 %v1115
      %v1228 = vpop.f32.mrf.mxu0
      %v1229 = vadd.f32 0.0, %v1228
      %v1230 = vpop.f32.mrf.mxu0
      %v1231 = vadd.f32 0.0, %v1230
      %1232 = vmatprep.mubr.f32.mxu0 0.0
      %1233 = vmatmul.mubr.f32.gmra.mxu0 %v1118
      %v1234 = vpop.f32.mrf.mxu0
      %v1235 = vadd.f32 0.0, %v1234
      %v1236 = vpop.f32.mrf.mxu0
      %v1237 = vadd.f32 0.0, %v1236
      %1238 = vdwg.mxu0
      %v1239 = vadd.f32 %v1054, %v1193
      %v1240 = vadd.f32 %v1055, %v1195
      %v1241 = vadd.f32 %v1056, %v1199
      %v1242 = vadd.f32 %v1057, %v1201
      %v1243 = vadd.f32 %v1058, %v1205
      %v1244 = vadd.f32 %v1059, %v1207
      %v1245 = vadd.f32 %v1060, %v1211
      %v1246 = vadd.f32 %v1061, %v1213
      %v1247 = vadd.f32 %v1062, %v1217
      %v1248 = vadd.f32 %v1063, %v1219
      %v1249 = vadd.f32 %v1064, %v1223
      %v1250 = vadd.f32 %v1065, %v1225
      %v1251 = vadd.f32 %v1066, %v1229
      %v1252 = vadd.f32 %v1067, %v1231
      %v1253 = vadd.f32 %v1068, %v1235
      %v1254 = vadd.f32 %v1069, %v1237
      %1255 = vrot.lane.b32.xlu0 %v310, 127
      %v1256 = vpop.permute.xlu0 %1255
      %1257 = vrot.lane.b32.xlu0 %v369, 127
      %v1258 = vpop.permute.xlu0 %1257
      %vm1259 = vcmp.lt.s32.totalorder %v519, 127
      %v1260 = vsel %vm1259, %v1256, %v1258
      %v1261 = vsel %vm1259, %v1258, %v1256
      %v1262 = vlaneseq
      %v1263 = vshrl.u32 %v1262, 7
      %v1264 = vsub.s32 5, %v1263
      %v1265 = vrot.slane %v306, %v1264
      %v1266 = vlaneseq
      %v1267 = vshrl.u32 %v1266, 7
      %v1268 = vsub.s32 5, %v1267
      %v1269 = vrot.slane %v307, %v1268
      %v1270 = vmul.f32 %v1260, %v1265
      %v1271 = vmul.f32 %v1261, %v1269
      %s1272 = scalar_lea.vmem %s2, 320
      %v1273 = vld [vmem:[%s1272] sm:$0xff]
      %v1274 = vld [vmem:[%s1272 + $0x8] sm:$0xff]
      %v1275 = vld [vmem:[%s1272 + $0x10] sm:$0xff]
      %v1276 = vld [vmem:[%s1272 + $0x18] sm:$0xff]
      %v1277 = vld [vmem:[%s1272 + $0x20] sm:$0xff]
      %v1278 = vld [vmem:[%s1272 + $0x28] sm:$0xff]
      %v1279 = vld [vmem:[%s1272 + $0x30] sm:$0xff]
      %v1280 = vld [vmem:[%s1272 + $0x38] sm:$0xff]
      %v1282 = vsel %vm370, %v1273, 0
      %v1285 = vsel %vm370, %v1274, 0
      %v1288 = vsel %vm370, %v1275, 0
      %v1291 = vsel %vm370, %v1276, 0
      %v1294 = vsel %vm370, %v1277, 0
      %v1297 = vsel %vm370, %v1278, 0
      %v1300 = vsel %vm370, %v1279, 0
      %v1303 = vsel %vm370, %v1280, 0
      %v1306 = vsel %vm395, %v1270, 0
      %v1309 = vsel %vm395, %v1271, 0
      %1311 = vmatprep.subr.mxu0 0.0
      %1312 = vmatpush1.msra.mxu0 0.0
      %1313 = vmatprep.subr.mxu0 0.0
      %1314 = vmatpush1.msra.mxu0 0.0
      %1315 = vmatprep.subr.mxu0 0.0
      %1316 = vmatpush1.msra.mxu0 0.0
      %1317 = vmatprep.subr.mxu0 0.0
      %1318 = vmatpush1.msra.mxu0 0.0
      %1319 = vmatprep.subr.mxu0 0.0
      %1320 = vmatpush1.msra.mxu0 0.0
      %1321 = vmatprep.subr.mxu0 0.0
      %1322 = vmatpush1.msra.mxu0 0.0
      %1323 = vmatprep.subr.mxu0 0.0
      %1324 = vmatpush1.msra.mxu0 0.0
      %1325 = vmatprep.subr.mxu0 0.0
      %1326 = vmatpush1.msra.mxu0 0.0
      %1327 = vmatprep.subr.mxu0 0.0
      %1328 = vmatpush1.msra.mxu0 0.0
      %1329 = vmatprep.subr.mxu0 0.0
      %1330 = vmatpush1.msra.mxu0 0.0
      %1331 = vmatprep.subr.mxu0 0.0
      %1332 = vmatpush1.msra.mxu0 0.0
      %1333 = vmatprep.subr.mxu0 0.0
      %1334 = vmatpush1.msra.mxu0 0.0
      %1335 = vmatprep.subr.mxu0 0.0
      %1336 = vmatpush1.msra.mxu0 0.0
      %1337 = vmatprep.subr.mxu0 0.0
      %1338 = vmatpush1.msra.mxu0 0.0
      %1339 = vmatprep.subr.mxu0 0.0
      %1340 = vmatpush1.msra.mxu0 0.0
      %1341 = vmatprep.subr.mxu0 %v1309
      %1342 = vmatpush1.msra.mxu0 %v1306
      %1343 = vmatprep.subr.mxu0 0.0
      %1344 = vmatpush2.msra.mxu0 0.0
      %1345 = vmatprep.subr.mxu0 0.0
      %1346 = vmatpush2.msra.mxu0 0.0
      %1347 = vmatprep.subr.mxu0 0.0
      %1348 = vmatpush2.msra.mxu0 0.0
      %1349 = vmatprep.subr.mxu0 0.0
      %1350 = vmatpush2.msra.mxu0 0.0
      %1351 = vmatprep.subr.mxu0 0.0
      %1352 = vmatpush2.msra.mxu0 0.0
      %1353 = vmatprep.subr.mxu0 0.0
      %1354 = vmatpush2.msra.mxu0 0.0
      %1355 = vmatprep.subr.mxu0 0.0
      %1356 = vmatpush2.msra.mxu0 0.0
      %1357 = vmatprep.subr.mxu0 0.0
      %1358 = vmatpush2.msra.mxu0 0.0
      %1359 = vmatprep.subr.mxu0 0.0
      %1360 = vmatpush2.msra.mxu0 0.0
      %1361 = vmatprep.subr.mxu0 0.0
      %1362 = vmatpush2.msra.mxu0 0.0
      %1363 = vmatprep.subr.mxu0 0.0
      %1364 = vmatpush2.msra.mxu0 0.0
      %1365 = vmatprep.subr.mxu0 0.0
      %1366 = vmatpush2.msra.mxu0 0.0
      %1367 = vmatprep.subr.mxu0 0.0
      %1368 = vmatpush2.msra.mxu0 0.0
      %1369 = vmatprep.subr.mxu0 0.0
      %1370 = vmatpush2.msra.mxu0 0.0
      %1371 = vmatprep.subr.mxu0 0.0
      %1372 = vmatpush2.msra.mxu0 0.0
      %1373 = vmatprep.subr.mxu0 0.0
      %1374 = vmatpush2.msra.mxu0 0.0
      %1375 = vmatprep.mubr.f32.mxu0 0.0
      %1376 = vmatmul.mubr.f32.gmra.mxu0 %v1282
      %v1377 = vpop.f32.mrf.mxu0
      %v1378 = vadd.f32 0.0, %v1377
      %v1379 = vpop.f32.mrf.mxu0
      %v1380 = vadd.f32 0.0, %v1379
      %1381 = vmatprep.mubr.f32.mxu0 0.0
      %1382 = vmatmul.mubr.f32.gmra.mxu0 %v1285
      %v1383 = vpop.f32.mrf.mxu0
      %v1384 = vadd.f32 0.0, %v1383
      %v1385 = vpop.f32.mrf.mxu0
      %v1386 = vadd.f32 0.0, %v1385
      %1387 = vmatprep.mubr.f32.mxu0 0.0
      %1388 = vmatmul.mubr.f32.gmra.mxu0 %v1288
      %v1389 = vpop.f32.mrf.mxu0
      %v1390 = vadd.f32 0.0, %v1389
      %v1391 = vpop.f32.mrf.mxu0
      %v1392 = vadd.f32 0.0, %v1391
      %1393 = vmatprep.mubr.f32.mxu0 0.0
      %1394 = vmatmul.mubr.f32.gmra.mxu0 %v1291
      %v1395 = vpop.f32.mrf.mxu0
      %v1396 = vadd.f32 0.0, %v1395
      %v1397 = vpop.f32.mrf.mxu0
      %v1398 = vadd.f32 0.0, %v1397
      %1399 = vmatprep.mubr.f32.mxu0 0.0
      %1400 = vmatmul.mubr.f32.gmra.mxu0 %v1294
      %v1401 = vpop.f32.mrf.mxu0
      %v1402 = vadd.f32 0.0, %v1401
      %v1403 = vpop.f32.mrf.mxu0
      %v1404 = vadd.f32 0.0, %v1403
      %1405 = vmatprep.mubr.f32.mxu0 0.0
      %1406 = vmatmul.mubr.f32.gmra.mxu0 %v1297
      %v1407 = vpop.f32.mrf.mxu0
      %v1408 = vadd.f32 0.0, %v1407
      %v1409 = vpop.f32.mrf.mxu0
      %v1410 = vadd.f32 0.0, %v1409
      %1411 = vmatprep.mubr.f32.mxu0 0.0
      %1412 = vmatmul.mubr.f32.gmra.mxu0 %v1300
      %v1413 = vpop.f32.mrf.mxu0
      %v1414 = vadd.f32 0.0, %v1413
      %v1415 = vpop.f32.mrf.mxu0
      %v1416 = vadd.f32 0.0, %v1415
      %1417 = vmatprep.mubr.f32.mxu0 0.0
      %1418 = vmatmul.mubr.f32.gmra.mxu0 %v1303
      %v1419 = vpop.f32.mrf.mxu0
      %v1420 = vadd.f32 0.0, %v1419
      %v1421 = vpop.f32.mrf.mxu0
      %v1422 = vadd.f32 0.0, %v1421
      %1423 = vdwg.mxu0
      %v1424 = vadd.f32 %v1239, %v1378
      %v1425 = vadd.f32 %v1240, %v1380
      %v1426 = vadd.f32 %v1241, %v1384
      %v1427 = vadd.f32 %v1242, %v1386
      %v1428 = vadd.f32 %v1243, %v1390
      %v1429 = vadd.f32 %v1244, %v1392
      %v1430 = vadd.f32 %v1245, %v1396
      %v1431 = vadd.f32 %v1246, %v1398
      %v1432 = vadd.f32 %v1247, %v1402
      %v1433 = vadd.f32 %v1248, %v1404
      %v1434 = vadd.f32 %v1249, %v1408
      %v1435 = vadd.f32 %v1250, %v1410
      %v1436 = vadd.f32 %v1251, %v1414
      %v1437 = vadd.f32 %v1252, %v1416
      %v1438 = vadd.f32 %v1253, %v1420
      %v1439 = vadd.f32 %v1254, %v1422
      %1440 = vrot.lane.b32.xlu0 %v310, 113
      %v1441 = vpop.permute.xlu0 %1440
      %1442 = vrot.lane.b32.xlu0 %v369, 113
      %v1443 = vpop.permute.xlu0 %1442
      %vm1444 = vcmp.lt.s32.totalorder %v519, 113
      %v1445 = vsel %vm1444, %v1441, %v1443
      %v1446 = vsel %vm1444, %v1443, %v1441
      %v1447 = vlaneseq
      %v1448 = vshrl.u32 %v1447, 7
      %v1449 = vsub.s32 6, %v1448
      %v1450 = vrot.slane %v306, %v1449
      %v1451 = vlaneseq
      %v1452 = vshrl.u32 %v1451, 7
      %v1453 = vsub.s32 6, %v1452
      %v1454 = vrot.slane %v307, %v1453
      %v1455 = vmul.f32 %v1445, %v1450
      %v1456 = vmul.f32 %v1446, %v1454
      %s1457 = scalar_lea.vmem %s2, 384
      %v1458 = vld [vmem:[%s1457] sm:$0xff]
      %v1459 = vld [vmem:[%s1457 + $0x8] sm:$0xff]
      %v1460 = vld [vmem:[%s1457 + $0x10] sm:$0xff]
      %v1461 = vld [vmem:[%s1457 + $0x18] sm:$0xff]
      %v1462 = vld [vmem:[%s1457 + $0x20] sm:$0xff]
      %v1463 = vld [vmem:[%s1457 + $0x28] sm:$0xff]
      %v1464 = vld [vmem:[%s1457 + $0x30] sm:$0xff]
      %v1465 = vld [vmem:[%s1457 + $0x38] sm:$0xff]
      %v1467 = vsel %vm370, %v1458, 0
      %v1470 = vsel %vm370, %v1459, 0
      %v1473 = vsel %vm370, %v1460, 0
      %v1476 = vsel %vm370, %v1461, 0
      %v1479 = vsel %vm370, %v1462, 0
      %v1482 = vsel %vm370, %v1463, 0
      %v1485 = vsel %vm370, %v1464, 0
      %v1488 = vsel %vm370, %v1465, 0
      %v1491 = vsel %vm395, %v1455, 0
      %v1494 = vsel %vm395, %v1456, 0
      %1496 = vmatprep.subr.mxu0 0.0
      %1497 = vmatpush1.msra.mxu0 0.0
      %1498 = vmatprep.subr.mxu0 0.0
      %1499 = vmatpush1.msra.mxu0 0.0
      %1500 = vmatprep.subr.mxu0 0.0
      %1501 = vmatpush1.msra.mxu0 0.0
      %1502 = vmatprep.subr.mxu0 0.0
      %1503 = vmatpush1.msra.mxu0 0.0
      %1504 = vmatprep.subr.mxu0 0.0
      %1505 = vmatpush1.msra.mxu0 0.0
      %1506 = vmatprep.subr.mxu0 0.0
      %1507 = vmatpush1.msra.mxu0 0.0
      %1508 = vmatprep.subr.mxu0 0.0
      %1509 = vmatpush1.msra.mxu0 0.0
      %1510 = vmatprep.subr.mxu0 0.0
      %1511 = vmatpush1.msra.mxu0 0.0
      %1512 = vmatprep.subr.mxu0 0.0
      %1513 = vmatpush1.msra.mxu0 0.0
      %1514 = vmatprep.subr.mxu0 0.0
      %1515 = vmatpush1.msra.mxu0 0.0
      %1516 = vmatprep.subr.mxu0 0.0
      %1517 = vmatpush1.msra.mxu0 0.0
      %1518 = vmatprep.subr.mxu0 0.0
      %1519 = vmatpush1.msra.mxu0 0.0
      %1520 = vmatprep.subr.mxu0 0.0
      %1521 = vmatpush1.msra.mxu0 0.0
      %1522 = vmatprep.subr.mxu0 0.0
      %1523 = vmatpush1.msra.mxu0 0.0
      %1524 = vmatprep.subr.mxu0 0.0
      %1525 = vmatpush1.msra.mxu0 0.0
      %1526 = vmatprep.subr.mxu0 %v1494
      %1527 = vmatpush1.msra.mxu0 %v1491
      %1528 = vmatprep.subr.mxu0 0.0
      %1529 = vmatpush2.msra.mxu0 0.0
      %1530 = vmatprep.subr.mxu0 0.0
      %1531 = vmatpush2.msra.mxu0 0.0
      %1532 = vmatprep.subr.mxu0 0.0
      %1533 = vmatpush2.msra.mxu0 0.0
      %1534 = vmatprep.subr.mxu0 0.0
      %1535 = vmatpush2.msra.mxu0 0.0
      %1536 = vmatprep.subr.mxu0 0.0
      %1537 = vmatpush2.msra.mxu0 0.0
      %1538 = vmatprep.subr.mxu0 0.0
      %1539 = vmatpush2.msra.mxu0 0.0
      %1540 = vmatprep.subr.mxu0 0.0
      %1541 = vmatpush2.msra.mxu0 0.0
      %1542 = vmatprep.subr.mxu0 0.0
      %1543 = vmatpush2.msra.mxu0 0.0
      %1544 = vmatprep.subr.mxu0 0.0
      %1545 = vmatpush2.msra.mxu0 0.0
      %1546 = vmatprep.subr.mxu0 0.0
      %1547 = vmatpush2.msra.mxu0 0.0
      %1548 = vmatprep.subr.mxu0 0.0
      %1549 = vmatpush2.msra.mxu0 0.0
      %1550 = vmatprep.subr.mxu0 0.0
      %1551 = vmatpush2.msra.mxu0 0.0
      %1552 = vmatprep.subr.mxu0 0.0
      %1553 = vmatpush2.msra.mxu0 0.0
      %1554 = vmatprep.subr.mxu0 0.0
      %1555 = vmatpush2.msra.mxu0 0.0
      %1556 = vmatprep.subr.mxu0 0.0
      %1557 = vmatpush2.msra.mxu0 0.0
      %1558 = vmatprep.subr.mxu0 0.0
      %1559 = vmatpush2.msra.mxu0 0.0
      %1560 = vmatprep.mubr.f32.mxu0 0.0
      %1561 = vmatmul.mubr.f32.gmra.mxu0 %v1467
      %v1562 = vpop.f32.mrf.mxu0
      %v1563 = vadd.f32 0.0, %v1562
      %v1564 = vpop.f32.mrf.mxu0
      %v1565 = vadd.f32 0.0, %v1564
      %1566 = vmatprep.mubr.f32.mxu0 0.0
      %1567 = vmatmul.mubr.f32.gmra.mxu0 %v1470
      %v1568 = vpop.f32.mrf.mxu0
      %v1569 = vadd.f32 0.0, %v1568
      %v1570 = vpop.f32.mrf.mxu0
      %v1571 = vadd.f32 0.0, %v1570
      %1572 = vmatprep.mubr.f32.mxu0 0.0
      %1573 = vmatmul.mubr.f32.gmra.mxu0 %v1473
      %v1574 = vpop.f32.mrf.mxu0
      %v1575 = vadd.f32 0.0, %v1574
      %v1576 = vpop.f32.mrf.mxu0
      %v1577 = vadd.f32 0.0, %v1576
      %1578 = vmatprep.mubr.f32.mxu0 0.0
      %1579 = vmatmul.mubr.f32.gmra.mxu0 %v1476
      %v1580 = vpop.f32.mrf.mxu0
      %v1581 = vadd.f32 0.0, %v1580
      %v1582 = vpop.f32.mrf.mxu0
      %v1583 = vadd.f32 0.0, %v1582
      %1584 = vmatprep.mubr.f32.mxu0 0.0
      %1585 = vmatmul.mubr.f32.gmra.mxu0 %v1479
      %v1586 = vpop.f32.mrf.mxu0
      %v1587 = vadd.f32 0.0, %v1586
      %v1588 = vpop.f32.mrf.mxu0
      %v1589 = vadd.f32 0.0, %v1588
      %1590 = vmatprep.mubr.f32.mxu0 0.0
      %1591 = vmatmul.mubr.f32.gmra.mxu0 %v1482
      %v1592 = vpop.f32.mrf.mxu0
      %v1593 = vadd.f32 0.0, %v1592
      %v1594 = vpop.f32.mrf.mxu0
      %v1595 = vadd.f32 0.0, %v1594
      %1596 = vmatprep.mubr.f32.mxu0 0.0
      %1597 = vmatmul.mubr.f32.gmra.mxu0 %v1485
      %v1598 = vpop.f32.mrf.mxu0
      %v1599 = vadd.f32 0.0, %v1598
      %v1600 = vpop.f32.mrf.mxu0
      %v1601 = vadd.f32 0.0, %v1600
      %1602 = vmatprep.mubr.f32.mxu0 0.0
      %1603 = vmatmul.mubr.f32.gmra.mxu0 %v1488
      %v1604 = vpop.f32.mrf.mxu0
      %v1605 = vadd.f32 0.0, %v1604
      %v1606 = vpop.f32.mrf.mxu0
      %v1607 = vadd.f32 0.0, %v1606
      %1608 = vdwg.mxu0
      %v1609 = vadd.f32 %v1424, %v1563
      %v1610 = vadd.f32 %v1425, %v1565
      %v1611 = vadd.f32 %v1426, %v1569
      %v1612 = vadd.f32 %v1427, %v1571
      %v1613 = vadd.f32 %v1428, %v1575
      %v1614 = vadd.f32 %v1429, %v1577
      %v1615 = vadd.f32 %v1430, %v1581
      %v1616 = vadd.f32 %v1431, %v1583
      %v1617 = vadd.f32 %v1432, %v1587
      %v1618 = vadd.f32 %v1433, %v1589
      %v1619 = vadd.f32 %v1434, %v1593
      %v1620 = vadd.f32 %v1435, %v1595
      %v1621 = vadd.f32 %v1436, %v1599
      %v1622 = vadd.f32 %v1437, %v1601
      %v1623 = vadd.f32 %v1438, %v1605
      %v1624 = vadd.f32 %v1439, %v1607
      %1625 = vrot.lane.b32.xlu0 %v310, 112
      %v1626 = vpop.permute.xlu0 %1625
      %1627 = vrot.lane.b32.xlu0 %v369, 112
      %v1628 = vpop.permute.xlu0 %1627
      %vm1629 = vcmp.lt.s32.totalorder %v519, 112
      %v1630 = vsel %vm1629, %v1626, %v1628
      %v1631 = vsel %vm1629, %v1628, %v1626
      %v1632 = vlaneseq
      %v1633 = vshrl.u32 %v1632, 7
      %v1634 = vsub.s32 7, %v1633
      %v1635 = vrot.slane %v306, %v1634
      %v1636 = vlaneseq
      %v1637 = vshrl.u32 %v1636, 7
      %v1638 = vsub.s32 7, %v1637
      %v1639 = vrot.slane %v307, %v1638
      %v1640 = vmul.f32 %v1630, %v1635
      %v1641 = vmul.f32 %v1631, %v1639
      %s1642 = scalar_lea.vmem %s2, 448
      %v1643 = vld [vmem:[%s1642] sm:$0xff]
      %v1644 = vld [vmem:[%s1642 + $0x8] sm:$0xff]
      %v1645 = vld [vmem:[%s1642 + $0x10] sm:$0xff]
      %v1646 = vld [vmem:[%s1642 + $0x18] sm:$0xff]
      %v1647 = vld [vmem:[%s1642 + $0x20] sm:$0xff]
      %v1648 = vld [vmem:[%s1642 + $0x28] sm:$0xff]
      %v1649 = vld [vmem:[%s1642 + $0x30] sm:$0xff]
      %v1650 = vld [vmem:[%s1642 + $0x38] sm:$0xff]
      %v1652 = vsel %vm370, %v1643, 0
      %v1655 = vsel %vm370, %v1644, 0
      %v1658 = vsel %vm370, %v1645, 0
      %v1661 = vsel %vm370, %v1646, 0
      %v1664 = vsel %vm370, %v1647, 0
      %v1667 = vsel %vm370, %v1648, 0
      %v1670 = vsel %vm370, %v1649, 0
      %v1673 = vsel %vm370, %v1650, 0
      %v1676 = vsel %vm395, %v1640, 0
      %v1679 = vsel %vm395, %v1641, 0
      %1681 = vmatprep.subr.mxu0 0.0
      %1682 = vmatpush1.msra.mxu0 0.0
      %1683 = vmatprep.subr.mxu0 0.0
      %1684 = vmatpush1.msra.mxu0 0.0
      %1685 = vmatprep.subr.mxu0 0.0
      %1686 = vmatpush1.msra.mxu0 0.0
      %1687 = vmatprep.subr.mxu0 0.0
      %1688 = vmatpush1.msra.mxu0 0.0
      %1689 = vmatprep.subr.mxu0 0.0
      %1690 = vmatpush1.msra.mxu0 0.0
      %1691 = vmatprep.subr.mxu0 0.0
      %1692 = vmatpush1.msra.mxu0 0.0
      %1693 = vmatprep.subr.mxu0 0.0
      %1694 = vmatpush1.msra.mxu0 0.0
      %1695 = vmatprep.subr.mxu0 0.0
      %1696 = vmatpush1.msra.mxu0 0.0
      %1697 = vmatprep.subr.mxu0 0.0
      %1698 = vmatpush1.msra.mxu0 0.0
      %1699 = vmatprep.subr.mxu0 0.0
      %1700 = vmatpush1.msra.mxu0 0.0
      %1701 = vmatprep.subr.mxu0 0.0
      %1702 = vmatpush1.msra.mxu0 0.0
      %1703 = vmatprep.subr.mxu0 0.0
      %1704 = vmatpush1.msra.mxu0 0.0
      %1705 = vmatprep.subr.mxu0 0.0
      %1706 = vmatpush1.msra.mxu0 0.0
      %1707 = vmatprep.subr.mxu0 0.0
      %1708 = vmatpush1.msra.mxu0 0.0
      %1709 = vmatprep.subr.mxu0 0.0
      %1710 = vmatpush1.msra.mxu0 0.0
      %1711 = vmatprep.subr.mxu0 %v1679
      %1712 = vmatpush1.msra.mxu0 %v1676
      %1713 = vmatprep.subr.mxu0 0.0
      %1714 = vmatpush2.msra.mxu0 0.0
      %1715 = vmatprep.subr.mxu0 0.0
      %1716 = vmatpush2.msra.mxu0 0.0
      %1717 = vmatprep.subr.mxu0 0.0
      %1718 = vmatpush2.msra.mxu0 0.0
      %1719 = vmatprep.subr.mxu0 0.0
      %1720 = vmatpush2.msra.mxu0 0.0
      %1721 = vmatprep.subr.mxu0 0.0
      %1722 = vmatpush2.msra.mxu0 0.0
      %1723 = vmatprep.subr.mxu0 0.0
      %1724 = vmatpush2.msra.mxu0 0.0
      %1725 = vmatprep.subr.mxu0 0.0
      %1726 = vmatpush2.msra.mxu0 0.0
      %1727 = vmatprep.subr.mxu0 0.0
      %1728 = vmatpush2.msra.mxu0 0.0
      %1729 = vmatprep.subr.mxu0 0.0
      %1730 = vmatpush2.msra.mxu0 0.0
      %1731 = vmatprep.subr.mxu0 0.0
      %1732 = vmatpush2.msra.mxu0 0.0
      %1733 = vmatprep.subr.mxu0 0.0
      %1734 = vmatpush2.msra.mxu0 0.0
      %1735 = vmatprep.subr.mxu0 0.0
      %1736 = vmatpush2.msra.mxu0 0.0
      %1737 = vmatprep.subr.mxu0 0.0
      %1738 = vmatpush2.msra.mxu0 0.0
      %1739 = vmatprep.subr.mxu0 0.0
      %1740 = vmatpush2.msra.mxu0 0.0
      %1741 = vmatprep.subr.mxu0 0.0
      %1742 = vmatpush2.msra.mxu0 0.0
      %1743 = vmatprep.subr.mxu0 0.0
      %1744 = vmatpush2.msra.mxu0 0.0
      %1745 = vmatprep.mubr.f32.mxu0 0.0
      %1746 = vmatmul.mubr.f32.gmra.mxu0 %v1652
      %v1747 = vpop.f32.mrf.mxu0
      %v1748 = vadd.f32 0.0, %v1747
      %v1749 = vpop.f32.mrf.mxu0
      %v1750 = vadd.f32 0.0, %v1749
      %1751 = vmatprep.mubr.f32.mxu0 0.0
      %1752 = vmatmul.mubr.f32.gmra.mxu0 %v1655
      %v1753 = vpop.f32.mrf.mxu0
      %v1754 = vadd.f32 0.0, %v1753
      %v1755 = vpop.f32.mrf.mxu0
      %v1756 = vadd.f32 0.0, %v1755
      %1757 = vmatprep.mubr.f32.mxu0 0.0
      %1758 = vmatmul.mubr.f32.gmra.mxu0 %v1658
      %v1759 = vpop.f32.mrf.mxu0
      %v1760 = vadd.f32 0.0, %v1759
      %v1761 = vpop.f32.mrf.mxu0
      %v1762 = vadd.f32 0.0, %v1761
      %1763 = vmatprep.mubr.f32.mxu0 0.0
      %1764 = vmatmul.mubr.f32.gmra.mxu0 %v1661
      %v1765 = vpop.f32.mrf.mxu0
      %v1766 = vadd.f32 0.0, %v1765
      %v1767 = vpop.f32.mrf.mxu0
      %v1768 = vadd.f32 0.0, %v1767
      %1769 = vmatprep.mubr.f32.mxu0 0.0
      %1770 = vmatmul.mubr.f32.gmra.mxu0 %v1664
      %v1771 = vpop.f32.mrf.mxu0
      %v1772 = vadd.f32 0.0, %v1771
      %v1773 = vpop.f32.mrf.mxu0
      %v1774 = vadd.f32 0.0, %v1773
      %1775 = vmatprep.mubr.f32.mxu0 0.0
      %1776 = vmatmul.mubr.f32.gmra.mxu0 %v1667
      %v1777 = vpop.f32.mrf.mxu0
      %v1778 = vadd.f32 0.0, %v1777
      %v1779 = vpop.f32.mrf.mxu0
      %v1780 = vadd.f32 0.0, %v1779
      %1781 = vmatprep.mubr.f32.mxu0 0.0
      %1782 = vmatmul.mubr.f32.gmra.mxu0 %v1670
      %v1783 = vpop.f32.mrf.mxu0
      %v1784 = vadd.f32 0.0, %v1783
      %v1785 = vpop.f32.mrf.mxu0
      %v1786 = vadd.f32 0.0, %v1785
      %1787 = vmatprep.mubr.f32.mxu0 0.0
      %1788 = vmatmul.mubr.f32.gmra.mxu0 %v1673
      %v1789 = vpop.f32.mrf.mxu0
      %v1790 = vadd.f32 0.0, %v1789
      %v1791 = vpop.f32.mrf.mxu0
      %v1792 = vadd.f32 0.0, %v1791
      %1793 = vdwg.mxu0
      %v1794 = vadd.f32 %v1609, %v1748
      %v1795 = vadd.f32 %v1610, %v1750
      %v1796 = vadd.f32 %v1611, %v1754
      %v1797 = vadd.f32 %v1612, %v1756
      %v1798 = vadd.f32 %v1613, %v1760
      %v1799 = vadd.f32 %v1614, %v1762
      %v1800 = vadd.f32 %v1615, %v1766
      %v1801 = vadd.f32 %v1616, %v1768
      %v1802 = vadd.f32 %v1617, %v1772
      %v1803 = vadd.f32 %v1618, %v1774
      %v1804 = vadd.f32 %v1619, %v1778
      %v1805 = vadd.f32 %v1620, %v1780
      %v1806 = vadd.f32 %v1621, %v1784
      %v1807 = vadd.f32 %v1622, %v1786
      %v1808 = vadd.f32 %v1623, %v1790
      %v1809 = vadd.f32 %v1624, %v1792
      %1810 = vrot.lane.b32.xlu0 %v310, 111
      %v1811 = vpop.permute.xlu0 %1810
      %1812 = vrot.lane.b32.xlu0 %v369, 111
      %v1813 = vpop.permute.xlu0 %1812
      %vm1814 = vcmp.lt.s32.totalorder %v519, 111
      %v1815 = vsel %vm1814, %v1811, %v1813
      %v1816 = vsel %vm1814, %v1813, %v1811
      %v1817 = vlaneseq
      %v1818 = vshrl.u32 %v1817, 7
      %v1819 = vsub.s32 0, %v1818
      %v1820 = vrot.slane %v308, %v1819
      %v1821 = vlaneseq
      %v1822 = vshrl.u32 %v1821, 7
      %v1823 = vsub.s32 0, %v1822
      %v1824 = vrot.slane %v309, %v1823
      %v1825 = vmul.f32 %v1815, %v1820
      %v1826 = vmul.f32 %v1816, %v1824
      %s1827 = scalar_lea.vmem %s2, 512
      %v1828 = vld [vmem:[%s1827] sm:$0xff]
      %v1829 = vld [vmem:[%s1827 + $0x8] sm:$0xff]
      %v1830 = vld [vmem:[%s1827 + $0x10] sm:$0xff]
      %v1831 = vld [vmem:[%s1827 + $0x18] sm:$0xff]
      %v1832 = vld [vmem:[%s1827 + $0x20] sm:$0xff]
      %v1833 = vld [vmem:[%s1827 + $0x28] sm:$0xff]
      %v1834 = vld [vmem:[%s1827 + $0x30] sm:$0xff]
      %v1835 = vld [vmem:[%s1827 + $0x38] sm:$0xff]
      %v1837 = vsel %vm370, %v1828, 0
      %v1840 = vsel %vm370, %v1829, 0
      %v1843 = vsel %vm370, %v1830, 0
      %v1846 = vsel %vm370, %v1831, 0
      %v1849 = vsel %vm370, %v1832, 0
      %v1852 = vsel %vm370, %v1833, 0
      %v1855 = vsel %vm370, %v1834, 0
      %v1858 = vsel %vm370, %v1835, 0
      %v1861 = vsel %vm395, %v1825, 0
      %v1864 = vsel %vm395, %v1826, 0
      %1866 = vmatprep.subr.mxu0 0.0
      %1867 = vmatpush1.msra.mxu0 0.0
      %1868 = vmatprep.subr.mxu0 0.0
      %1869 = vmatpush1.msra.mxu0 0.0
      %1870 = vmatprep.subr.mxu0 0.0
      %1871 = vmatpush1.msra.mxu0 0.0
      %1872 = vmatprep.subr.mxu0 0.0
      %1873 = vmatpush1.msra.mxu0 0.0
      %1874 = vmatprep.subr.mxu0 0.0
      %1875 = vmatpush1.msra.mxu0 0.0
      %1876 = vmatprep.subr.mxu0 0.0
      %1877 = vmatpush1.msra.mxu0 0.0
      %1878 = vmatprep.subr.mxu0 0.0
      %1879 = vmatpush1.msra.mxu0 0.0
      %1880 = vmatprep.subr.mxu0 0.0
      %1881 = vmatpush1.msra.mxu0 0.0
      %1882 = vmatprep.subr.mxu0 0.0
      %1883 = vmatpush1.msra.mxu0 0.0
      %1884 = vmatprep.subr.mxu0 0.0
      %1885 = vmatpush1.msra.mxu0 0.0
      %1886 = vmatprep.subr.mxu0 0.0
      %1887 = vmatpush1.msra.mxu0 0.0
      %1888 = vmatprep.subr.mxu0 0.0
      %1889 = vmatpush1.msra.mxu0 0.0
      %1890 = vmatprep.subr.mxu0 0.0
      %1891 = vmatpush1.msra.mxu0 0.0
      %1892 = vmatprep.subr.mxu0 0.0
      %1893 = vmatpush1.msra.mxu0 0.0
      %1894 = vmatprep.subr.mxu0 0.0
      %1895 = vmatpush1.msra.mxu0 0.0
      %1896 = vmatprep.subr.mxu0 %v1864
      %1897 = vmatpush1.msra.mxu0 %v1861
      %1898 = vmatprep.subr.mxu0 0.0
      %1899 = vmatpush2.msra.mxu0 0.0
      %1900 = vmatprep.subr.mxu0 0.0
      %1901 = vmatpush2.msra.mxu0 0.0
      %1902 = vmatprep.subr.mxu0 0.0
      %1903 = vmatpush2.msra.mxu0 0.0
      %1904 = vmatprep.subr.mxu0 0.0
      %1905 = vmatpush2.msra.mxu0 0.0
      %1906 = vmatprep.subr.mxu0 0.0
      %1907 = vmatpush2.msra.mxu0 0.0
      %1908 = vmatprep.subr.mxu0 0.0
      %1909 = vmatpush2.msra.mxu0 0.0
      %1910 = vmatprep.subr.mxu0 0.0
      %1911 = vmatpush2.msra.mxu0 0.0
      %1912 = vmatprep.subr.mxu0 0.0
      %1913 = vmatpush2.msra.mxu0 0.0
      %1914 = vmatprep.subr.mxu0 0.0
      %1915 = vmatpush2.msra.mxu0 0.0
      %1916 = vmatprep.subr.mxu0 0.0
      %1917 = vmatpush2.msra.mxu0 0.0
      %1918 = vmatprep.subr.mxu0 0.0
      %1919 = vmatpush2.msra.mxu0 0.0
      %1920 = vmatprep.subr.mxu0 0.0
      %1921 = vmatpush2.msra.mxu0 0.0
      %1922 = vmatprep.subr.mxu0 0.0
      %1923 = vmatpush2.msra.mxu0 0.0
      %1924 = vmatprep.subr.mxu0 0.0
      %1925 = vmatpush2.msra.mxu0 0.0
      %1926 = vmatprep.subr.mxu0 0.0
      %1927 = vmatpush2.msra.mxu0 0.0
      %1928 = vmatprep.subr.mxu0 0.0
      %1929 = vmatpush2.msra.mxu0 0.0
      %1930 = vmatprep.mubr.f32.mxu0 0.0
      %1931 = vmatmul.mubr.f32.gmra.mxu0 %v1837
      %v1932 = vpop.f32.mrf.mxu0
      %v1933 = vadd.f32 0.0, %v1932
      %v1934 = vpop.f32.mrf.mxu0
      %v1935 = vadd.f32 0.0, %v1934
      %1936 = vmatprep.mubr.f32.mxu0 0.0
      %1937 = vmatmul.mubr.f32.gmra.mxu0 %v1840
      %v1938 = vpop.f32.mrf.mxu0
      %v1939 = vadd.f32 0.0, %v1938
      %v1940 = vpop.f32.mrf.mxu0
      %v1941 = vadd.f32 0.0, %v1940
      %1942 = vmatprep.mubr.f32.mxu0 0.0
      %1943 = vmatmul.mubr.f32.gmra.mxu0 %v1843
      %v1944 = vpop.f32.mrf.mxu0
      %v1945 = vadd.f32 0.0, %v1944
      %v1946 = vpop.f32.mrf.mxu0
      %v1947 = vadd.f32 0.0, %v1946
      %1948 = vmatprep.mubr.f32.mxu0 0.0
      %1949 = vmatmul.mubr.f32.gmra.mxu0 %v1846
      %v1950 = vpop.f32.mrf.mxu0
      %v1951 = vadd.f32 0.0, %v1950
      %v1952 = vpop.f32.mrf.mxu0
      %v1953 = vadd.f32 0.0, %v1952
      %1954 = vmatprep.mubr.f32.mxu0 0.0
      %1955 = vmatmul.mubr.f32.gmra.mxu0 %v1849
      %v1956 = vpop.f32.mrf.mxu0
      %v1957 = vadd.f32 0.0, %v1956
      %v1958 = vpop.f32.mrf.mxu0
      %v1959 = vadd.f32 0.0, %v1958
      %1960 = vmatprep.mubr.f32.mxu0 0.0
      %1961 = vmatmul.mubr.f32.gmra.mxu0 %v1852
      %v1962 = vpop.f32.mrf.mxu0
      %v1963 = vadd.f32 0.0, %v1962
      %v1964 = vpop.f32.mrf.mxu0
      %v1965 = vadd.f32 0.0, %v1964
      %1966 = vmatprep.mubr.f32.mxu0 0.0
      %1967 = vmatmul.mubr.f32.gmra.mxu0 %v1855
      %v1968 = vpop.f32.mrf.mxu0
      %v1969 = vadd.f32 0.0, %v1968
      %v1970 = vpop.f32.mrf.mxu0
      %v1971 = vadd.f32 0.0, %v1970
      %1972 = vmatprep.mubr.f32.mxu0 0.0
      %1973 = vmatmul.mubr.f32.gmra.mxu0 %v1858
      %v1974 = vpop.f32.mrf.mxu0
      %v1975 = vadd.f32 0.0, %v1974
      %v1976 = vpop.f32.mrf.mxu0
      %v1977 = vadd.f32 0.0, %v1976
      %1978 = vdwg.mxu0
      %v1979 = vadd.f32 %v1794, %v1933
      %v1980 = vadd.f32 %v1795, %v1935
      %v1981 = vadd.f32 %v1796, %v1939
      %v1982 = vadd.f32 %v1797, %v1941
      %v1983 = vadd.f32 %v1798, %v1945
      %v1984 = vadd.f32 %v1799, %v1947
      %v1985 = vadd.f32 %v1800, %v1951
      %v1986 = vadd.f32 %v1801, %v1953
      %v1987 = vadd.f32 %v1802, %v1957
      %v1988 = vadd.f32 %v1803, %v1959
      %v1989 = vadd.f32 %v1804, %v1963
      %v1990 = vadd.f32 %v1805, %v1965
      %v1991 = vadd.f32 %v1806, %v1969
      %v1992 = vadd.f32 %v1807, %v1971
      %v1993 = vadd.f32 %v1808, %v1975
      %v1994 = vadd.f32 %v1809, %v1977
      %v1995 = vmax.f32 %v1979, 0.0
      %v1996 = vmax.f32 %v1980, 0.0
      %v1997 = vmax.f32 %v1981, 0.0
      %v1998 = vmax.f32 %v1982, 0.0
      %v1999 = vmax.f32 %v1983, 0.0
      %v2000 = vmax.f32 %v1984, 0.0
      %v2001 = vmax.f32 %v1985, 0.0
      %v2002 = vmax.f32 %v1986, 0.0
      %v2003 = vmax.f32 %v1987, 0.0
      %v2004 = vmax.f32 %v1988, 0.0
      %v2005 = vmax.f32 %v1989, 0.0
      %v2006 = vmax.f32 %v1990, 0.0
      %v2007 = vmax.f32 %v1991, 0.0
      %v2008 = vmax.f32 %v1992, 0.0
      %v2009 = vmax.f32 %v1993, 0.0
      %v2010 = vmax.f32 %v1994, 0.0
      %s2011 = scalar_lea.vmem %s4, 256
      %v2012 = vld [vmem:[%s2011] sm:$0xff]
      %v2013 = vld [vmem:[%s2011 + $0x8] sm:$0xff]
      %v2014 = vld [vmem:[%s2011 + $0x10] sm:$0xff]
      %v2015 = vld [vmem:[%s2011 + $0x18] sm:$0xff]
      %v2016 = vld [vmem:[%s2011 + $0x20] sm:$0xff]
      %v2017 = vld [vmem:[%s2011 + $0x28] sm:$0xff]
      %v2018 = vld [vmem:[%s2011 + $0x30] sm:$0xff]
      %v2019 = vld [vmem:[%s2011 + $0x38] sm:$0xff]
      %v2020 = vld [vmem:[%s5] sm:$0xff]
      %v2021 = vld [vmem:[%s5 + $0x8] sm:$0xff]
      %v2022 = vld [vmem:[%s5 + $0x10] sm:$0xff]
      %v2023 = vld [vmem:[%s5 + $0x18] sm:$0xff]
      %v2024 = vld [vmem:[%s5 + $0x20] sm:$0xff]
      %v2025 = vld [vmem:[%s5 + $0x28] sm:$0xff]
      %v2026 = vld [vmem:[%s5 + $0x30] sm:$0xff]
      %v2027 = vld [vmem:[%s5 + $0x38] sm:$0xff]
      %2029 = vset.pattern.permute.xlu0 0
      %2030 = vperm.xlu0 %2029, %v2020
      %v2031 = vpop.permute.xlu0 %2030
      %2034 = vset.pattern.permute.xlu0 0
      %2035 = vperm.xlu0 %2034, %v2021
      %v2036 = vpop.permute.xlu0 %2035
      %2039 = vset.pattern.permute.xlu0 0
      %2040 = vperm.xlu0 %2039, %v2022
      %v2041 = vpop.permute.xlu0 %2040
      %2044 = vset.pattern.permute.xlu0 0
      %2045 = vperm.xlu0 %2044, %v2023
      %v2046 = vpop.permute.xlu0 %2045
      %2049 = vset.pattern.permute.xlu0 0
      %2050 = vperm.xlu0 %2049, %v2024
      %v2051 = vpop.permute.xlu0 %2050
      %2054 = vset.pattern.permute.xlu0 0
      %2055 = vperm.xlu0 %2054, %v2025
      %v2056 = vpop.permute.xlu0 %2055
      %2059 = vset.pattern.permute.xlu0 0
      %2060 = vperm.xlu0 %2059, %v2026
      %v2061 = vpop.permute.xlu0 %2060
      %2064 = vset.pattern.permute.xlu0 0
      %2065 = vperm.xlu0 %2064, %v2027
      %v2066 = vpop.permute.xlu0 %2065
      %vm2068 = vcmask 523264
      %v2070 = vsel %vm2068, %v2012, 0
      %v2073 = vsel %vm2068, %v2013, 0
      %v2076 = vsel %vm2068, %v2014, 0
      %v2079 = vsel %vm2068, %v2015, 0
      %v2082 = vsel %vm2068, %v2016, 0
      %v2085 = vsel %vm2068, %v2017, 0
      %v2088 = vsel %vm2068, %v2018, 0
      %v2091 = vsel %vm2068, %v2019, 0
      %2093 = vmatprep.subr.mxu0 0.0
      %2094 = vmatpush1.msra.mxu0 0.0
      %2095 = vmatprep.subr.mxu0 0.0
      %2096 = vmatpush1.msra.mxu0 0.0
      %2097 = vmatprep.subr.mxu0 0.0
      %2098 = vmatpush1.msra.mxu0 0.0
      %2099 = vmatprep.subr.mxu0 0.0
      %2100 = vmatpush1.msra.mxu0 0.0
      %2101 = vmatprep.subr.mxu0 0.0
      %2102 = vmatpush1.msra.mxu0 0.0
      %2103 = vmatprep.subr.mxu0 0.0
      %2104 = vmatpush1.msra.mxu0 0.0
      %2105 = vmatprep.subr.mxu0 0.0
      %2106 = vmatpush1.msra.mxu0 0.0
      %2107 = vmatprep.subr.mxu0 0.0
      %2108 = vmatpush1.msra.mxu0 0.0
      %2109 = vmatprep.subr.mxu0 %v2010
      %2110 = vmatpush1.msra.mxu0 %v2009
      %2111 = vmatprep.subr.mxu0 %v2008
      %2112 = vmatpush1.msra.mxu0 %v2007
      %2113 = vmatprep.subr.mxu0 %v2006
      %2114 = vmatpush1.msra.mxu0 %v2005
      %2115 = vmatprep.subr.mxu0 %v2004
      %2116 = vmatpush1.msra.mxu0 %v2003
      %2117 = vmatprep.subr.mxu0 %v2002
      %2118 = vmatpush1.msra.mxu0 %v2001
      %2119 = vmatprep.subr.mxu0 %v2000
      %2120 = vmatpush1.msra.mxu0 %v1999
      %2121 = vmatprep.subr.mxu0 %v1998
      %2122 = vmatpush1.msra.mxu0 %v1997
      %2123 = vmatprep.subr.mxu0 %v1996
      %2124 = vmatpush1.msra.mxu0 %v1995
      %2125 = vmatprep.subr.mxu0 0.0
      %2126 = vmatpush2.msra.mxu0 0.0
      %2127 = vmatprep.subr.mxu0 0.0
      %2128 = vmatpush2.msra.mxu0 0.0
      %2129 = vmatprep.subr.mxu0 0.0
      %2130 = vmatpush2.msra.mxu0 0.0
      %2131 = vmatprep.subr.mxu0 0.0
      %2132 = vmatpush2.msra.mxu0 0.0
      %2133 = vmatprep.subr.mxu0 0.0
      %2134 = vmatpush2.msra.mxu0 0.0
      %2135 = vmatprep.subr.mxu0 0.0
      %2136 = vmatpush2.msra.mxu0 0.0
      %2137 = vmatprep.subr.mxu0 0.0
      %2138 = vmatpush2.msra.mxu0 0.0
      %2139 = vmatprep.subr.mxu0 0.0
      %2140 = vmatpush2.msra.mxu0 0.0
      %2141 = vmatprep.subr.mxu0 0.0
      %2142 = vmatpush2.msra.mxu0 0.0
      %2143 = vmatprep.subr.mxu0 0.0
      %2144 = vmatpush2.msra.mxu0 0.0
      %2145 = vmatprep.subr.mxu0 0.0
      %2146 = vmatpush2.msra.mxu0 0.0
      %2147 = vmatprep.subr.mxu0 0.0
      %2148 = vmatpush2.msra.mxu0 0.0
      %2149 = vmatprep.subr.mxu0 0.0
      %2150 = vmatpush2.msra.mxu0 0.0
      %2151 = vmatprep.subr.mxu0 0.0
      %2152 = vmatpush2.msra.mxu0 0.0
      %2153 = vmatprep.subr.mxu0 0.0
      %2154 = vmatpush2.msra.mxu0 0.0
      %2155 = vmatprep.subr.mxu0 0.0
      %2156 = vmatpush2.msra.mxu0 0.0
      %2157 = vmatprep.mubr.f32.mxu0 0.0
      %2158 = vmatmul.mubr.f32.gmra.mxu0 %v2070
      %v2159 = vpop.f32.mrf.mxu0
      %v2160 = vadd.f32 %v2031, %v2159
      %v2161 = vpop.f32.mrf.mxu0
      %v2162 = vadd.f32 %v2031, %v2161
      %2163 = vmatprep.mubr.f32.mxu0 0.0
      %2164 = vmatmul.mubr.f32.gmra.mxu0 %v2073
      %v2165 = vpop.f32.mrf.mxu0
      %v2166 = vadd.f32 %v2036, %v2165
      %v2167 = vpop.f32.mrf.mxu0
      %v2168 = vadd.f32 %v2036, %v2167
      %2169 = vmatprep.mubr.f32.mxu0 0.0
      %2170 = vmatmul.mubr.f32.gmra.mxu0 %v2076
      %v2171 = vpop.f32.mrf.mxu0
      %v2172 = vadd.f32 %v2041, %v2171
      %v2173 = vpop.f32.mrf.mxu0
      %v2174 = vadd.f32 %v2041, %v2173
      %2175 = vmatprep.mubr.f32.mxu0 0.0
      %2176 = vmatmul.mubr.f32.gmra.mxu0 %v2079
      %v2177 = vpop.f32.mrf.mxu0
      %v2178 = vadd.f32 %v2046, %v2177
      %v2179 = vpop.f32.mrf.mxu0
      %v2180 = vadd.f32 %v2046, %v2179
      %2181 = vmatprep.mubr.f32.mxu0 0.0
      %2182 = vmatmul.mubr.f32.gmra.mxu0 %v2082
      %v2183 = vpop.f32.mrf.mxu0
      %v2184 = vadd.f32 %v2051, %v2183
      %v2185 = vpop.f32.mrf.mxu0
      %v2186 = vadd.f32 %v2051, %v2185
      %2187 = vmatprep.mubr.f32.mxu0 0.0
      %2188 = vmatmul.mubr.f32.gmra.mxu0 %v2085
      %v2189 = vpop.f32.mrf.mxu0
      %v2190 = vadd.f32 %v2056, %v2189
      %v2191 = vpop.f32.mrf.mxu0
      %v2192 = vadd.f32 %v2056, %v2191
      %2193 = vmatprep.mubr.f32.mxu0 0.0
      %2194 = vmatmul.mubr.f32.gmra.mxu0 %v2088
      %v2195 = vpop.f32.mrf.mxu0
      %v2196 = vadd.f32 %v2061, %v2195
      %v2197 = vpop.f32.mrf.mxu0
      %v2198 = vadd.f32 %v2061, %v2197
      %2199 = vmatprep.mubr.f32.mxu0 0.0
      %2200 = vmatmul.mubr.f32.gmra.mxu0 %v2091
      %v2201 = vpop.f32.mrf.mxu0
      %v2202 = vadd.f32 %v2066, %v2201
      %v2203 = vpop.f32.mrf.mxu0
      %v2204 = vadd.f32 %v2066, %v2203
      %2205 = vdwg.mxu0
      %2206 = vrot.lane.b32.xlu0 %v1995, 17
      %v2207 = vpop.permute.xlu0 %2206
      %2208 = vrot.lane.b32.xlu0 %v1997, 17
      %v2209 = vpop.permute.xlu0 %2208
      %2210 = vrot.lane.b32.xlu0 %v1999, 17
      %v2211 = vpop.permute.xlu0 %2210
      %2212 = vrot.lane.b32.xlu0 %v2001, 17
      %v2213 = vpop.permute.xlu0 %2212
      %2214 = vrot.lane.b32.xlu0 %v2003, 17
      %v2215 = vpop.permute.xlu0 %2214
      %2216 = vrot.lane.b32.xlu0 %v2005, 17
      %v2217 = vpop.permute.xlu0 %2216
      %2218 = vrot.lane.b32.xlu0 %v2007, 17
      %v2219 = vpop.permute.xlu0 %2218
      %2220 = vrot.lane.b32.xlu0 %v2009, 17
      %v2221 = vpop.permute.xlu0 %2220
      %2222 = vrot.lane.b32.xlu0 %v1996, 17
      %v2223 = vpop.permute.xlu0 %2222
      %2224 = vrot.lane.b32.xlu0 %v1998, 17
      %v2225 = vpop.permute.xlu0 %2224
      %2226 = vrot.lane.b32.xlu0 %v2000, 17
      %v2227 = vpop.permute.xlu0 %2226
      %2228 = vrot.lane.b32.xlu0 %v2002, 17
      %v2229 = vpop.permute.xlu0 %2228
      %2230 = vrot.lane.b32.xlu0 %v2004, 17
      %v2231 = vpop.permute.xlu0 %2230
      %2232 = vrot.lane.b32.xlu0 %v2006, 17
      %v2233 = vpop.permute.xlu0 %2232
      %2234 = vrot.lane.b32.xlu0 %v2008, 17
      %v2235 = vpop.permute.xlu0 %2234
      %2236 = vrot.lane.b32.xlu0 %v2010, 17
      %v2237 = vpop.permute.xlu0 %2236
      %v2238 = vsel %vm520, %v2207, %v2223
      %v2239 = vsel %vm520, %v2209, %v2225
      %v2240 = vsel %vm520, %v2211, %v2227
      %v2241 = vsel %vm520, %v2213, %v2229
      %v2242 = vsel %vm520, %v2215, %v2231
      %v2243 = vsel %vm520, %v2217, %v2233
      %v2244 = vsel %vm520, %v2219, %v2235
      %v2245 = vsel %vm520, %v2221, %v2237
      %v2246 = vsel %vm520, %v2223, %v2207
      %v2247 = vsel %vm520, %v2225, %v2209
      %v2248 = vsel %vm520, %v2227, %v2211
      %v2249 = vsel %vm520, %v2229, %v2213
      %v2250 = vsel %vm520, %v2231, %v2215
      %v2251 = vsel %vm520, %v2233, %v2217
      %v2252 = vsel %vm520, %v2235, %v2219
      %v2253 = vsel %vm520, %v2237, %v2221
      %v2254 = vmul.f32 %v2246, %v526
      %v2255 = vmul.f32 %v2238, %v530
      %v2256 = vmul.f32 %v2247, %v526
      %v2257 = vmul.f32 %v2239, %v530
      %v2258 = vmul.f32 %v2248, %v526
      %v2259 = vmul.f32 %v2240, %v530
      %v2260 = vmul.f32 %v2249, %v526
      %v2261 = vmul.f32 %v2241, %v530
      %v2262 = vmul.f32 %v2250, %v526
      %v2263 = vmul.f32 %v2242, %v530
      %v2264 = vmul.f32 %v2251, %v526
      %v2265 = vmul.f32 %v2243, %v530
      %v2266 = vmul.f32 %v2252, %v526
      %v2267 = vmul.f32 %v2244, %v530
      %v2268 = vmul.f32 %v2253, %v526
      %v2269 = vmul.f32 %v2245, %v530
      %v2270 = vld [vmem:[%s4] sm:$0xff]
      %v2271 = vld [vmem:[%s4 + $0x8] sm:$0xff]
      %v2272 = vld [vmem:[%s4 + $0x10] sm:$0xff]
      %v2273 = vld [vmem:[%s4 + $0x18] sm:$0xff]
      %v2274 = vld [vmem:[%s4 + $0x20] sm:$0xff]
      %v2275 = vld [vmem:[%s4 + $0x28] sm:$0xff]
      %v2276 = vld [vmem:[%s4 + $0x30] sm:$0xff]
      %v2277 = vld [vmem:[%s4 + $0x38] sm:$0xff]
      %v2279 = vsel %vm2068, %v2270, 0
      %v2282 = vsel %vm2068, %v2271, 0
      %v2285 = vsel %vm2068, %v2272, 0
      %v2288 = vsel %vm2068, %v2273, 0
      %v2291 = vsel %vm2068, %v2274, 0
      %v2294 = vsel %vm2068, %v2275, 0
      %v2297 = vsel %vm2068, %v2276, 0
      %v2300 = vsel %vm2068, %v2277, 0
      %2302 = vmatprep.subr.mxu0 0.0
      %2303 = vmatpush1.msra.mxu0 0.0
      %2304 = vmatprep.subr.mxu0 0.0
      %2305 = vmatpush1.msra.mxu0 0.0
      %2306 = vmatprep.subr.mxu0 0.0
      %2307 = vmatpush1.msra.mxu0 0.0
      %2308 = vmatprep.subr.mxu0 0.0
      %2309 = vmatpush1.msra.mxu0 0.0
      %2310 = vmatprep.subr.mxu0 0.0
      %2311 = vmatpush1.msra.mxu0 0.0
      %2312 = vmatprep.subr.mxu0 0.0
      %2313 = vmatpush1.msra.mxu0 0.0
      %2314 = vmatprep.subr.mxu0 0.0
      %2315 = vmatpush1.msra.mxu0 0.0
      %2316 = vmatprep.subr.mxu0 0.0
      %2317 = vmatpush1.msra.mxu0 0.0
      %2318 = vmatprep.subr.mxu0 %v2269
      %2319 = vmatpush1.msra.mxu0 %v2268
      %2320 = vmatprep.subr.mxu0 %v2267
      %2321 = vmatpush1.msra.mxu0 %v2266
      %2322 = vmatprep.subr.mxu0 %v2265
      %2323 = vmatpush1.msra.mxu0 %v2264
      %2324 = vmatprep.subr.mxu0 %v2263
      %2325 = vmatpush1.msra.mxu0 %v2262
      %2326 = vmatprep.subr.mxu0 %v2261
      %2327 = vmatpush1.msra.mxu0 %v2260
      %2328 = vmatprep.subr.mxu0 %v2259
      %2329 = vmatpush1.msra.mxu0 %v2258
      %2330 = vmatprep.subr.mxu0 %v2257
      %2331 = vmatpush1.msra.mxu0 %v2256
      %2332 = vmatprep.subr.mxu0 %v2255
      %2333 = vmatpush1.msra.mxu0 %v2254
      %2334 = vmatprep.subr.mxu0 0.0
      %2335 = vmatpush2.msra.mxu0 0.0
      %2336 = vmatprep.subr.mxu0 0.0
      %2337 = vmatpush2.msra.mxu0 0.0
      %2338 = vmatprep.subr.mxu0 0.0
      %2339 = vmatpush2.msra.mxu0 0.0
      %2340 = vmatprep.subr.mxu0 0.0
      %2341 = vmatpush2.msra.mxu0 0.0
      %2342 = vmatprep.subr.mxu0 0.0
      %2343 = vmatpush2.msra.mxu0 0.0
      %2344 = vmatprep.subr.mxu0 0.0
      %2345 = vmatpush2.msra.mxu0 0.0
      %2346 = vmatprep.subr.mxu0 0.0
      %2347 = vmatpush2.msra.mxu0 0.0
      %2348 = vmatprep.subr.mxu0 0.0
      %2349 = vmatpush2.msra.mxu0 0.0
      %2350 = vmatprep.subr.mxu0 0.0
      %2351 = vmatpush2.msra.mxu0 0.0
      %2352 = vmatprep.subr.mxu0 0.0
      %2353 = vmatpush2.msra.mxu0 0.0
      %2354 = vmatprep.subr.mxu0 0.0
      %2355 = vmatpush2.msra.mxu0 0.0
      %2356 = vmatprep.subr.mxu0 0.0
      %2357 = vmatpush2.msra.mxu0 0.0
      %2358 = vmatprep.subr.mxu0 0.0
      %2359 = vmatpush2.msra.mxu0 0.0
      %2360 = vmatprep.subr.mxu0 0.0
      %2361 = vmatpush2.msra.mxu0 0.0
      %2362 = vmatprep.subr.mxu0 0.0
      %2363 = vmatpush2.msra.mxu0 0.0
      %2364 = vmatprep.subr.mxu0 0.0
      %2365 = vmatpush2.msra.mxu0 0.0
      %2366 = vmatprep.mubr.f32.mxu0 0.0
      %2367 = vmatmul.mubr.f32.gmra.mxu0 %v2279
      %v2368 = vpop.f32.mrf.mxu0
      %v2369 = vadd.f32 0.0, %v2368
      %v2370 = vpop.f32.mrf.mxu0
      %v2371 = vadd.f32 0.0, %v2370
      %2372 = vmatprep.mubr.f32.mxu0 0.0
      %2373 = vmatmul.mubr.f32.gmra.mxu0 %v2282
      %v2374 = vpop.f32.mrf.mxu0
      %v2375 = vadd.f32 0.0, %v2374
      %v2376 = vpop.f32.mrf.mxu0
      %v2377 = vadd.f32 0.0, %v2376
      %2378 = vmatprep.mubr.f32.mxu0 0.0
      %2379 = vmatmul.mubr.f32.gmra.mxu0 %v2285
      %v2380 = vpop.f32.mrf.mxu0
      %v2381 = vadd.f32 0.0, %v2380
      %v2382 = vpop.f32.mrf.mxu0
      %v2383 = vadd.f32 0.0, %v2382
      %2384 = vmatprep.mubr.f32.mxu0 0.0
      %2385 = vmatmul.mubr.f32.gmra.mxu0 %v2288
      %v2386 = vpop.f32.mrf.mxu0
      %v2387 = vadd.f32 0.0, %v2386
      %v2388 = vpop.f32.mrf.mxu0
      %v2389 = vadd.f32 0.0, %v2388
      %2390 = vmatprep.mubr.f32.mxu0 0.0
      %2391 = vmatmul.mubr.f32.gmra.mxu0 %v2291
      %v2392 = vpop.f32.mrf.mxu0
      %v2393 = vadd.f32 0.0, %v2392
      %v2394 = vpop.f32.mrf.mxu0
      %v2395 = vadd.f32 0.0, %v2394
      %2396 = vmatprep.mubr.f32.mxu0 0.0
      %2397 = vmatmul.mubr.f32.gmra.mxu0 %v2294
      %v2398 = vpop.f32.mrf.mxu0
      %v2399 = vadd.f32 0.0, %v2398
      %v2400 = vpop.f32.mrf.mxu0
      %v2401 = vadd.f32 0.0, %v2400
      %2402 = vmatprep.mubr.f32.mxu0 0.0
      %2403 = vmatmul.mubr.f32.gmra.mxu0 %v2297
      %v2404 = vpop.f32.mrf.mxu0
      %v2405 = vadd.f32 0.0, %v2404
      %v2406 = vpop.f32.mrf.mxu0
      %v2407 = vadd.f32 0.0, %v2406
      %2408 = vmatprep.mubr.f32.mxu0 0.0
      %2409 = vmatmul.mubr.f32.gmra.mxu0 %v2300
      %v2410 = vpop.f32.mrf.mxu0
      %v2411 = vadd.f32 0.0, %v2410
      %v2412 = vpop.f32.mrf.mxu0
      %v2413 = vadd.f32 0.0, %v2412
      %2414 = vdwg.mxu0
      %v2415 = vadd.f32 %v2160, %v2369
      %v2416 = vadd.f32 %v2162, %v2371
      %v2417 = vadd.f32 %v2166, %v2375
      %v2418 = vadd.f32 %v2168, %v2377
      %v2419 = vadd.f32 %v2172, %v2381
      %v2420 = vadd.f32 %v2174, %v2383
      %v2421 = vadd.f32 %v2178, %v2387
      %v2422 = vadd.f32 %v2180, %v2389
      %v2423 = vadd.f32 %v2184, %v2393
      %v2424 = vadd.f32 %v2186, %v2395
      %v2425 = vadd.f32 %v2190, %v2399
      %v2426 = vadd.f32 %v2192, %v2401
      %v2427 = vadd.f32 %v2196, %v2405
      %v2428 = vadd.f32 %v2198, %v2407
      %v2429 = vadd.f32 %v2202, %v2411
      %v2430 = vadd.f32 %v2204, %v2413
      %2431 = vrot.lane.b32.xlu0 %v1995, 16
      %v2432 = vpop.permute.xlu0 %2431
      %2433 = vrot.lane.b32.xlu0 %v1997, 16
      %v2434 = vpop.permute.xlu0 %2433
      %2435 = vrot.lane.b32.xlu0 %v1999, 16
      %v2436 = vpop.permute.xlu0 %2435
      %2437 = vrot.lane.b32.xlu0 %v2001, 16
      %v2438 = vpop.permute.xlu0 %2437
      %2439 = vrot.lane.b32.xlu0 %v2003, 16
      %v2440 = vpop.permute.xlu0 %2439
      %2441 = vrot.lane.b32.xlu0 %v2005, 16
      %v2442 = vpop.permute.xlu0 %2441
      %2443 = vrot.lane.b32.xlu0 %v2007, 16
      %v2444 = vpop.permute.xlu0 %2443
      %2445 = vrot.lane.b32.xlu0 %v2009, 16
      %v2446 = vpop.permute.xlu0 %2445
      %2447 = vrot.lane.b32.xlu0 %v1996, 16
      %v2448 = vpop.permute.xlu0 %2447
      %2449 = vrot.lane.b32.xlu0 %v1998, 16
      %v2450 = vpop.permute.xlu0 %2449
      %2451 = vrot.lane.b32.xlu0 %v2000, 16
      %v2452 = vpop.permute.xlu0 %2451
      %2453 = vrot.lane.b32.xlu0 %v2002, 16
      %v2454 = vpop.permute.xlu0 %2453
      %2455 = vrot.lane.b32.xlu0 %v2004, 16
      %v2456 = vpop.permute.xlu0 %2455
      %2457 = vrot.lane.b32.xlu0 %v2006, 16
      %v2458 = vpop.permute.xlu0 %2457
      %2459 = vrot.lane.b32.xlu0 %v2008, 16
      %v2460 = vpop.permute.xlu0 %2459
      %2461 = vrot.lane.b32.xlu0 %v2010, 16
      %v2462 = vpop.permute.xlu0 %2461
      %v2463 = vsel %vm704, %v2432, %v2448
      %v2464 = vsel %vm704, %v2434, %v2450
      %v2465 = vsel %vm704, %v2436, %v2452
      %v2466 = vsel %vm704, %v2438, %v2454
      %v2467 = vsel %vm704, %v2440, %v2456
      %v2468 = vsel %vm704, %v2442, %v2458
      %v2469 = vsel %vm704, %v2444, %v2460
      %v2470 = vsel %vm704, %v2446, %v2462
      %v2471 = vsel %vm704, %v2448, %v2432
      %v2472 = vsel %vm704, %v2450, %v2434
      %v2473 = vsel %vm704, %v2452, %v2436
      %v2474 = vsel %vm704, %v2454, %v2438
      %v2475 = vsel %vm704, %v2456, %v2440
      %v2476 = vsel %vm704, %v2458, %v2442
      %v2477 = vsel %vm704, %v2460, %v2444
      %v2478 = vsel %vm704, %v2462, %v2446
      %v2479 = vmul.f32 %v2471, %v710
      %v2480 = vmul.f32 %v2463, %v714
      %v2481 = vmul.f32 %v2472, %v710
      %v2482 = vmul.f32 %v2464, %v714
      %v2483 = vmul.f32 %v2473, %v710
      %v2484 = vmul.f32 %v2465, %v714
      %v2485 = vmul.f32 %v2474, %v710
      %v2486 = vmul.f32 %v2466, %v714
      %v2487 = vmul.f32 %v2475, %v710
      %v2488 = vmul.f32 %v2467, %v714
      %v2489 = vmul.f32 %v2476, %v710
      %v2490 = vmul.f32 %v2468, %v714
      %v2491 = vmul.f32 %v2477, %v710
      %v2492 = vmul.f32 %v2469, %v714
      %v2493 = vmul.f32 %v2478, %v710
      %v2494 = vmul.f32 %v2470, %v714
      %s2495 = scalar_lea.vmem %s4, 64
      %v2496 = vld [vmem:[%s2495] sm:$0xff]
      %v2497 = vld [vmem:[%s2495 + $0x8] sm:$0xff]
      %v2498 = vld [vmem:[%s2495 + $0x10] sm:$0xff]
      %v2499 = vld [vmem:[%s2495 + $0x18] sm:$0xff]
      %v2500 = vld [vmem:[%s2495 + $0x20] sm:$0xff]
      %v2501 = vld [vmem:[%s2495 + $0x28] sm:$0xff]
      %v2502 = vld [vmem:[%s2495 + $0x30] sm:$0xff]
      %v2503 = vld [vmem:[%s2495 + $0x38] sm:$0xff]
      %v2505 = vsel %vm2068, %v2496, 0
      %v2508 = vsel %vm2068, %v2497, 0
      %v2511 = vsel %vm2068, %v2498, 0
      %v2514 = vsel %vm2068, %v2499, 0
      %v2517 = vsel %vm2068, %v2500, 0
      %v2520 = vsel %vm2068, %v2501, 0
      %v2523 = vsel %vm2068, %v2502, 0
      %v2526 = vsel %vm2068, %v2503, 0
      %2528 = vmatprep.subr.mxu0 0.0
      %2529 = vmatpush1.msra.mxu0 0.0
      %2530 = vmatprep.subr.mxu0 0.0
      %2531 = vmatpush1.msra.mxu0 0.0
      %2532 = vmatprep.subr.mxu0 0.0
      %2533 = vmatpush1.msra.mxu0 0.0
      %2534 = vmatprep.subr.mxu0 0.0
      %2535 = vmatpush1.msra.mxu0 0.0
      %2536 = vmatprep.subr.mxu0 0.0
      %2537 = vmatpush1.msra.mxu0 0.0
      %2538 = vmatprep.subr.mxu0 0.0
      %2539 = vmatpush1.msra.mxu0 0.0
      %2540 = vmatprep.subr.mxu0 0.0
      %2541 = vmatpush1.msra.mxu0 0.0
      %2542 = vmatprep.subr.mxu0 0.0
      %2543 = vmatpush1.msra.mxu0 0.0
      %2544 = vmatprep.subr.mxu0 %v2494
      %2545 = vmatpush1.msra.mxu0 %v2493
      %2546 = vmatprep.subr.mxu0 %v2492
      %2547 = vmatpush1.msra.mxu0 %v2491
      %2548 = vmatprep.subr.mxu0 %v2490
      %2549 = vmatpush1.msra.mxu0 %v2489
      %2550 = vmatprep.subr.mxu0 %v2488
      %2551 = vmatpush1.msra.mxu0 %v2487
      %2552 = vmatprep.subr.mxu0 %v2486
      %2553 = vmatpush1.msra.mxu0 %v2485
      %2554 = vmatprep.subr.mxu0 %v2484
      %2555 = vmatpush1.msra.mxu0 %v2483
      %2556 = vmatprep.subr.mxu0 %v2482
      %2557 = vmatpush1.msra.mxu0 %v2481
      %2558 = vmatprep.subr.mxu0 %v2480
      %2559 = vmatpush1.msra.mxu0 %v2479
      %2560 = vmatprep.subr.mxu0 0.0
      %2561 = vmatpush2.msra.mxu0 0.0
      %2562 = vmatprep.subr.mxu0 0.0
      %2563 = vmatpush2.msra.mxu0 0.0
      %2564 = vmatprep.subr.mxu0 0.0
      %2565 = vmatpush2.msra.mxu0 0.0
      %2566 = vmatprep.subr.mxu0 0.0
      %2567 = vmatpush2.msra.mxu0 0.0
      %2568 = vmatprep.subr.mxu0 0.0
      %2569 = vmatpush2.msra.mxu0 0.0
      %2570 = vmatprep.subr.mxu0 0.0
      %2571 = vmatpush2.msra.mxu0 0.0
      %2572 = vmatprep.subr.mxu0 0.0
      %2573 = vmatpush2.msra.mxu0 0.0
      %2574 = vmatprep.subr.mxu0 0.0
      %2575 = vmatpush2.msra.mxu0 0.0
      %2576 = vmatprep.subr.mxu0 0.0
      %2577 = vmatpush2.msra.mxu0 0.0
      %2578 = vmatprep.subr.mxu0 0.0
      %2579 = vmatpush2.msra.mxu0 0.0
      %2580 = vmatprep.subr.mxu0 0.0
      %2581 = vmatpush2.msra.mxu0 0.0
      %2582 = vmatprep.subr.mxu0 0.0
      %2583 = vmatpush2.msra.mxu0 0.0
      %2584 = vmatprep.subr.mxu0 0.0
      %2585 = vmatpush2.msra.mxu0 0.0
      %2586 = vmatprep.subr.mxu0 0.0
      %2587 = vmatpush2.msra.mxu0 0.0
      %2588 = vmatprep.subr.mxu0 0.0
      %2589 = vmatpush2.msra.mxu0 0.0
      %2590 = vmatprep.subr.mxu0 0.0
      %2591 = vmatpush2.msra.mxu0 0.0
      %2592 = vmatprep.mubr.f32.mxu0 0.0
      %2593 = vmatmul.mubr.f32.gmra.mxu0 %v2505
      %v2594 = vpop.f32.mrf.mxu0
      %v2595 = vadd.f32 0.0, %v2594
      %v2596 = vpop.f32.mrf.mxu0
      %v2597 = vadd.f32 0.0, %v2596
      %2598 = vmatprep.mubr.f32.mxu0 0.0
      %2599 = vmatmul.mubr.f32.gmra.mxu0 %v2508
      %v2600 = vpop.f32.mrf.mxu0
      %v2601 = vadd.f32 0.0, %v2600
      %v2602 = vpop.f32.mrf.mxu0
      %v2603 = vadd.f32 0.0, %v2602
      %2604 = vmatprep.mubr.f32.mxu0 0.0
      %2605 = vmatmul.mubr.f32.gmra.mxu0 %v2511
      %v2606 = vpop.f32.mrf.mxu0
      %v2607 = vadd.f32 0.0, %v2606
      %v2608 = vpop.f32.mrf.mxu0
      %v2609 = vadd.f32 0.0, %v2608
      %2610 = vmatprep.mubr.f32.mxu0 0.0
      %2611 = vmatmul.mubr.f32.gmra.mxu0 %v2514
      %v2612 = vpop.f32.mrf.mxu0
      %v2613 = vadd.f32 0.0, %v2612
      %v2614 = vpop.f32.mrf.mxu0
      %v2615 = vadd.f32 0.0, %v2614
      %2616 = vmatprep.mubr.f32.mxu0 0.0
      %2617 = vmatmul.mubr.f32.gmra.mxu0 %v2517
      %v2618 = vpop.f32.mrf.mxu0
      %v2619 = vadd.f32 0.0, %v2618
      %v2620 = vpop.f32.mrf.mxu0
      %v2621 = vadd.f32 0.0, %v2620
      %2622 = vmatprep.mubr.f32.mxu0 0.0
      %2623 = vmatmul.mubr.f32.gmra.mxu0 %v2520
      %v2624 = vpop.f32.mrf.mxu0
      %v2625 = vadd.f32 0.0, %v2624
      %v2626 = vpop.f32.mrf.mxu0
      %v2627 = vadd.f32 0.0, %v2626
      %2628 = vmatprep.mubr.f32.mxu0 0.0
      %2629 = vmatmul.mubr.f32.gmra.mxu0 %v2523
      %v2630 = vpop.f32.mrf.mxu0
      %v2631 = vadd.f32 0.0, %v2630
      %v2632 = vpop.f32.mrf.mxu0
      %v2633 = vadd.f32 0.0, %v2632
      %2634 = vmatprep.mubr.f32.mxu0 0.0
      %2635 = vmatmul.mubr.f32.gmra.mxu0 %v2526
      %v2636 = vpop.f32.mrf.mxu0
      %v2637 = vadd.f32 0.0, %v2636
      %v2638 = vpop.f32.mrf.mxu0
      %v2639 = vadd.f32 0.0, %v2638
      %2640 = vdwg.mxu0
      %v2641 = vadd.f32 %v2415, %v2595
      %v2642 = vadd.f32 %v2416, %v2597
      %v2643 = vadd.f32 %v2417, %v2601
      %v2644 = vadd.f32 %v2418, %v2603
      %v2645 = vadd.f32 %v2419, %v2607
      %v2646 = vadd.f32 %v2420, %v2609
      %v2647 = vadd.f32 %v2421, %v2613
      %v2648 = vadd.f32 %v2422, %v2615
      %v2649 = vadd.f32 %v2423, %v2619
      %v2650 = vadd.f32 %v2424, %v2621
      %v2651 = vadd.f32 %v2425, %v2625
      %v2652 = vadd.f32 %v2426, %v2627
      %v2653 = vadd.f32 %v2427, %v2631
      %v2654 = vadd.f32 %v2428, %v2633
      %v2655 = vadd.f32 %v2429, %v2637
      %v2656 = vadd.f32 %v2430, %v2639
      %2657 = vrot.lane.b32.xlu0 %v1995, 15
      %v2658 = vpop.permute.xlu0 %2657
      %2659 = vrot.lane.b32.xlu0 %v1997, 15
      %v2660 = vpop.permute.xlu0 %2659
      %2661 = vrot.lane.b32.xlu0 %v1999, 15
      %v2662 = vpop.permute.xlu0 %2661
      %2663 = vrot.lane.b32.xlu0 %v2001, 15
      %v2664 = vpop.permute.xlu0 %2663
      %2665 = vrot.lane.b32.xlu0 %v2003, 15
      %v2666 = vpop.permute.xlu0 %2665
      %2667 = vrot.lane.b32.xlu0 %v2005, 15
      %v2668 = vpop.permute.xlu0 %2667
      %2669 = vrot.lane.b32.xlu0 %v2007, 15
      %v2670 = vpop.permute.xlu0 %2669
      %2671 = vrot.lane.b32.xlu0 %v2009, 15
      %v2672 = vpop.permute.xlu0 %2671
      %2673 = vrot.lane.b32.xlu0 %v1996, 15
      %v2674 = vpop.permute.xlu0 %2673
      %2675 = vrot.lane.b32.xlu0 %v1998, 15
      %v2676 = vpop.permute.xlu0 %2675
      %2677 = vrot.lane.b32.xlu0 %v2000, 15
      %v2678 = vpop.permute.xlu0 %2677
      %2679 = vrot.lane.b32.xlu0 %v2002, 15
      %v2680 = vpop.permute.xlu0 %2679
      %2681 = vrot.lane.b32.xlu0 %v2004, 15
      %v2682 = vpop.permute.xlu0 %2681
      %2683 = vrot.lane.b32.xlu0 %v2006, 15
      %v2684 = vpop.permute.xlu0 %2683
      %2685 = vrot.lane.b32.xlu0 %v2008, 15
      %v2686 = vpop.permute.xlu0 %2685
      %2687 = vrot.lane.b32.xlu0 %v2010, 15
      %v2688 = vpop.permute.xlu0 %2687
      %v2689 = vsel %vm889, %v2658, %v2674
      %v2690 = vsel %vm889, %v2660, %v2676
      %v2691 = vsel %vm889, %v2662, %v2678
      %v2692 = vsel %vm889, %v2664, %v2680
      %v2693 = vsel %vm889, %v2666, %v2682
      %v2694 = vsel %vm889, %v2668, %v2684
      %v2695 = vsel %vm889, %v2670, %v2686
      %v2696 = vsel %vm889, %v2672, %v2688
      %v2697 = vsel %vm889, %v2674, %v2658
      %v2698 = vsel %vm889, %v2676, %v2660
      %v2699 = vsel %vm889, %v2678, %v2662
      %v2700 = vsel %vm889, %v2680, %v2664
      %v2701 = vsel %vm889, %v2682, %v2666
      %v2702 = vsel %vm889, %v2684, %v2668
      %v2703 = vsel %vm889, %v2686, %v2670
      %v2704 = vsel %vm889, %v2688, %v2672
      %v2705 = vmul.f32 %v2697, %v895
      %v2706 = vmul.f32 %v2689, %v899
      %v2707 = vmul.f32 %v2698, %v895
      %v2708 = vmul.f32 %v2690, %v899
      %v2709 = vmul.f32 %v2699, %v895
      %v2710 = vmul.f32 %v2691, %v899
      %v2711 = vmul.f32 %v2700, %v895
      %v2712 = vmul.f32 %v2692, %v899
      %v2713 = vmul.f32 %v2701, %v895
      %v2714 = vmul.f32 %v2693, %v899
      %v2715 = vmul.f32 %v2702, %v895
      %v2716 = vmul.f32 %v2694, %v899
      %v2717 = vmul.f32 %v2703, %v895
      %v2718 = vmul.f32 %v2695, %v899
      %v2719 = vmul.f32 %v2704, %v895
      %v2720 = vmul.f32 %v2696, %v899
      %s2721 = scalar_lea.vmem %s4, 128
      %v2722 = vld [vmem:[%s2721] sm:$0xff]
      %v2723 = vld [vmem:[%s2721 + $0x8] sm:$0xff]
      %v2724 = vld [vmem:[%s2721 + $0x10] sm:$0xff]
      %v2725 = vld [vmem:[%s2721 + $0x18] sm:$0xff]
      %v2726 = vld [vmem:[%s2721 + $0x20] sm:$0xff]
      %v2727 = vld [vmem:[%s2721 + $0x28] sm:$0xff]
      %v2728 = vld [vmem:[%s2721 + $0x30] sm:$0xff]
      %v2729 = vld [vmem:[%s2721 + $0x38] sm:$0xff]
      %v2731 = vsel %vm2068, %v2722, 0
      %v2734 = vsel %vm2068, %v2723, 0
      %v2737 = vsel %vm2068, %v2724, 0
      %v2740 = vsel %vm2068, %v2725, 0
      %v2743 = vsel %vm2068, %v2726, 0
      %v2746 = vsel %vm2068, %v2727, 0
      %v2749 = vsel %vm2068, %v2728, 0
      %v2752 = vsel %vm2068, %v2729, 0
      %2754 = vmatprep.subr.mxu0 0.0
      %2755 = vmatpush1.msra.mxu0 0.0
      %2756 = vmatprep.subr.mxu0 0.0
      %2757 = vmatpush1.msra.mxu0 0.0
      %2758 = vmatprep.subr.mxu0 0.0
      %2759 = vmatpush1.msra.mxu0 0.0
      %2760 = vmatprep.subr.mxu0 0.0
      %2761 = vmatpush1.msra.mxu0 0.0
      %2762 = vmatprep.subr.mxu0 0.0
      %2763 = vmatpush1.msra.mxu0 0.0
      %2764 = vmatprep.subr.mxu0 0.0
      %2765 = vmatpush1.msra.mxu0 0.0
      %2766 = vmatprep.subr.mxu0 0.0
      %2767 = vmatpush1.msra.mxu0 0.0
      %2768 = vmatprep.subr.mxu0 0.0
      %2769 = vmatpush1.msra.mxu0 0.0
      %2770 = vmatprep.subr.mxu0 %v2720
      %2771 = vmatpush1.msra.mxu0 %v2719
      %2772 = vmatprep.subr.mxu0 %v2718
      %2773 = vmatpush1.msra.mxu0 %v2717
      %2774 = vmatprep.subr.mxu0 %v2716
      %2775 = vmatpush1.msra.mxu0 %v2715
      %2776 = vmatprep.subr.mxu0 %v2714
      %2777 = vmatpush1.msra.mxu0 %v2713
      %2778 = vmatprep.subr.mxu0 %v2712
      %2779 = vmatpush1.msra.mxu0 %v2711
      %2780 = vmatprep.subr.mxu0 %v2710
      %2781 = vmatpush1.msra.mxu0 %v2709
      %2782 = vmatprep.subr.mxu0 %v2708
      %2783 = vmatpush1.msra.mxu0 %v2707
      %2784 = vmatprep.subr.mxu0 %v2706
      %2785 = vmatpush1.msra.mxu0 %v2705
      %2786 = vmatprep.subr.mxu0 0.0
      %2787 = vmatpush2.msra.mxu0 0.0
      %2788 = vmatprep.subr.mxu0 0.0
      %2789 = vmatpush2.msra.mxu0 0.0
      %2790 = vmatprep.subr.mxu0 0.0
      %2791 = vmatpush2.msra.mxu0 0.0
      %2792 = vmatprep.subr.mxu0 0.0
      %2793 = vmatpush2.msra.mxu0 0.0
      %2794 = vmatprep.subr.mxu0 0.0
      %2795 = vmatpush2.msra.mxu0 0.0
      %2796 = vmatprep.subr.mxu0 0.0
      %2797 = vmatpush2.msra.mxu0 0.0
      %2798 = vmatprep.subr.mxu0 0.0
      %2799 = vmatpush2.msra.mxu0 0.0
      %2800 = vmatprep.subr.mxu0 0.0
      %2801 = vmatpush2.msra.mxu0 0.0
      %2802 = vmatprep.subr.mxu0 0.0
      %2803 = vmatpush2.msra.mxu0 0.0
      %2804 = vmatprep.subr.mxu0 0.0
      %2805 = vmatpush2.msra.mxu0 0.0
      %2806 = vmatprep.subr.mxu0 0.0
      %2807 = vmatpush2.msra.mxu0 0.0
      %2808 = vmatprep.subr.mxu0 0.0
      %2809 = vmatpush2.msra.mxu0 0.0
      %2810 = vmatprep.subr.mxu0 0.0
      %2811 = vmatpush2.msra.mxu0 0.0
      %2812 = vmatprep.subr.mxu0 0.0
      %2813 = vmatpush2.msra.mxu0 0.0
      %2814 = vmatprep.subr.mxu0 0.0
      %2815 = vmatpush2.msra.mxu0 0.0
      %2816 = vmatprep.subr.mxu0 0.0
      %2817 = vmatpush2.msra.mxu0 0.0
      %2818 = vmatprep.mubr.f32.mxu0 0.0
      %2819 = vmatmul.mubr.f32.gmra.mxu0 %v2731
      %v2820 = vpop.f32.mrf.mxu0
      %v2821 = vadd.f32 0.0, %v2820
      %v2822 = vpop.f32.mrf.mxu0
      %v2823 = vadd.f32 0.0, %v2822
      %2824 = vmatprep.mubr.f32.mxu0 0.0
      %2825 = vmatmul.mubr.f32.gmra.mxu0 %v2734
      %v2826 = vpop.f32.mrf.mxu0
      %v2827 = vadd.f32 0.0, %v2826
      %v2828 = vpop.f32.mrf.mxu0
      %v2829 = vadd.f32 0.0, %v2828
      %2830 = vmatprep.mubr.f32.mxu0 0.0
      %2831 = vmatmul.mubr.f32.gmra.mxu0 %v2737
      %v2832 = vpop.f32.mrf.mxu0
      %v2833 = vadd.f32 0.0, %v2832
      %v2834 = vpop.f32.mrf.mxu0
      %v2835 = vadd.f32 0.0, %v2834
      %2836 = vmatprep.mubr.f32.mxu0 0.0
      %2837 = vmatmul.mubr.f32.gmra.mxu0 %v2740
      %v2838 = vpop.f32.mrf.mxu0
      %v2839 = vadd.f32 0.0, %v2838
      %v2840 = vpop.f32.mrf.mxu0
      %v2841 = vadd.f32 0.0, %v2840
      %2842 = vmatprep.mubr.f32.mxu0 0.0
      %2843 = vmatmul.mubr.f32.gmra.mxu0 %v2743
      %v2844 = vpop.f32.mrf.mxu0
      %v2845 = vadd.f32 0.0, %v2844
      %v2846 = vpop.f32.mrf.mxu0
      %v2847 = vadd.f32 0.0, %v2846
      %2848 = vmatprep.mubr.f32.mxu0 0.0
      %2849 = vmatmul.mubr.f32.gmra.mxu0 %v2746
      %v2850 = vpop.f32.mrf.mxu0
      %v2851 = vadd.f32 0.0, %v2850
      %v2852 = vpop.f32.mrf.mxu0
      %v2853 = vadd.f32 0.0, %v2852
      %2854 = vmatprep.mubr.f32.mxu0 0.0
      %2855 = vmatmul.mubr.f32.gmra.mxu0 %v2749
      %v2856 = vpop.f32.mrf.mxu0
      %v2857 = vadd.f32 0.0, %v2856
      %v2858 = vpop.f32.mrf.mxu0
      %v2859 = vadd.f32 0.0, %v2858
      %2860 = vmatprep.mubr.f32.mxu0 0.0
      %2861 = vmatmul.mubr.f32.gmra.mxu0 %v2752
      %v2862 = vpop.f32.mrf.mxu0
      %v2863 = vadd.f32 0.0, %v2862
      %v2864 = vpop.f32.mrf.mxu0
      %v2865 = vadd.f32 0.0, %v2864
      %2866 = vdwg.mxu0
      %v2867 = vadd.f32 %v2641, %v2821
      %v2868 = vadd.f32 %v2642, %v2823
      %v2869 = vadd.f32 %v2643, %v2827
      %v2870 = vadd.f32 %v2644, %v2829
      %v2871 = vadd.f32 %v2645, %v2833
      %v2872 = vadd.f32 %v2646, %v2835
      %v2873 = vadd.f32 %v2647, %v2839
      %v2874 = vadd.f32 %v2648, %v2841
      %v2875 = vadd.f32 %v2649, %v2845
      %v2876 = vadd.f32 %v2650, %v2847
      %v2877 = vadd.f32 %v2651, %v2851
      %v2878 = vadd.f32 %v2652, %v2853
      %v2879 = vadd.f32 %v2653, %v2857
      %v2880 = vadd.f32 %v2654, %v2859
      %v2881 = vadd.f32 %v2655, %v2863
      %v2882 = vadd.f32 %v2656, %v2865
      %2883 = vrot.lane.b32.xlu0 %v1995, 1
      %v2884 = vpop.permute.xlu0 %2883
      %2885 = vrot.lane.b32.xlu0 %v1997, 1
      %v2886 = vpop.permute.xlu0 %2885
      %2887 = vrot.lane.b32.xlu0 %v1999, 1
      %v2888 = vpop.permute.xlu0 %2887
      %2889 = vrot.lane.b32.xlu0 %v2001, 1
      %v2890 = vpop.permute.xlu0 %2889
      %2891 = vrot.lane.b32.xlu0 %v2003, 1
      %v2892 = vpop.permute.xlu0 %2891
      %2893 = vrot.lane.b32.xlu0 %v2005, 1
      %v2894 = vpop.permute.xlu0 %2893
      %2895 = vrot.lane.b32.xlu0 %v2007, 1
      %v2896 = vpop.permute.xlu0 %2895
      %2897 = vrot.lane.b32.xlu0 %v2009, 1
      %v2898 = vpop.permute.xlu0 %2897
      %2899 = vrot.lane.b32.xlu0 %v1996, 1
      %v2900 = vpop.permute.xlu0 %2899
      %2901 = vrot.lane.b32.xlu0 %v1998, 1
      %v2902 = vpop.permute.xlu0 %2901
      %2903 = vrot.lane.b32.xlu0 %v2000, 1
      %v2904 = vpop.permute.xlu0 %2903
      %2905 = vrot.lane.b32.xlu0 %v2002, 1
      %v2906 = vpop.permute.xlu0 %2905
      %2907 = vrot.lane.b32.xlu0 %v2004, 1
      %v2908 = vpop.permute.xlu0 %2907
      %2909 = vrot.lane.b32.xlu0 %v2006, 1
      %v2910 = vpop.permute.xlu0 %2909
      %2911 = vrot.lane.b32.xlu0 %v2008, 1
      %v2912 = vpop.permute.xlu0 %2911
      %2913 = vrot.lane.b32.xlu0 %v2010, 1
      %v2914 = vpop.permute.xlu0 %2913
      %v2915 = vsel %vm1074, %v2884, %v2900
      %v2916 = vsel %vm1074, %v2886, %v2902
      %v2917 = vsel %vm1074, %v2888, %v2904
      %v2918 = vsel %vm1074, %v2890, %v2906
      %v2919 = vsel %vm1074, %v2892, %v2908
      %v2920 = vsel %vm1074, %v2894, %v2910
      %v2921 = vsel %vm1074, %v2896, %v2912
      %v2922 = vsel %vm1074, %v2898, %v2914
      %v2923 = vsel %vm1074, %v2900, %v2884
      %v2924 = vsel %vm1074, %v2902, %v2886
      %v2925 = vsel %vm1074, %v2904, %v2888
      %v2926 = vsel %vm1074, %v2906, %v2890
      %v2927 = vsel %vm1074, %v2908, %v2892
      %v2928 = vsel %vm1074, %v2910, %v2894
      %v2929 = vsel %vm1074, %v2912, %v2896
      %v2930 = vsel %vm1074, %v2914, %v2898
      %v2931 = vmul.f32 %v2923, %v1080
      %v2932 = vmul.f32 %v2915, %v1084
      %v2933 = vmul.f32 %v2924, %v1080
      %v2934 = vmul.f32 %v2916, %v1084
      %v2935 = vmul.f32 %v2925, %v1080
      %v2936 = vmul.f32 %v2917, %v1084
      %v2937 = vmul.f32 %v2926, %v1080
      %v2938 = vmul.f32 %v2918, %v1084
      %v2939 = vmul.f32 %v2927, %v1080
      %v2940 = vmul.f32 %v2919, %v1084
      %v2941 = vmul.f32 %v2928, %v1080
      %v2942 = vmul.f32 %v2920, %v1084
      %v2943 = vmul.f32 %v2929, %v1080
      %v2944 = vmul.f32 %v2921, %v1084
      %v2945 = vmul.f32 %v2930, %v1080
      %v2946 = vmul.f32 %v2922, %v1084
      %s2947 = scalar_lea.vmem %s4, 192
      %v2948 = vld [vmem:[%s2947] sm:$0xff]
      %v2949 = vld [vmem:[%s2947 + $0x8] sm:$0xff]
      %v2950 = vld [vmem:[%s2947 + $0x10] sm:$0xff]
      %v2951 = vld [vmem:[%s2947 + $0x18] sm:$0xff]
      %v2952 = vld [vmem:[%s2947 + $0x20] sm:$0xff]
      %v2953 = vld [vmem:[%s2947 + $0x28] sm:$0xff]
      %v2954 = vld [vmem:[%s2947 + $0x30] sm:$0xff]
      %v2955 = vld [vmem:[%s2947 + $0x38] sm:$0xff]
      %v2957 = vsel %vm2068, %v2948, 0
      %v2960 = vsel %vm2068, %v2949, 0
      %v2963 = vsel %vm2068, %v2950, 0
      %v2966 = vsel %vm2068, %v2951, 0
      %v2969 = vsel %vm2068, %v2952, 0
      %v2972 = vsel %vm2068, %v2953, 0
      %v2975 = vsel %vm2068, %v2954, 0
      %v2978 = vsel %vm2068, %v2955, 0
      %2980 = vmatprep.subr.mxu0 0.0
      %2981 = vmatpush1.msra.mxu0 0.0
      %2982 = vmatprep.subr.mxu0 0.0
      %2983 = vmatpush1.msra.mxu0 0.0
      %2984 = vmatprep.subr.mxu0 0.0
      %2985 = vmatpush1.msra.mxu0 0.0
      %2986 = vmatprep.subr.mxu0 0.0
      %2987 = vmatpush1.msra.mxu0 0.0
      %2988 = vmatprep.subr.mxu0 0.0
      %2989 = vmatpush1.msra.mxu0 0.0
      %2990 = vmatprep.subr.mxu0 0.0
      %2991 = vmatpush1.msra.mxu0 0.0
      %2992 = vmatprep.subr.mxu0 0.0
      %2993 = vmatpush1.msra.mxu0 0.0
      %2994 = vmatprep.subr.mxu0 0.0
      %2995 = vmatpush1.msra.mxu0 0.0
      %2996 = vmatprep.subr.mxu0 %v2946
      %2997 = vmatpush1.msra.mxu0 %v2945
      %2998 = vmatprep.subr.mxu0 %v2944
      %2999 = vmatpush1.msra.mxu0 %v2943
      %3000 = vmatprep.subr.mxu0 %v2942
      %3001 = vmatpush1.msra.mxu0 %v2941
      %3002 = vmatprep.subr.mxu0 %v2940
      %3003 = vmatpush1.msra.mxu0 %v2939
      %3004 = vmatprep.subr.mxu0 %v2938
      %3005 = vmatpush1.msra.mxu0 %v2937
      %3006 = vmatprep.subr.mxu0 %v2936
      %3007 = vmatpush1.msra.mxu0 %v2935
      %3008 = vmatprep.subr.mxu0 %v2934
      %3009 = vmatpush1.msra.mxu0 %v2933
      %3010 = vmatprep.subr.mxu0 %v2932
      %3011 = vmatpush1.msra.mxu0 %v2931
      %3012 = vmatprep.subr.mxu0 0.0
      %3013 = vmatpush2.msra.mxu0 0.0
      %3014 = vmatprep.subr.mxu0 0.0
      %3015 = vmatpush2.msra.mxu0 0.0
      %3016 = vmatprep.subr.mxu0 0.0
      %3017 = vmatpush2.msra.mxu0 0.0
      %3018 = vmatprep.subr.mxu0 0.0
      %3019 = vmatpush2.msra.mxu0 0.0
      %3020 = vmatprep.subr.mxu0 0.0
      %3021 = vmatpush2.msra.mxu0 0.0
      %3022 = vmatprep.subr.mxu0 0.0
      %3023 = vmatpush2.msra.mxu0 0.0
      %3024 = vmatprep.subr.mxu0 0.0
      %3025 = vmatpush2.msra.mxu0 0.0
      %3026 = vmatprep.subr.mxu0 0.0
      %3027 = vmatpush2.msra.mxu0 0.0
      %3028 = vmatprep.subr.mxu0 0.0
      %3029 = vmatpush2.msra.mxu0 0.0
      %3030 = vmatprep.subr.mxu0 0.0
      %3031 = vmatpush2.msra.mxu0 0.0
      %3032 = vmatprep.subr.mxu0 0.0
      %3033 = vmatpush2.msra.mxu0 0.0
      %3034 = vmatprep.subr.mxu0 0.0
      %3035 = vmatpush2.msra.mxu0 0.0
      %3036 = vmatprep.subr.mxu0 0.0
      %3037 = vmatpush2.msra.mxu0 0.0
      %3038 = vmatprep.subr.mxu0 0.0
      %3039 = vmatpush2.msra.mxu0 0.0
      %3040 = vmatprep.subr.mxu0 0.0
      %3041 = vmatpush2.msra.mxu0 0.0
      %3042 = vmatprep.subr.mxu0 0.0
      %3043 = vmatpush2.msra.mxu0 0.0
      %3044 = vmatprep.mubr.f32.mxu0 0.0
      %3045 = vmatmul.mubr.f32.gmra.mxu0 %v2957
      %v3046 = vpop.f32.mrf.mxu0
      %v3047 = vadd.f32 0.0, %v3046
      %v3048 = vpop.f32.mrf.mxu0
      %v3049 = vadd.f32 0.0, %v3048
      %3050 = vmatprep.mubr.f32.mxu0 0.0
      %3051 = vmatmul.mubr.f32.gmra.mxu0 %v2960
      %v3052 = vpop.f32.mrf.mxu0
      %v3053 = vadd.f32 0.0, %v3052
      %v3054 = vpop.f32.mrf.mxu0
      %v3055 = vadd.f32 0.0, %v3054
      %3056 = vmatprep.mubr.f32.mxu0 0.0
      %3057 = vmatmul.mubr.f32.gmra.mxu0 %v2963
      %v3058 = vpop.f32.mrf.mxu0
      %v3059 = vadd.f32 0.0, %v3058
      %v3060 = vpop.f32.mrf.mxu0
      %v3061 = vadd.f32 0.0, %v3060
      %3062 = vmatprep.mubr.f32.mxu0 0.0
      %3063 = vmatmul.mubr.f32.gmra.mxu0 %v2966
      %v3064 = vpop.f32.mrf.mxu0
      %v3065 = vadd.f32 0.0, %v3064
      %v3066 = vpop.f32.mrf.mxu0
      %v3067 = vadd.f32 0.0, %v3066
      %3068 = vmatprep.mubr.f32.mxu0 0.0
      %3069 = vmatmul.mubr.f32.gmra.mxu0 %v2969
      %v3070 = vpop.f32.mrf.mxu0
      %v3071 = vadd.f32 0.0, %v3070
      %v3072 = vpop.f32.mrf.mxu0
      %v3073 = vadd.f32 0.0, %v3072
      %3074 = vmatprep.mubr.f32.mxu0 0.0
      %3075 = vmatmul.mubr.f32.gmra.mxu0 %v2972
      %v3076 = vpop.f32.mrf.mxu0
      %v3077 = vadd.f32 0.0, %v3076
      %v3078 = vpop.f32.mrf.mxu0
      %v3079 = vadd.f32 0.0, %v3078
      %3080 = vmatprep.mubr.f32.mxu0 0.0
      %3081 = vmatmul.mubr.f32.gmra.mxu0 %v2975
      %v3082 = vpop.f32.mrf.mxu0
      %v3083 = vadd.f32 0.0, %v3082
      %v3084 = vpop.f32.mrf.mxu0
      %v3085 = vadd.f32 0.0, %v3084
      %3086 = vmatprep.mubr.f32.mxu0 0.0
      %3087 = vmatmul.mubr.f32.gmra.mxu0 %v2978
      %v3088 = vpop.f32.mrf.mxu0
      %v3089 = vadd.f32 0.0, %v3088
      %v3090 = vpop.f32.mrf.mxu0
      %v3091 = vadd.f32 0.0, %v3090
      %3092 = vdwg.mxu0
      %v3093 = vadd.f32 %v2867, %v3047
      %v3094 = vadd.f32 %v2868, %v3049
      %v3095 = vadd.f32 %v2869, %v3053
      %v3096 = vadd.f32 %v2870, %v3055
      %v3097 = vadd.f32 %v2871, %v3059
      %v3098 = vadd.f32 %v2872, %v3061
      %v3099 = vadd.f32 %v2873, %v3065
      %v3100 = vadd.f32 %v2874, %v3067
      %v3101 = vadd.f32 %v2875, %v3071
      %v3102 = vadd.f32 %v2876, %v3073
      %v3103 = vadd.f32 %v2877, %v3077
      %v3104 = vadd.f32 %v2878, %v3079
      %v3105 = vadd.f32 %v2879, %v3083
      %v3106 = vadd.f32 %v2880, %v3085
      %v3107 = vadd.f32 %v2881, %v3089
      %v3108 = vadd.f32 %v2882, %v3091
      %3109 = vrot.lane.b32.xlu0 %v1995, 127
      %v3110 = vpop.permute.xlu0 %3109
      %3111 = vrot.lane.b32.xlu0 %v1997, 127
      %v3112 = vpop.permute.xlu0 %3111
      %3113 = vrot.lane.b32.xlu0 %v1999, 127
      %v3114 = vpop.permute.xlu0 %3113
      %3115 = vrot.lane.b32.xlu0 %v2001, 127
      %v3116 = vpop.permute.xlu0 %3115
      %3117 = vrot.lane.b32.xlu0 %v2003, 127
      %v3118 = vpop.permute.xlu0 %3117
      %3119 = vrot.lane.b32.xlu0 %v2005, 127
      %v3120 = vpop.permute.xlu0 %3119
      %3121 = vrot.lane.b32.xlu0 %v2007, 127
      %v3122 = vpop.permute.xlu0 %3121
      %3123 = vrot.lane.b32.xlu0 %v2009, 127
      %v3124 = vpop.permute.xlu0 %3123
      %3125 = vrot.lane.b32.xlu0 %v1996, 127
      %v3126 = vpop.permute.xlu0 %3125
      %3127 = vrot.lane.b32.xlu0 %v1998, 127
      %v3128 = vpop.permute.xlu0 %3127
      %3129 = vrot.lane.b32.xlu0 %v2000, 127
      %v3130 = vpop.permute.xlu0 %3129
      %3131 = vrot.lane.b32.xlu0 %v2002, 127
      %v3132 = vpop.permute.xlu0 %3131
      %3133 = vrot.lane.b32.xlu0 %v2004, 127
      %v3134 = vpop.permute.xlu0 %3133
      %3135 = vrot.lane.b32.xlu0 %v2006, 127
      %v3136 = vpop.permute.xlu0 %3135
      %3137 = vrot.lane.b32.xlu0 %v2008, 127
      %v3138 = vpop.permute.xlu0 %3137
      %3139 = vrot.lane.b32.xlu0 %v2010, 127
      %v3140 = vpop.permute.xlu0 %3139
      %v3141 = vsel %vm1259, %v3110, %v3126
      %v3142 = vsel %vm1259, %v3112, %v3128
      %v3143 = vsel %vm1259, %v3114, %v3130
      %v3144 = vsel %vm1259, %v3116, %v3132
      %v3145 = vsel %vm1259, %v3118, %v3134
      %v3146 = vsel %vm1259, %v3120, %v3136
      %v3147 = vsel %vm1259, %v3122, %v3138
      %v3148 = vsel %vm1259, %v3124, %v3140
      %v3149 = vsel %vm1259, %v3126, %v3110
      %v3150 = vsel %vm1259, %v3128, %v3112
      %v3151 = vsel %vm1259, %v3130, %v3114
      %v3152 = vsel %vm1259, %v3132, %v3116
      %v3153 = vsel %vm1259, %v3134, %v3118
      %v3154 = vsel %vm1259, %v3136, %v3120
      %v3155 = vsel %vm1259, %v3138, %v3122
      %v3156 = vsel %vm1259, %v3140, %v3124
      %v3157 = vmul.f32 %v3141, %v1265
      %v3158 = vmul.f32 %v3149, %v1269
      %v3159 = vmul.f32 %v3142, %v1265
      %v3160 = vmul.f32 %v3150, %v1269
      %v3161 = vmul.f32 %v3143, %v1265
      %v3162 = vmul.f32 %v3151, %v1269
      %v3163 = vmul.f32 %v3144, %v1265
      %v3164 = vmul.f32 %v3152, %v1269
      %v3165 = vmul.f32 %v3145, %v1265
      %v3166 = vmul.f32 %v3153, %v1269
      %v3167 = vmul.f32 %v3146, %v1265
      %v3168 = vmul.f32 %v3154, %v1269
      %v3169 = vmul.f32 %v3147, %v1265
      %v3170 = vmul.f32 %v3155, %v1269
      %v3171 = vmul.f32 %v3148, %v1265
      %v3172 = vmul.f32 %v3156, %v1269
      %s3173 = scalar_lea.vmem %s4, 320
      %v3174 = vld [vmem:[%s3173] sm:$0xff]
      %v3175 = vld [vmem:[%s3173 + $0x8] sm:$0xff]
      %v3176 = vld [vmem:[%s3173 + $0x10] sm:$0xff]
      %v3177 = vld [vmem:[%s3173 + $0x18] sm:$0xff]
      %v3178 = vld [vmem:[%s3173 + $0x20] sm:$0xff]
      %v3179 = vld [vmem:[%s3173 + $0x28] sm:$0xff]
      %v3180 = vld [vmem:[%s3173 + $0x30] sm:$0xff]
      %v3181 = vld [vmem:[%s3173 + $0x38] sm:$0xff]
      %v3183 = vsel %vm2068, %v3174, 0
      %v3186 = vsel %vm2068, %v3175, 0
      %v3189 = vsel %vm2068, %v3176, 0
      %v3192 = vsel %vm2068, %v3177, 0
      %v3195 = vsel %vm2068, %v3178, 0
      %v3198 = vsel %vm2068, %v3179, 0
      %v3201 = vsel %vm2068, %v3180, 0
      %v3204 = vsel %vm2068, %v3181, 0
      %3206 = vmatprep.subr.mxu0 0.0
      %3207 = vmatpush1.msra.mxu0 0.0
      %3208 = vmatprep.subr.mxu0 0.0
      %3209 = vmatpush1.msra.mxu0 0.0
      %3210 = vmatprep.subr.mxu0 0.0
      %3211 = vmatpush1.msra.mxu0 0.0
      %3212 = vmatprep.subr.mxu0 0.0
      %3213 = vmatpush1.msra.mxu0 0.0
      %3214 = vmatprep.subr.mxu0 0.0
      %3215 = vmatpush1.msra.mxu0 0.0
      %3216 = vmatprep.subr.mxu0 0.0
      %3217 = vmatpush1.msra.mxu0 0.0
      %3218 = vmatprep.subr.mxu0 0.0
      %3219 = vmatpush1.msra.mxu0 0.0
      %3220 = vmatprep.subr.mxu0 0.0
      %3221 = vmatpush1.msra.mxu0 0.0
      %3222 = vmatprep.subr.mxu0 %v3172
      %3223 = vmatpush1.msra.mxu0 %v3171
      %3224 = vmatprep.subr.mxu0 %v3170
      %3225 = vmatpush1.msra.mxu0 %v3169
      %3226 = vmatprep.subr.mxu0 %v3168
      %3227 = vmatpush1.msra.mxu0 %v3167
      %3228 = vmatprep.subr.mxu0 %v3166
      %3229 = vmatpush1.msra.mxu0 %v3165
      %3230 = vmatprep.subr.mxu0 %v3164
      %3231 = vmatpush1.msra.mxu0 %v3163
      %3232 = vmatprep.subr.mxu0 %v3162
      %3233 = vmatpush1.msra.mxu0 %v3161
      %3234 = vmatprep.subr.mxu0 %v3160
      %3235 = vmatpush1.msra.mxu0 %v3159
      %3236 = vmatprep.subr.mxu0 %v3158
      %3237 = vmatpush1.msra.mxu0 %v3157
      %3238 = vmatprep.subr.mxu0 0.0
      %3239 = vmatpush2.msra.mxu0 0.0
      %3240 = vmatprep.subr.mxu0 0.0
      %3241 = vmatpush2.msra.mxu0 0.0
      %3242 = vmatprep.subr.mxu0 0.0
      %3243 = vmatpush2.msra.mxu0 0.0
      %3244 = vmatprep.subr.mxu0 0.0
      %3245 = vmatpush2.msra.mxu0 0.0
      %3246 = vmatprep.subr.mxu0 0.0
      %3247 = vmatpush2.msra.mxu0 0.0
      %3248 = vmatprep.subr.mxu0 0.0
      %3249 = vmatpush2.msra.mxu0 0.0
      %3250 = vmatprep.subr.mxu0 0.0
      %3251 = vmatpush2.msra.mxu0 0.0
      %3252 = vmatprep.subr.mxu0 0.0
      %3253 = vmatpush2.msra.mxu0 0.0
      %3254 = vmatprep.subr.mxu0 0.0
      %3255 = vmatpush2.msra.mxu0 0.0
      %3256 = vmatprep.subr.mxu0 0.0
      %3257 = vmatpush2.msra.mxu0 0.0
      %3258 = vmatprep.subr.mxu0 0.0
      %3259 = vmatpush2.msra.mxu0 0.0
      %3260 = vmatprep.subr.mxu0 0.0
      %3261 = vmatpush2.msra.mxu0 0.0
      %3262 = vmatprep.subr.mxu0 0.0
      %3263 = vmatpush2.msra.mxu0 0.0
      %3264 = vmatprep.subr.mxu0 0.0
      %3265 = vmatpush2.msra.mxu0 0.0
      %3266 = vmatprep.subr.mxu0 0.0
      %3267 = vmatpush2.msra.mxu0 0.0
      %3268 = vmatprep.subr.mxu0 0.0
      %3269 = vmatpush2.msra.mxu0 0.0
      %3270 = vmatprep.mubr.f32.mxu0 0.0
      %3271 = vmatmul.mubr.f32.gmra.mxu0 %v3183
      %v3272 = vpop.f32.mrf.mxu0
      %v3273 = vadd.f32 0.0, %v3272
      %v3274 = vpop.f32.mrf.mxu0
      %v3275 = vadd.f32 0.0, %v3274
      %3276 = vmatprep.mubr.f32.mxu0 0.0
      %3277 = vmatmul.mubr.f32.gmra.mxu0 %v3186
      %v3278 = vpop.f32.mrf.mxu0
      %v3279 = vadd.f32 0.0, %v3278
      %v3280 = vpop.f32.mrf.mxu0
      %v3281 = vadd.f32 0.0, %v3280
      %3282 = vmatprep.mubr.f32.mxu0 0.0
      %3283 = vmatmul.mubr.f32.gmra.mxu0 %v3189
      %v3284 = vpop.f32.mrf.mxu0
      %v3285 = vadd.f32 0.0, %v3284
      %v3286 = vpop.f32.mrf.mxu0
      %v3287 = vadd.f32 0.0, %v3286
      %3288 = vmatprep.mubr.f32.mxu0 0.0
      %3289 = vmatmul.mubr.f32.gmra.mxu0 %v3192
      %v3290 = vpop.f32.mrf.mxu0
      %v3291 = vadd.f32 0.0, %v3290
      %v3292 = vpop.f32.mrf.mxu0
      %v3293 = vadd.f32 0.0, %v3292
      %3294 = vmatprep.mubr.f32.mxu0 0.0
      %3295 = vmatmul.mubr.f32.gmra.mxu0 %v3195
      %v3296 = vpop.f32.mrf.mxu0
      %v3297 = vadd.f32 0.0, %v3296
      %v3298 = vpop.f32.mrf.mxu0
      %v3299 = vadd.f32 0.0, %v3298
      %3300 = vmatprep.mubr.f32.mxu0 0.0
      %3301 = vmatmul.mubr.f32.gmra.mxu0 %v3198
      %v3302 = vpop.f32.mrf.mxu0
      %v3303 = vadd.f32 0.0, %v3302
      %v3304 = vpop.f32.mrf.mxu0
      %v3305 = vadd.f32 0.0, %v3304
      %3306 = vmatprep.mubr.f32.mxu0 0.0
      %3307 = vmatmul.mubr.f32.gmra.mxu0 %v3201
      %v3308 = vpop.f32.mrf.mxu0
      %v3309 = vadd.f32 0.0, %v3308
      %v3310 = vpop.f32.mrf.mxu0
      %v3311 = vadd.f32 0.0, %v3310
      %3312 = vmatprep.mubr.f32.mxu0 0.0
      %3313 = vmatmul.mubr.f32.gmra.mxu0 %v3204
      %v3314 = vpop.f32.mrf.mxu0
      %v3315 = vadd.f32 0.0, %v3314
      %v3316 = vpop.f32.mrf.mxu0
      %v3317 = vadd.f32 0.0, %v3316
      %3318 = vdwg.mxu0
      %v3319 = vadd.f32 %v3093, %v3273
      %v3320 = vadd.f32 %v3094, %v3275
      %v3321 = vadd.f32 %v3095, %v3279
      %v3322 = vadd.f32 %v3096, %v3281
      %v3323 = vadd.f32 %v3097, %v3285
      %v3324 = vadd.f32 %v3098, %v3287
      %v3325 = vadd.f32 %v3099, %v3291
      %v3326 = vadd.f32 %v3100, %v3293
      %v3327 = vadd.f32 %v3101, %v3297
      %v3328 = vadd.f32 %v3102, %v3299
      %v3329 = vadd.f32 %v3103, %v3303
      %v3330 = vadd.f32 %v3104, %v3305
      %v3331 = vadd.f32 %v3105, %v3309
      %v3332 = vadd.f32 %v3106, %v3311
      %v3333 = vadd.f32 %v3107, %v3315
      %v3334 = vadd.f32 %v3108, %v3317
      %3335 = vrot.lane.b32.xlu0 %v1995, 113
      %v3336 = vpop.permute.xlu0 %3335
      %3337 = vrot.lane.b32.xlu0 %v1997, 113
      %v3338 = vpop.permute.xlu0 %3337
      %3339 = vrot.lane.b32.xlu0 %v1999, 113
      %v3340 = vpop.permute.xlu0 %3339
      %3341 = vrot.lane.b32.xlu0 %v2001, 113
      %v3342 = vpop.permute.xlu0 %3341
      %3343 = vrot.lane.b32.xlu0 %v2003, 113
      %v3344 = vpop.permute.xlu0 %3343
      %3345 = vrot.lane.b32.xlu0 %v2005, 113
      %v3346 = vpop.permute.xlu0 %3345
      %3347 = vrot.lane.b32.xlu0 %v2007, 113
      %v3348 = vpop.permute.xlu0 %3347
      %3349 = vrot.lane.b32.xlu0 %v2009, 113
      %v3350 = vpop.permute.xlu0 %3349
      %3351 = vrot.lane.b32.xlu0 %v1996, 113
      %v3352 = vpop.permute.xlu0 %3351
      %3353 = vrot.lane.b32.xlu0 %v1998, 113
      %v3354 = vpop.permute.xlu0 %3353
      %3355 = vrot.lane.b32.xlu0 %v2000, 113
      %v3356 = vpop.permute.xlu0 %3355
      %3357 = vrot.lane.b32.xlu0 %v2002, 113
      %v3358 = vpop.permute.xlu0 %3357
      %3359 = vrot.lane.b32.xlu0 %v2004, 113
      %v3360 = vpop.permute.xlu0 %3359
      %3361 = vrot.lane.b32.xlu0 %v2006, 113
      %v3362 = vpop.permute.xlu0 %3361
      %3363 = vrot.lane.b32.xlu0 %v2008, 113
      %v3364 = vpop.permute.xlu0 %3363
      %3365 = vrot.lane.b32.xlu0 %v2010, 113
      %v3366 = vpop.permute.xlu0 %3365
      %v3367 = vsel %vm1444, %v3336, %v3352
      %v3368 = vsel %vm1444, %v3338, %v3354
      %v3369 = vsel %vm1444, %v3340, %v3356
      %v3370 = vsel %vm1444, %v3342, %v3358
      %v3371 = vsel %vm1444, %v3344, %v3360
      %v3372 = vsel %vm1444, %v3346, %v3362
      %v3373 = vsel %vm1444, %v3348, %v3364
      %v3374 = vsel %vm1444, %v3350, %v3366
      %v3375 = vsel %vm1444, %v3352, %v3336
      %v3376 = vsel %vm1444, %v3354, %v3338
      %v3377 = vsel %vm1444, %v3356, %v3340
      %v3378 = vsel %vm1444, %v3358, %v3342
      %v3379 = vsel %vm1444, %v3360, %v3344
      %v3380 = vsel %vm1444, %v3362, %v3346
      %v3381 = vsel %vm1444, %v3364, %v3348
      %v3382 = vsel %vm1444, %v3366, %v3350
      %v3383 = vmul.f32 %v3367, %v1450
      %v3384 = vmul.f32 %v3375, %v1454
      %v3385 = vmul.f32 %v3368, %v1450
      %v3386 = vmul.f32 %v3376, %v1454
      %v3387 = vmul.f32 %v3369, %v1450
      %v3388 = vmul.f32 %v3377, %v1454
      %v3389 = vmul.f32 %v3370, %v1450
      %v3390 = vmul.f32 %v3378, %v1454
      %v3391 = vmul.f32 %v3371, %v1450
      %v3392 = vmul.f32 %v3379, %v1454
      %v3393 = vmul.f32 %v3372, %v1450
      %v3394 = vmul.f32 %v3380, %v1454
      %v3395 = vmul.f32 %v3373, %v1450
      %v3396 = vmul.f32 %v3381, %v1454
      %v3397 = vmul.f32 %v3374, %v1450
      %v3398 = vmul.f32 %v3382, %v1454
      %s3399 = scalar_lea.vmem %s4, 384
      %v3400 = vld [vmem:[%s3399] sm:$0xff]
      %v3401 = vld [vmem:[%s3399 + $0x8] sm:$0xff]
      %v3402 = vld [vmem:[%s3399 + $0x10] sm:$0xff]
      %v3403 = vld [vmem:[%s3399 + $0x18] sm:$0xff]
      %v3404 = vld [vmem:[%s3399 + $0x20] sm:$0xff]
      %v3405 = vld [vmem:[%s3399 + $0x28] sm:$0xff]
      %v3406 = vld [vmem:[%s3399 + $0x30] sm:$0xff]
      %v3407 = vld [vmem:[%s3399 + $0x38] sm:$0xff]
      %v3409 = vsel %vm2068, %v3400, 0
      %v3412 = vsel %vm2068, %v3401, 0
      %v3415 = vsel %vm2068, %v3402, 0
      %v3418 = vsel %vm2068, %v3403, 0
      %v3421 = vsel %vm2068, %v3404, 0
      %v3424 = vsel %vm2068, %v3405, 0
      %v3427 = vsel %vm2068, %v3406, 0
      %v3430 = vsel %vm2068, %v3407, 0
      %3432 = vmatprep.subr.mxu0 0.0
      %3433 = vmatpush1.msra.mxu0 0.0
      %3434 = vmatprep.subr.mxu0 0.0
      %3435 = vmatpush1.msra.mxu0 0.0
      %3436 = vmatprep.subr.mxu0 0.0
      %3437 = vmatpush1.msra.mxu0 0.0
      %3438 = vmatprep.subr.mxu0 0.0
      %3439 = vmatpush1.msra.mxu0 0.0
      %3440 = vmatprep.subr.mxu0 0.0
      %3441 = vmatpush1.msra.mxu0 0.0
      %3442 = vmatprep.subr.mxu0 0.0
      %3443 = vmatpush1.msra.mxu0 0.0
      %3444 = vmatprep.subr.mxu0 0.0
      %3445 = vmatpush1.msra.mxu0 0.0
      %3446 = vmatprep.subr.mxu0 0.0
      %3447 = vmatpush1.msra.mxu0 0.0
      %3448 = vmatprep.subr.mxu0 %v3398
      %3449 = vmatpush1.msra.mxu0 %v3397
      %3450 = vmatprep.subr.mxu0 %v3396
      %3451 = vmatpush1.msra.mxu0 %v3395
      %3452 = vmatprep.subr.mxu0 %v3394
      %3453 = vmatpush1.msra.mxu0 %v3393
      %3454 = vmatprep.subr.mxu0 %v3392
      %3455 = vmatpush1.msra.mxu0 %v3391
      %3456 = vmatprep.subr.mxu0 %v3390
      %3457 = vmatpush1.msra.mxu0 %v3389
      %3458 = vmatprep.subr.mxu0 %v3388
      %3459 = vmatpush1.msra.mxu0 %v3387
      %3460 = vmatprep.subr.mxu0 %v3386
      %3461 = vmatpush1.msra.mxu0 %v3385
      %3462 = vmatprep.subr.mxu0 %v3384
      %3463 = vmatpush1.msra.mxu0 %v3383
      %3464 = vmatprep.subr.mxu0 0.0
      %3465 = vmatpush2.msra.mxu0 0.0
      %3466 = vmatprep.subr.mxu0 0.0
      %3467 = vmatpush2.msra.mxu0 0.0
      %3468 = vmatprep.subr.mxu0 0.0
      %3469 = vmatpush2.msra.mxu0 0.0
      %3470 = vmatprep.subr.mxu0 0.0
      %3471 = vmatpush2.msra.mxu0 0.0
      %3472 = vmatprep.subr.mxu0 0.0
      %3473 = vmatpush2.msra.mxu0 0.0
      %3474 = vmatprep.subr.mxu0 0.0
      %3475 = vmatpush2.msra.mxu0 0.0
      %3476 = vmatprep.subr.mxu0 0.0
      %3477 = vmatpush2.msra.mxu0 0.0
      %3478 = vmatprep.subr.mxu0 0.0
      %3479 = vmatpush2.msra.mxu0 0.0
      %3480 = vmatprep.subr.mxu0 0.0
      %3481 = vmatpush2.msra.mxu0 0.0
      %3482 = vmatprep.subr.mxu0 0.0
      %3483 = vmatpush2.msra.mxu0 0.0
      %3484 = vmatprep.subr.mxu0 0.0
      %3485 = vmatpush2.msra.mxu0 0.0
      %3486 = vmatprep.subr.mxu0 0.0
      %3487 = vmatpush2.msra.mxu0 0.0
      %3488 = vmatprep.subr.mxu0 0.0
      %3489 = vmatpush2.msra.mxu0 0.0
      %3490 = vmatprep.subr.mxu0 0.0
      %3491 = vmatpush2.msra.mxu0 0.0
      %3492 = vmatprep.subr.mxu0 0.0
      %3493 = vmatpush2.msra.mxu0 0.0
      %3494 = vmatprep.subr.mxu0 0.0
      %3495 = vmatpush2.msra.mxu0 0.0
      %3496 = vmatprep.mubr.f32.mxu0 0.0
      %3497 = vmatmul.mubr.f32.gmra.mxu0 %v3409
      %v3498 = vpop.f32.mrf.mxu0
      %v3499 = vadd.f32 0.0, %v3498
      %v3500 = vpop.f32.mrf.mxu0
      %v3501 = vadd.f32 0.0, %v3500
      %3502 = vmatprep.mubr.f32.mxu0 0.0
      %3503 = vmatmul.mubr.f32.gmra.mxu0 %v3412
      %v3504 = vpop.f32.mrf.mxu0
      %v3505 = vadd.f32 0.0, %v3504
      %v3506 = vpop.f32.mrf.mxu0
      %v3507 = vadd.f32 0.0, %v3506
      %3508 = vmatprep.mubr.f32.mxu0 0.0
      %3509 = vmatmul.mubr.f32.gmra.mxu0 %v3415
      %v3510 = vpop.f32.mrf.mxu0
      %v3511 = vadd.f32 0.0, %v3510
      %v3512 = vpop.f32.mrf.mxu0
      %v3513 = vadd.f32 0.0, %v3512
      %3514 = vmatprep.mubr.f32.mxu0 0.0
      %3515 = vmatmul.mubr.f32.gmra.mxu0 %v3418
      %v3516 = vpop.f32.mrf.mxu0
      %v3517 = vadd.f32 0.0, %v3516
      %v3518 = vpop.f32.mrf.mxu0
      %v3519 = vadd.f32 0.0, %v3518
      %3520 = vmatprep.mubr.f32.mxu0 0.0
      %3521 = vmatmul.mubr.f32.gmra.mxu0 %v3421
      %v3522 = vpop.f32.mrf.mxu0
      %v3523 = vadd.f32 0.0, %v3522
      %v3524 = vpop.f32.mrf.mxu0
      %v3525 = vadd.f32 0.0, %v3524
      %3526 = vmatprep.mubr.f32.mxu0 0.0
      %3527 = vmatmul.mubr.f32.gmra.mxu0 %v3424
      %v3528 = vpop.f32.mrf.mxu0
      %v3529 = vadd.f32 0.0, %v3528
      %v3530 = vpop.f32.mrf.mxu0
      %v3531 = vadd.f32 0.0, %v3530
      %3532 = vmatprep.mubr.f32.mxu0 0.0
      %3533 = vmatmul.mubr.f32.gmra.mxu0 %v3427
      %v3534 = vpop.f32.mrf.mxu0
      %v3535 = vadd.f32 0.0, %v3534
      %v3536 = vpop.f32.mrf.mxu0
      %v3537 = vadd.f32 0.0, %v3536
      %3538 = vmatprep.mubr.f32.mxu0 0.0
      %3539 = vmatmul.mubr.f32.gmra.mxu0 %v3430
      %v3540 = vpop.f32.mrf.mxu0
      %v3541 = vadd.f32 0.0, %v3540
      %v3542 = vpop.f32.mrf.mxu0
      %v3543 = vadd.f32 0.0, %v3542
      %3544 = vdwg.mxu0
      %v3545 = vadd.f32 %v3319, %v3499
      %v3546 = vadd.f32 %v3320, %v3501
      %v3547 = vadd.f32 %v3321, %v3505
      %v3548 = vadd.f32 %v3322, %v3507
      %v3549 = vadd.f32 %v3323, %v3511
      %v3550 = vadd.f32 %v3324, %v3513
      %v3551 = vadd.f32 %v3325, %v3517
      %v3552 = vadd.f32 %v3326, %v3519
      %v3553 = vadd.f32 %v3327, %v3523
      %v3554 = vadd.f32 %v3328, %v3525
      %v3555 = vadd.f32 %v3329, %v3529
      %v3556 = vadd.f32 %v3330, %v3531
      %v3557 = vadd.f32 %v3331, %v3535
      %v3558 = vadd.f32 %v3332, %v3537
      %v3559 = vadd.f32 %v3333, %v3541
      %v3560 = vadd.f32 %v3334, %v3543
      %3561 = vrot.lane.b32.xlu0 %v1995, 112
      %v3562 = vpop.permute.xlu0 %3561
      %3563 = vrot.lane.b32.xlu0 %v1997, 112
      %v3564 = vpop.permute.xlu0 %3563
      %3565 = vrot.lane.b32.xlu0 %v1999, 112
      %v3566 = vpop.permute.xlu0 %3565
      %3567 = vrot.lane.b32.xlu0 %v2001, 112
      %v3568 = vpop.permute.xlu0 %3567
      %3569 = vrot.lane.b32.xlu0 %v2003, 112
      %v3570 = vpop.permute.xlu0 %3569
      %3571 = vrot.lane.b32.xlu0 %v2005, 112
      %v3572 = vpop.permute.xlu0 %3571
      %3573 = vrot.lane.b32.xlu0 %v2007, 112
      %v3574 = vpop.permute.xlu0 %3573
      %3575 = vrot.lane.b32.xlu0 %v2009, 112
      %v3576 = vpop.permute.xlu0 %3575
      %3577 = vrot.lane.b32.xlu0 %v1996, 112
      %v3578 = vpop.permute.xlu0 %3577
      %3579 = vrot.lane.b32.xlu0 %v1998, 112
      %v3580 = vpop.permute.xlu0 %3579
      %3581 = vrot.lane.b32.xlu0 %v2000, 112
      %v3582 = vpop.permute.xlu0 %3581
      %3583 = vrot.lane.b32.xlu0 %v2002, 112
      %v3584 = vpop.permute.xlu0 %3583
      %3585 = vrot.lane.b32.xlu0 %v2004, 112
      %v3586 = vpop.permute.xlu0 %3585
      %3587 = vrot.lane.b32.xlu0 %v2006, 112
      %v3588 = vpop.permute.xlu0 %3587
      %3589 = vrot.lane.b32.xlu0 %v2008, 112
      %v3590 = vpop.permute.xlu0 %3589
      %3591 = vrot.lane.b32.xlu0 %v2010, 112
      %v3592 = vpop.permute.xlu0 %3591
      %v3593 = vsel %vm1629, %v3562, %v3578
      %v3594 = vsel %vm1629, %v3564, %v3580
      %v3595 = vsel %vm1629, %v3566, %v3582
      %v3596 = vsel %vm1629, %v3568, %v3584
      %v3597 = vsel %vm1629, %v3570, %v3586
      %v3598 = vsel %vm1629, %v3572, %v3588
      %v3599 = vsel %vm1629, %v3574, %v3590
      %v3600 = vsel %vm1629, %v3576, %v3592
      %v3601 = vsel %vm1629, %v3578, %v3562
      %v3602 = vsel %vm1629, %v3580, %v3564
      %v3603 = vsel %vm1629, %v3582, %v3566
      %v3604 = vsel %vm1629, %v3584, %v3568
      %v3605 = vsel %vm1629, %v3586, %v3570
      %v3606 = vsel %vm1629, %v3588, %v3572
      %v3607 = vsel %vm1629, %v3590, %v3574
      %v3608 = vsel %vm1629, %v3592, %v3576
      %v3609 = vmul.f32 %v3593, %v1635
      %v3610 = vmul.f32 %v3601, %v1639
      %v3611 = vmul.f32 %v3594, %v1635
      %v3612 = vmul.f32 %v3602, %v1639
      %v3613 = vmul.f32 %v3595, %v1635
      %v3614 = vmul.f32 %v3603, %v1639
      %v3615 = vmul.f32 %v3596, %v1635
      %v3616 = vmul.f32 %v3604, %v1639
      %v3617 = vmul.f32 %v3597, %v1635
      %v3618 = vmul.f32 %v3605, %v1639
      %v3619 = vmul.f32 %v3598, %v1635
      %v3620 = vmul.f32 %v3606, %v1639
      %v3621 = vmul.f32 %v3599, %v1635
      %v3622 = vmul.f32 %v3607, %v1639
      %v3623 = vmul.f32 %v3600, %v1635
      %v3624 = vmul.f32 %v3608, %v1639
      %s3625 = scalar_lea.vmem %s4, 448
      %v3626 = vld [vmem:[%s3625] sm:$0xff]
      %v3627 = vld [vmem:[%s3625 + $0x8] sm:$0xff]
      %v3628 = vld [vmem:[%s3625 + $0x10] sm:$0xff]
      %v3629 = vld [vmem:[%s3625 + $0x18] sm:$0xff]
      %v3630 = vld [vmem:[%s3625 + $0x20] sm:$0xff]
      %v3631 = vld [vmem:[%s3625 + $0x28] sm:$0xff]
      %v3632 = vld [vmem:[%s3625 + $0x30] sm:$0xff]
      %v3633 = vld [vmem:[%s3625 + $0x38] sm:$0xff]
      %v3635 = vsel %vm2068, %v3626, 0
      %v3638 = vsel %vm2068, %v3627, 0
      %v3641 = vsel %vm2068, %v3628, 0
      %v3644 = vsel %vm2068, %v3629, 0
      %v3647 = vsel %vm2068, %v3630, 0
      %v3650 = vsel %vm2068, %v3631, 0
      %v3653 = vsel %vm2068, %v3632, 0
      %v3656 = vsel %vm2068, %v3633, 0
      %3658 = vmatprep.subr.mxu0 0.0
      %3659 = vmatpush1.msra.mxu0 0.0
      %3660 = vmatprep.subr.mxu0 0.0
      %3661 = vmatpush1.msra.mxu0 0.0
      %3662 = vmatprep.subr.mxu0 0.0
      %3663 = vmatpush1.msra.mxu0 0.0
      %3664 = vmatprep.subr.mxu0 0.0
      %3665 = vmatpush1.msra.mxu0 0.0
      %3666 = vmatprep.subr.mxu0 0.0
      %3667 = vmatpush1.msra.mxu0 0.0
      %3668 = vmatprep.subr.mxu0 0.0
      %3669 = vmatpush1.msra.mxu0 0.0
      %3670 = vmatprep.subr.mxu0 0.0
      %3671 = vmatpush1.msra.mxu0 0.0
      %3672 = vmatprep.subr.mxu0 0.0
      %3673 = vmatpush1.msra.mxu0 0.0
      %3674 = vmatprep.subr.mxu0 %v3624
      %3675 = vmatpush1.msra.mxu0 %v3623
      %3676 = vmatprep.subr.mxu0 %v3622
      %3677 = vmatpush1.msra.mxu0 %v3621
      %3678 = vmatprep.subr.mxu0 %v3620
      %3679 = vmatpush1.msra.mxu0 %v3619
      %3680 = vmatprep.subr.mxu0 %v3618
      %3681 = vmatpush1.msra.mxu0 %v3617
      %3682 = vmatprep.subr.mxu0 %v3616
      %3683 = vmatpush1.msra.mxu0 %v3615
      %3684 = vmatprep.subr.mxu0 %v3614
      %3685 = vmatpush1.msra.mxu0 %v3613
      %3686 = vmatprep.subr.mxu0 %v3612
      %3687 = vmatpush1.msra.mxu0 %v3611
      %3688 = vmatprep.subr.mxu0 %v3610
      %3689 = vmatpush1.msra.mxu0 %v3609
      %3690 = vmatprep.subr.mxu0 0.0
      %3691 = vmatpush2.msra.mxu0 0.0
      %3692 = vmatprep.subr.mxu0 0.0
      %3693 = vmatpush2.msra.mxu0 0.0
      %3694 = vmatprep.subr.mxu0 0.0
      %3695 = vmatpush2.msra.mxu0 0.0
      %3696 = vmatprep.subr.mxu0 0.0
      %3697 = vmatpush2.msra.mxu0 0.0
      %3698 = vmatprep.subr.mxu0 0.0
      %3699 = vmatpush2.msra.mxu0 0.0
      %3700 = vmatprep.subr.mxu0 0.0
      %3701 = vmatpush2.msra.mxu0 0.0
      %3702 = vmatprep.subr.mxu0 0.0
      %3703 = vmatpush2.msra.mxu0 0.0
      %3704 = vmatprep.subr.mxu0 0.0
      %3705 = vmatpush2.msra.mxu0 0.0
      %3706 = vmatprep.subr.mxu0 0.0
      %3707 = vmatpush2.msra.mxu0 0.0
      %3708 = vmatprep.subr.mxu0 0.0
      %3709 = vmatpush2.msra.mxu0 0.0
      %3710 = vmatprep.subr.mxu0 0.0
      %3711 = vmatpush2.msra.mxu0 0.0
      %3712 = vmatprep.subr.mxu0 0.0
      %3713 = vmatpush2.msra.mxu0 0.0
      %3714 = vmatprep.subr.mxu0 0.0
      %3715 = vmatpush2.msra.mxu0 0.0
      %3716 = vmatprep.subr.mxu0 0.0
      %3717 = vmatpush2.msra.mxu0 0.0
      %3718 = vmatprep.subr.mxu0 0.0
      %3719 = vmatpush2.msra.mxu0 0.0
      %3720 = vmatprep.subr.mxu0 0.0
      %3721 = vmatpush2.msra.mxu0 0.0
      %3722 = vmatprep.mubr.f32.mxu0 0.0
      %3723 = vmatmul.mubr.f32.gmra.mxu0 %v3635
      %v3724 = vpop.f32.mrf.mxu0
      %v3725 = vadd.f32 0.0, %v3724
      %v3726 = vpop.f32.mrf.mxu0
      %v3727 = vadd.f32 0.0, %v3726
      %3728 = vmatprep.mubr.f32.mxu0 0.0
      %3729 = vmatmul.mubr.f32.gmra.mxu0 %v3638
      %v3730 = vpop.f32.mrf.mxu0
      %v3731 = vadd.f32 0.0, %v3730
      %v3732 = vpop.f32.mrf.mxu0
      %v3733 = vadd.f32 0.0, %v3732
      %3734 = vmatprep.mubr.f32.mxu0 0.0
      %3735 = vmatmul.mubr.f32.gmra.mxu0 %v3641
      %v3736 = vpop.f32.mrf.mxu0
      %v3737 = vadd.f32 0.0, %v3736
      %v3738 = vpop.f32.mrf.mxu0
      %v3739 = vadd.f32 0.0, %v3738
      %3740 = vmatprep.mubr.f32.mxu0 0.0
      %3741 = vmatmul.mubr.f32.gmra.mxu0 %v3644
      %v3742 = vpop.f32.mrf.mxu0
      %v3743 = vadd.f32 0.0, %v3742
      %v3744 = vpop.f32.mrf.mxu0
      %v3745 = vadd.f32 0.0, %v3744
      %3746 = vmatprep.mubr.f32.mxu0 0.0
      %3747 = vmatmul.mubr.f32.gmra.mxu0 %v3647
      %v3748 = vpop.f32.mrf.mxu0
      %v3749 = vadd.f32 0.0, %v3748
      %v3750 = vpop.f32.mrf.mxu0
      %v3751 = vadd.f32 0.0, %v3750
      %3752 = vmatprep.mubr.f32.mxu0 0.0
      %3753 = vmatmul.mubr.f32.gmra.mxu0 %v3650
      %v3754 = vpop.f32.mrf.mxu0
      %v3755 = vadd.f32 0.0, %v3754
      %v3756 = vpop.f32.mrf.mxu0
      %v3757 = vadd.f32 0.0, %v3756
      %3758 = vmatprep.mubr.f32.mxu0 0.0
      %3759 = vmatmul.mubr.f32.gmra.mxu0 %v3653
      %v3760 = vpop.f32.mrf.mxu0
      %v3761 = vadd.f32 0.0, %v3760
      %v3762 = vpop.f32.mrf.mxu0
      %v3763 = vadd.f32 0.0, %v3762
      %3764 = vmatprep.mubr.f32.mxu0 0.0
      %3765 = vmatmul.mubr.f32.gmra.mxu0 %v3656
      %v3766 = vpop.f32.mrf.mxu0
      %v3767 = vadd.f32 0.0, %v3766
      %v3768 = vpop.f32.mrf.mxu0
      %v3769 = vadd.f32 0.0, %v3768
      %3770 = vdwg.mxu0
      %v3771 = vadd.f32 %v3545, %v3725
      %v3772 = vadd.f32 %v3546, %v3727
      %v3773 = vadd.f32 %v3547, %v3731
      %v3774 = vadd.f32 %v3548, %v3733
      %v3775 = vadd.f32 %v3549, %v3737
      %v3776 = vadd.f32 %v3550, %v3739
      %v3777 = vadd.f32 %v3551, %v3743
      %v3778 = vadd.f32 %v3552, %v3745
      %v3779 = vadd.f32 %v3553, %v3749
      %v3780 = vadd.f32 %v3554, %v3751
      %v3781 = vadd.f32 %v3555, %v3755
      %v3782 = vadd.f32 %v3556, %v3757
      %v3783 = vadd.f32 %v3557, %v3761
      %v3784 = vadd.f32 %v3558, %v3763
      %v3785 = vadd.f32 %v3559, %v3767
      %v3786 = vadd.f32 %v3560, %v3769
      %3787 = vrot.lane.b32.xlu0 %v1995, 111
      %v3788 = vpop.permute.xlu0 %3787
      %3789 = vrot.lane.b32.xlu0 %v1997, 111
      %v3790 = vpop.permute.xlu0 %3789
      %3791 = vrot.lane.b32.xlu0 %v1999, 111
      %v3792 = vpop.permute.xlu0 %3791
      %3793 = vrot.lane.b32.xlu0 %v2001, 111
      %v3794 = vpop.permute.xlu0 %3793
      %3795 = vrot.lane.b32.xlu0 %v2003, 111
      %v3796 = vpop.permute.xlu0 %3795
      %3797 = vrot.lane.b32.xlu0 %v2005, 111
      %v3798 = vpop.permute.xlu0 %3797
      %3799 = vrot.lane.b32.xlu0 %v2007, 111
      %v3800 = vpop.permute.xlu0 %3799
      %3801 = vrot.lane.b32.xlu0 %v2009, 111
      %v3802 = vpop.permute.xlu0 %3801
      %3803 = vrot.lane.b32.xlu0 %v1996, 111
      %v3804 = vpop.permute.xlu0 %3803
      %3805 = vrot.lane.b32.xlu0 %v1998, 111
      %v3806 = vpop.permute.xlu0 %3805
      %3807 = vrot.lane.b32.xlu0 %v2000, 111
      %v3808 = vpop.permute.xlu0 %3807
      %3809 = vrot.lane.b32.xlu0 %v2002, 111
      %v3810 = vpop.permute.xlu0 %3809
      %3811 = vrot.lane.b32.xlu0 %v2004, 111
      %v3812 = vpop.permute.xlu0 %3811
      %3813 = vrot.lane.b32.xlu0 %v2006, 111
      %v3814 = vpop.permute.xlu0 %3813
      %3815 = vrot.lane.b32.xlu0 %v2008, 111
      %v3816 = vpop.permute.xlu0 %3815
      %3817 = vrot.lane.b32.xlu0 %v2010, 111
      %v3818 = vpop.permute.xlu0 %3817
      %v3819 = vsel %vm1814, %v3788, %v3804
      %v3820 = vsel %vm1814, %v3790, %v3806
      %v3821 = vsel %vm1814, %v3792, %v3808
      %v3822 = vsel %vm1814, %v3794, %v3810
      %v3823 = vsel %vm1814, %v3796, %v3812
      %v3824 = vsel %vm1814, %v3798, %v3814
      %v3825 = vsel %vm1814, %v3800, %v3816
      %v3826 = vsel %vm1814, %v3802, %v3818
      %v3827 = vsel %vm1814, %v3804, %v3788
      %v3828 = vsel %vm1814, %v3806, %v3790
      %v3829 = vsel %vm1814, %v3808, %v3792
      %v3830 = vsel %vm1814, %v3810, %v3794
      %v3831 = vsel %vm1814, %v3812, %v3796
      %v3832 = vsel %vm1814, %v3814, %v3798
      %v3833 = vsel %vm1814, %v3816, %v3800
      %v3834 = vsel %vm1814, %v3818, %v3802
      %v3835 = vmul.f32 %v3819, %v1820
      %v3836 = vmul.f32 %v3827, %v1824
      %v3837 = vmul.f32 %v3820, %v1820
      %v3838 = vmul.f32 %v3828, %v1824
      %v3839 = vmul.f32 %v3821, %v1820
      %v3840 = vmul.f32 %v3829, %v1824
      %v3841 = vmul.f32 %v3822, %v1820
      %v3842 = vmul.f32 %v3830, %v1824
      %v3843 = vmul.f32 %v3823, %v1820
      %v3844 = vmul.f32 %v3831, %v1824
      %v3845 = vmul.f32 %v3824, %v1820
      %v3846 = vmul.f32 %v3832, %v1824
      %v3847 = vmul.f32 %v3825, %v1820
      %v3848 = vmul.f32 %v3833, %v1824
      %v3849 = vmul.f32 %v3826, %v1820
      %v3850 = vmul.f32 %v3834, %v1824
      %s3851 = scalar_lea.vmem %s4, 512
      %v3852 = vld [vmem:[%s3851] sm:$0xff]
      %v3853 = vld [vmem:[%s3851 + $0x8] sm:$0xff]
      %v3854 = vld [vmem:[%s3851 + $0x10] sm:$0xff]
      %v3855 = vld [vmem:[%s3851 + $0x18] sm:$0xff]
      %v3856 = vld [vmem:[%s3851 + $0x20] sm:$0xff]
      %v3857 = vld [vmem:[%s3851 + $0x28] sm:$0xff]
      %v3858 = vld [vmem:[%s3851 + $0x30] sm:$0xff]
      %v3859 = vld [vmem:[%s3851 + $0x38] sm:$0xff]
      %v3861 = vsel %vm2068, %v3852, 0
      %v3864 = vsel %vm2068, %v3853, 0
      %v3867 = vsel %vm2068, %v3854, 0
      %v3870 = vsel %vm2068, %v3855, 0
      %v3873 = vsel %vm2068, %v3856, 0
      %v3876 = vsel %vm2068, %v3857, 0
      %v3879 = vsel %vm2068, %v3858, 0
      %v3882 = vsel %vm2068, %v3859, 0
      %3884 = vmatprep.subr.mxu0 0.0
      %3885 = vmatpush1.msra.mxu0 0.0
      %3886 = vmatprep.subr.mxu0 0.0
      %3887 = vmatpush1.msra.mxu0 0.0
      %3888 = vmatprep.subr.mxu0 0.0
      %3889 = vmatpush1.msra.mxu0 0.0
      %3890 = vmatprep.subr.mxu0 0.0
      %3891 = vmatpush1.msra.mxu0 0.0
      %3892 = vmatprep.subr.mxu0 0.0
      %3893 = vmatpush1.msra.mxu0 0.0
      %3894 = vmatprep.subr.mxu0 0.0
      %3895 = vmatpush1.msra.mxu0 0.0
      %3896 = vmatprep.subr.mxu0 0.0
      %3897 = vmatpush1.msra.mxu0 0.0
      %3898 = vmatprep.subr.mxu0 0.0
      %3899 = vmatpush1.msra.mxu0 0.0
      %3900 = vmatprep.subr.mxu0 %v3850
      %3901 = vmatpush1.msra.mxu0 %v3849
      %3902 = vmatprep.subr.mxu0 %v3848
      %3903 = vmatpush1.msra.mxu0 %v3847
      %3904 = vmatprep.subr.mxu0 %v3846
      %3905 = vmatpush1.msra.mxu0 %v3845
      %3906 = vmatprep.subr.mxu0 %v3844
      %3907 = vmatpush1.msra.mxu0 %v3843
      %3908 = vmatprep.subr.mxu0 %v3842
      %3909 = vmatpush1.msra.mxu0 %v3841
      %3910 = vmatprep.subr.mxu0 %v3840
      %3911 = vmatpush1.msra.mxu0 %v3839
      %3912 = vmatprep.subr.mxu0 %v3838
      %3913 = vmatpush1.msra.mxu0 %v3837
      %3914 = vmatprep.subr.mxu0 %v3836
      %3915 = vmatpush1.msra.mxu0 %v3835
      %3916 = vmatprep.subr.mxu0 0.0
      %3917 = vmatpush2.msra.mxu0 0.0
      %3918 = vmatprep.subr.mxu0 0.0
      %3919 = vmatpush2.msra.mxu0 0.0
      %3920 = vmatprep.subr.mxu0 0.0
      %3921 = vmatpush2.msra.mxu0 0.0
      %3922 = vmatprep.subr.mxu0 0.0
      %3923 = vmatpush2.msra.mxu0 0.0
      %3924 = vmatprep.subr.mxu0 0.0
      %3925 = vmatpush2.msra.mxu0 0.0
      %3926 = vmatprep.subr.mxu0 0.0
      %3927 = vmatpush2.msra.mxu0 0.0
      %3928 = vmatprep.subr.mxu0 0.0
      %3929 = vmatpush2.msra.mxu0 0.0
      %3930 = vmatprep.subr.mxu0 0.0
      %3931 = vmatpush2.msra.mxu0 0.0
      %3932 = vmatprep.subr.mxu0 0.0
      %3933 = vmatpush2.msra.mxu0 0.0
      %3934 = vmatprep.subr.mxu0 0.0
      %3935 = vmatpush2.msra.mxu0 0.0
      %3936 = vmatprep.subr.mxu0 0.0
      %3937 = vmatpush2.msra.mxu0 0.0
      %3938 = vmatprep.subr.mxu0 0.0
      %3939 = vmatpush2.msra.mxu0 0.0
      %3940 = vmatprep.subr.mxu0 0.0
      %3941 = vmatpush2.msra.mxu0 0.0
      %3942 = vmatprep.subr.mxu0 0.0
      %3943 = vmatpush2.msra.mxu0 0.0
      %3944 = vmatprep.subr.mxu0 0.0
      %3945 = vmatpush2.msra.mxu0 0.0
      %3946 = vmatprep.subr.mxu0 0.0
      %3947 = vmatpush2.msra.mxu0 0.0
      %3948 = vmatprep.mubr.f32.mxu0 0.0
      %3949 = vmatmul.mubr.f32.gmra.mxu0 %v3861
      %v3950 = vpop.f32.mrf.mxu0
      %v3951 = vadd.f32 0.0, %v3950
      %v3952 = vpop.f32.mrf.mxu0
      %v3953 = vadd.f32 0.0, %v3952
      %3954 = vmatprep.mubr.f32.mxu0 0.0
      %3955 = vmatmul.mubr.f32.gmra.mxu0 %v3864
      %v3956 = vpop.f32.mrf.mxu0
      %v3957 = vadd.f32 0.0, %v3956
      %v3958 = vpop.f32.mrf.mxu0
      %v3959 = vadd.f32 0.0, %v3958
      %3960 = vmatprep.mubr.f32.mxu0 0.0
      %3961 = vmatmul.mubr.f32.gmra.mxu0 %v3867
      %v3962 = vpop.f32.mrf.mxu0
      %v3963 = vadd.f32 0.0, %v3962
      %v3964 = vpop.f32.mrf.mxu0
      %v3965 = vadd.f32 0.0, %v3964
      %3966 = vmatprep.mubr.f32.mxu0 0.0
      %3967 = vmatmul.mubr.f32.gmra.mxu0 %v3870
      %v3968 = vpop.f32.mrf.mxu0
      %v3969 = vadd.f32 0.0, %v3968
      %v3970 = vpop.f32.mrf.mxu0
      %v3971 = vadd.f32 0.0, %v3970
      %3972 = vmatprep.mubr.f32.mxu0 0.0
      %3973 = vmatmul.mubr.f32.gmra.mxu0 %v3873
      %v3974 = vpop.f32.mrf.mxu0
      %v3975 = vadd.f32 0.0, %v3974
      %v3976 = vpop.f32.mrf.mxu0
      %v3977 = vadd.f32 0.0, %v3976
      %3978 = vmatprep.mubr.f32.mxu0 0.0
      %3979 = vmatmul.mubr.f32.gmra.mxu0 %v3876
      %v3980 = vpop.f32.mrf.mxu0
      %v3981 = vadd.f32 0.0, %v3980
      %v3982 = vpop.f32.mrf.mxu0
      %v3983 = vadd.f32 0.0, %v3982
      %3984 = vmatprep.mubr.f32.mxu0 0.0
      %3985 = vmatmul.mubr.f32.gmra.mxu0 %v3879
      %v3986 = vpop.f32.mrf.mxu0
      %v3987 = vadd.f32 0.0, %v3986
      %v3988 = vpop.f32.mrf.mxu0
      %v3989 = vadd.f32 0.0, %v3988
      %3990 = vmatprep.mubr.f32.mxu0 0.0
      %3991 = vmatmul.mubr.f32.gmra.mxu0 %v3882
      %v3992 = vpop.f32.mrf.mxu0
      %v3993 = vadd.f32 0.0, %v3992
      %v3994 = vpop.f32.mrf.mxu0
      %v3995 = vadd.f32 0.0, %v3994
      %3996 = vdwg.mxu0
      %v3997 = vadd.f32 %v3771, %v3951
      %v3998 = vadd.f32 %v3772, %v3953
      %v3999 = vadd.f32 %v3773, %v3957
      %v4000 = vadd.f32 %v3774, %v3959
      %v4001 = vadd.f32 %v3775, %v3963
      %v4002 = vadd.f32 %v3776, %v3965
      %v4003 = vadd.f32 %v3777, %v3969
      %v4004 = vadd.f32 %v3778, %v3971
      %v4005 = vadd.f32 %v3779, %v3975
      %v4006 = vadd.f32 %v3780, %v3977
      %v4007 = vadd.f32 %v3781, %v3981
      %v4008 = vadd.f32 %v3782, %v3983
      %v4009 = vadd.f32 %v3783, %v3987
      %v4010 = vadd.f32 %v3784, %v3989
      %v4011 = vadd.f32 %v3785, %v3993
      %v4012 = vadd.f32 %v3786, %v3995
      %v4013 = vmax.f32 %v3997, 0.0
      %v4014 = vmax.f32 %v3998, 0.0
      %v4015 = vmax.f32 %v3999, 0.0
      %v4016 = vmax.f32 %v4000, 0.0
      %v4017 = vmax.f32 %v4001, 0.0
      %v4018 = vmax.f32 %v4002, 0.0
      %v4019 = vmax.f32 %v4003, 0.0
      %v4020 = vmax.f32 %v4004, 0.0
      %v4021 = vmax.f32 %v4005, 0.0
      %v4022 = vmax.f32 %v4006, 0.0
      %v4023 = vmax.f32 %v4007, 0.0
      %v4024 = vmax.f32 %v4008, 0.0
      %v4025 = vmax.f32 %v4009, 0.0
      %v4026 = vmax.f32 %v4010, 0.0
      %v4027 = vmax.f32 %v4011, 0.0
      %v4028 = vmax.f32 %v4012, 0.0
      %s4029 = scalar_lea.vmem %s6, 16
      %v4030 = vld [vmem:[%s4029] sm:$0x7]
      %v4031 = vld [vmem:[%s7] sm:$0x7]
      %4033 = vset.pattern.permute.xlu0 0
      %4034 = vperm.xlu0 %4033, %v4031
      %v4035 = vpop.permute.xlu0 %4034
      %v4038 = vsel %vm2068, %v4030, 0
      %4040 = vmatprep.subr.mxu0 0.0
      %4041 = vmatpush1.msra.mxu0 0.0
      %4042 = vmatprep.subr.mxu0 0.0
      %4043 = vmatpush1.msra.mxu0 0.0
      %4044 = vmatprep.subr.mxu0 0.0
      %4045 = vmatpush1.msra.mxu0 0.0
      %4046 = vmatprep.subr.mxu0 0.0
      %4047 = vmatpush1.msra.mxu0 0.0
      %4048 = vmatprep.subr.mxu0 0.0
      %4049 = vmatpush1.msra.mxu0 0.0
      %4050 = vmatprep.subr.mxu0 0.0
      %4051 = vmatpush1.msra.mxu0 0.0
      %4052 = vmatprep.subr.mxu0 0.0
      %4053 = vmatpush1.msra.mxu0 0.0
      %4054 = vmatprep.subr.mxu0 0.0
      %4055 = vmatpush1.msra.mxu0 0.0
      %4056 = vmatprep.subr.mxu0 %v4028
      %4057 = vmatpush1.msra.mxu0 %v4027
      %4058 = vmatprep.subr.mxu0 %v4026
      %4059 = vmatpush1.msra.mxu0 %v4025
      %4060 = vmatprep.subr.mxu0 %v4024
      %4061 = vmatpush1.msra.mxu0 %v4023
      %4062 = vmatprep.subr.mxu0 %v4022
      %4063 = vmatpush1.msra.mxu0 %v4021
      %4064 = vmatprep.subr.mxu0 %v4020
      %4065 = vmatpush1.msra.mxu0 %v4019
      %4066 = vmatprep.subr.mxu0 %v4018
      %4067 = vmatpush1.msra.mxu0 %v4017
      %4068 = vmatprep.subr.mxu0 %v4016
      %4069 = vmatpush1.msra.mxu0 %v4015
      %4070 = vmatprep.subr.mxu0 %v4014
      %4071 = vmatpush1.msra.mxu0 %v4013
      %4072 = vmatprep.subr.mxu0 0.0
      %4073 = vmatpush2.msra.mxu0 0.0
      %4074 = vmatprep.subr.mxu0 0.0
      %4075 = vmatpush2.msra.mxu0 0.0
      %4076 = vmatprep.subr.mxu0 0.0
      %4077 = vmatpush2.msra.mxu0 0.0
      %4078 = vmatprep.subr.mxu0 0.0
      %4079 = vmatpush2.msra.mxu0 0.0
      %4080 = vmatprep.subr.mxu0 0.0
      %4081 = vmatpush2.msra.mxu0 0.0
      %4082 = vmatprep.subr.mxu0 0.0
      %4083 = vmatpush2.msra.mxu0 0.0
      %4084 = vmatprep.subr.mxu0 0.0
      %4085 = vmatpush2.msra.mxu0 0.0
      %4086 = vmatprep.subr.mxu0 0.0
      %4087 = vmatpush2.msra.mxu0 0.0
      %4088 = vmatprep.subr.mxu0 0.0
      %4089 = vmatpush2.msra.mxu0 0.0
      %4090 = vmatprep.subr.mxu0 0.0
      %4091 = vmatpush2.msra.mxu0 0.0
      %4092 = vmatprep.subr.mxu0 0.0
      %4093 = vmatpush2.msra.mxu0 0.0
      %4094 = vmatprep.subr.mxu0 0.0
      %4095 = vmatpush2.msra.mxu0 0.0
      %4096 = vmatprep.subr.mxu0 0.0
      %4097 = vmatpush2.msra.mxu0 0.0
      %4098 = vmatprep.subr.mxu0 0.0
      %4099 = vmatpush2.msra.mxu0 0.0
      %4100 = vmatprep.subr.mxu0 0.0
      %4101 = vmatpush2.msra.mxu0 0.0
      %4102 = vmatprep.subr.mxu0 0.0
      %4103 = vmatpush2.msra.mxu0 0.0
      %4104 = vmatprep.mubr.f32.mxu0 0.0
      %4105 = vmatmul.mubr.f32.gmra.mxu0 %v4038
      %v4106 = vpop.f32.mrf.mxu0
      %v4107 = vadd.f32 %v4035, %v4106
      %v4108 = vpop.f32.mrf.mxu0
      %v4109 = vadd.f32 %v4035, %v4108
      %4110 = vdwg.mxu0
      %4111 = vrot.lane.b32.xlu0 %v4013, 17
      %v4112 = vpop.permute.xlu0 %4111
      %4113 = vrot.lane.b32.xlu0 %v4015, 17
      %v4114 = vpop.permute.xlu0 %4113
      %4115 = vrot.lane.b32.xlu0 %v4017, 17
      %v4116 = vpop.permute.xlu0 %4115
      %4117 = vrot.lane.b32.xlu0 %v4019, 17
      %v4118 = vpop.permute.xlu0 %4117
      %4119 = vrot.lane.b32.xlu0 %v4021, 17
      %v4120 = vpop.permute.xlu0 %4119
      %4121 = vrot.lane.b32.xlu0 %v4023, 17
      %v4122 = vpop.permute.xlu0 %4121
      %4123 = vrot.lane.b32.xlu0 %v4025, 17
      %v4124 = vpop.permute.xlu0 %4123
      %4125 = vrot.lane.b32.xlu0 %v4027, 17
      %v4126 = vpop.permute.xlu0 %4125
      %4127 = vrot.lane.b32.xlu0 %v4014, 17
      %v4128 = vpop.permute.xlu0 %4127
      %4129 = vrot.lane.b32.xlu0 %v4016, 17
      %v4130 = vpop.permute.xlu0 %4129
      %4131 = vrot.lane.b32.xlu0 %v4018, 17
      %v4132 = vpop.permute.xlu0 %4131
      %4133 = vrot.lane.b32.xlu0 %v4020, 17
      %v4134 = vpop.permute.xlu0 %4133
      %4135 = vrot.lane.b32.xlu0 %v4022, 17
      %v4136 = vpop.permute.xlu0 %4135
      %4137 = vrot.lane.b32.xlu0 %v4024, 17
      %v4138 = vpop.permute.xlu0 %4137
      %4139 = vrot.lane.b32.xlu0 %v4026, 17
      %v4140 = vpop.permute.xlu0 %4139
      %4141 = vrot.lane.b32.xlu0 %v4028, 17
      %v4142 = vpop.permute.xlu0 %4141
      %v4143 = vsel %vm520, %v4112, %v4128
      %v4144 = vsel %vm520, %v4114, %v4130
      %v4145 = vsel %vm520, %v4116, %v4132
      %v4146 = vsel %vm520, %v4118, %v4134
      %v4147 = vsel %vm520, %v4120, %v4136
      %v4148 = vsel %vm520, %v4122, %v4138
      %v4149 = vsel %vm520, %v4124, %v4140
      %v4150 = vsel %vm520, %v4126, %v4142
      %v4151 = vsel %vm520, %v4128, %v4112
      %v4152 = vsel %vm520, %v4130, %v4114
      %v4153 = vsel %vm520, %v4132, %v4116
      %v4154 = vsel %vm520, %v4134, %v4118
      %v4155 = vsel %vm520, %v4136, %v4120
      %v4156 = vsel %vm520, %v4138, %v4122
      %v4157 = vsel %vm520, %v4140, %v4124
      %v4158 = vsel %vm520, %v4142, %v4126
      %v4159 = vmul.f32 %v4151, %v526
      %v4160 = vmul.f32 %v4143, %v530
      %v4161 = vmul.f32 %v4152, %v526
      %v4162 = vmul.f32 %v4144, %v530
      %v4163 = vmul.f32 %v4153, %v526
      %v4164 = vmul.f32 %v4145, %v530
      %v4165 = vmul.f32 %v4154, %v526
      %v4166 = vmul.f32 %v4146, %v530
      %v4167 = vmul.f32 %v4155, %v526
      %v4168 = vmul.f32 %v4147, %v530
      %v4169 = vmul.f32 %v4156, %v526
      %v4170 = vmul.f32 %v4148, %v530
      %v4171 = vmul.f32 %v4157, %v526
      %v4172 = vmul.f32 %v4149, %v530
      %v4173 = vmul.f32 %v4158, %v526
      %v4174 = vmul.f32 %v4150, %v530
      %v4175 = vld [vmem:[%s6] sm:$0x7]
      %v4177 = vsel %vm2068, %v4175, 0
      %4179 = vmatprep.subr.mxu0 0.0
      %4180 = vmatpush1.msra.mxu0 0.0
      %4181 = vmatprep.subr.mxu0 0.0
      %4182 = vmatpush1.msra.mxu0 0.0
      %4183 = vmatprep.subr.mxu0 0.0
      %4184 = vmatpush1.msra.mxu0 0.0
      %4185 = vmatprep.subr.mxu0 0.0
      %4186 = vmatpush1.msra.mxu0 0.0
      %4187 = vmatprep.subr.mxu0 0.0
      %4188 = vmatpush1.msra.mxu0 0.0
      %4189 = vmatprep.subr.mxu0 0.0
      %4190 = vmatpush1.msra.mxu0 0.0
      %4191 = vmatprep.subr.mxu0 0.0
      %4192 = vmatpush1.msra.mxu0 0.0
      %4193 = vmatprep.subr.mxu0 0.0
      %4194 = vmatpush1.msra.mxu0 0.0
      %4195 = vmatprep.subr.mxu0 %v4174
      %4196 = vmatpush1.msra.mxu0 %v4173
      %4197 = vmatprep.subr.mxu0 %v4172
      %4198 = vmatpush1.msra.mxu0 %v4171
      %4199 = vmatprep.subr.mxu0 %v4170
      %4200 = vmatpush1.msra.mxu0 %v4169
      %4201 = vmatprep.subr.mxu0 %v4168
      %4202 = vmatpush1.msra.mxu0 %v4167
      %4203 = vmatprep.subr.mxu0 %v4166
      %4204 = vmatpush1.msra.mxu0 %v4165
      %4205 = vmatprep.subr.mxu0 %v4164
      %4206 = vmatpush1.msra.mxu0 %v4163
      %4207 = vmatprep.subr.mxu0 %v4162
      %4208 = vmatpush1.msra.mxu0 %v4161
      %4209 = vmatprep.subr.mxu0 %v4160
      %4210 = vmatpush1.msra.mxu0 %v4159
      %4211 = vmatprep.subr.mxu0 0.0
      %4212 = vmatpush2.msra.mxu0 0.0
      %4213 = vmatprep.subr.mxu0 0.0
      %4214 = vmatpush2.msra.mxu0 0.0
      %4215 = vmatprep.subr.mxu0 0.0
      %4216 = vmatpush2.msra.mxu0 0.0
      %4217 = vmatprep.subr.mxu0 0.0
      %4218 = vmatpush2.msra.mxu0 0.0
      %4219 = vmatprep.subr.mxu0 0.0
      %4220 = vmatpush2.msra.mxu0 0.0
      %4221 = vmatprep.subr.mxu0 0.0
      %4222 = vmatpush2.msra.mxu0 0.0
      %4223 = vmatprep.subr.mxu0 0.0
      %4224 = vmatpush2.msra.mxu0 0.0
      %4225 = vmatprep.subr.mxu0 0.0
      %4226 = vmatpush2.msra.mxu0 0.0
      %4227 = vmatprep.subr.mxu0 0.0
      %4228 = vmatpush2.msra.mxu0 0.0
      %4229 = vmatprep.subr.mxu0 0.0
      %4230 = vmatpush2.msra.mxu0 0.0
      %4231 = vmatprep.subr.mxu0 0.0
      %4232 = vmatpush2.msra.mxu0 0.0
      %4233 = vmatprep.subr.mxu0 0.0
      %4234 = vmatpush2.msra.mxu0 0.0
      %4235 = vmatprep.subr.mxu0 0.0
      %4236 = vmatpush2.msra.mxu0 0.0
      %4237 = vmatprep.subr.mxu0 0.0
      %4238 = vmatpush2.msra.mxu0 0.0
      %4239 = vmatprep.subr.mxu0 0.0
      %4240 = vmatpush2.msra.mxu0 0.0
      %4241 = vmatprep.subr.mxu0 0.0
      %4242 = vmatpush2.msra.mxu0 0.0
      %4243 = vmatprep.mubr.f32.mxu0 0.0
      %4244 = vmatmul.mubr.f32.gmra.mxu0 %v4177
      %v4245 = vpop.f32.mrf.mxu0
      %v4246 = vadd.f32 0.0, %v4245
      %v4247 = vpop.f32.mrf.mxu0
      %v4248 = vadd.f32 0.0, %v4247
      %4249 = vdwg.mxu0
      %v4250 = vadd.f32 %v4107, %v4246
      %v4251 = vadd.f32 %v4109, %v4248
      %4252 = vrot.lane.b32.xlu0 %v4013, 16
      %v4253 = vpop.permute.xlu0 %4252
      %4254 = vrot.lane.b32.xlu0 %v4015, 16
      %v4255 = vpop.permute.xlu0 %4254
      %4256 = vrot.lane.b32.xlu0 %v4017, 16
      %v4257 = vpop.permute.xlu0 %4256
      %4258 = vrot.lane.b32.xlu0 %v4019, 16
      %v4259 = vpop.permute.xlu0 %4258
      %4260 = vrot.lane.b32.xlu0 %v4021, 16
      %v4261 = vpop.permute.xlu0 %4260
      %4262 = vrot.lane.b32.xlu0 %v4023, 16
      %v4263 = vpop.permute.xlu0 %4262
      %4264 = vrot.lane.b32.xlu0 %v4025, 16
      %v4265 = vpop.permute.xlu0 %4264
      %4266 = vrot.lane.b32.xlu0 %v4027, 16
      %v4267 = vpop.permute.xlu0 %4266
      %4268 = vrot.lane.b32.xlu0 %v4014, 16
      %v4269 = vpop.permute.xlu0 %4268
      %4270 = vrot.lane.b32.xlu0 %v4016, 16
      %v4271 = vpop.permute.xlu0 %4270
      %4272 = vrot.lane.b32.xlu0 %v4018, 16
      %v4273 = vpop.permute.xlu0 %4272
      %4274 = vrot.lane.b32.xlu0 %v4020, 16
      %v4275 = vpop.permute.xlu0 %4274
      %4276 = vrot.lane.b32.xlu0 %v4022, 16
      %v4277 = vpop.permute.xlu0 %4276
      %4278 = vrot.lane.b32.xlu0 %v4024, 16
      %v4279 = vpop.permute.xlu0 %4278
      %4280 = vrot.lane.b32.xlu0 %v4026, 16
      %v4281 = vpop.permute.xlu0 %4280
      %4282 = vrot.lane.b32.xlu0 %v4028, 16
      %v4283 = vpop.permute.xlu0 %4282
      %v4284 = vsel %vm704, %v4253, %v4269
      %v4285 = vsel %vm704, %v4255, %v4271
      %v4286 = vsel %vm704, %v4257, %v4273
      %v4287 = vsel %vm704, %v4259, %v4275
      %v4288 = vsel %vm704, %v4261, %v4277
      %v4289 = vsel %vm704, %v4263, %v4279
      %v4290 = vsel %vm704, %v4265, %v4281
      %v4291 = vsel %vm704, %v4267, %v4283
      %v4292 = vsel %vm704, %v4269, %v4253
      %v4293 = vsel %vm704, %v4271, %v4255
      %v4294 = vsel %vm704, %v4273, %v4257
      %v4295 = vsel %vm704, %v4275, %v4259
      %v4296 = vsel %vm704, %v4277, %v4261
      %v4297 = vsel %vm704, %v4279, %v4263
      %v4298 = vsel %vm704, %v4281, %v4265
      %v4299 = vsel %vm704, %v4283, %v4267
      %v4300 = vmul.f32 %v4292, %v710
      %v4301 = vmul.f32 %v4284, %v714
      %v4302 = vmul.f32 %v4293, %v710
      %v4303 = vmul.f32 %v4285, %v714
      %v4304 = vmul.f32 %v4294, %v710
      %v4305 = vmul.f32 %v4286, %v714
      %v4306 = vmul.f32 %v4295, %v710
      %v4307 = vmul.f32 %v4287, %v714
      %v4308 = vmul.f32 %v4296, %v710
      %v4309 = vmul.f32 %v4288, %v714
      %v4310 = vmul.f32 %v4297, %v710
      %v4311 = vmul.f32 %v4289, %v714
      %v4312 = vmul.f32 %v4298, %v710
      %v4313 = vmul.f32 %v4290, %v714
      %v4314 = vmul.f32 %v4299, %v710
      %v4315 = vmul.f32 %v4291, %v714
      %s4316 = scalar_lea.vmem %s6, 4
      %v4317 = vld [vmem:[%s4316] sm:$0x7]
      %v4319 = vsel %vm2068, %v4317, 0
      %4321 = vmatprep.subr.mxu0 0.0
      %4322 = vmatpush1.msra.mxu0 0.0
      %4323 = vmatprep.subr.mxu0 0.0
      %4324 = vmatpush1.msra.mxu0 0.0
      %4325 = vmatprep.subr.mxu0 0.0
      %4326 = vmatpush1.msra.mxu0 0.0
      %4327 = vmatprep.subr.mxu0 0.0
      %4328 = vmatpush1.msra.mxu0 0.0
      %4329 = vmatprep.subr.mxu0 0.0
      %4330 = vmatpush1.msra.mxu0 0.0
      %4331 = vmatprep.subr.mxu0 0.0
      %4332 = vmatpush1.msra.mxu0 0.0
      %4333 = vmatprep.subr.mxu0 0.0
      %4334 = vmatpush1.msra.mxu0 0.0
      %4335 = vmatprep.subr.mxu0 0.0
      %4336 = vmatpush1.msra.mxu0 0.0
      %4337 = vmatprep.subr.mxu0 %v4315
      %4338 = vmatpush1.msra.mxu0 %v4314
      %4339 = vmatprep.subr.mxu0 %v4313
      %4340 = vmatpush1.msra.mxu0 %v4312
      %4341 = vmatprep.subr.mxu0 %v4311
      %4342 = vmatpush1.msra.mxu0 %v4310
      %4343 = vmatprep.subr.mxu0 %v4309
      %4344 = vmatpush1.msra.mxu0 %v4308
      %4345 = vmatprep.subr.mxu0 %v4307
      %4346 = vmatpush1.msra.mxu0 %v4306
      %4347 = vmatprep.subr.mxu0 %v4305
      %4348 = vmatpush1.msra.mxu0 %v4304
      %4349 = vmatprep.subr.mxu0 %v4303
      %4350 = vmatpush1.msra.mxu0 %v4302
      %4351 = vmatprep.subr.mxu0 %v4301
      %4352 = vmatpush1.msra.mxu0 %v4300
      %4353 = vmatprep.subr.mxu0 0.0
      %4354 = vmatpush2.msra.mxu0 0.0
      %4355 = vmatprep.subr.mxu0 0.0
      %4356 = vmatpush2.msra.mxu0 0.0
      %4357 = vmatprep.subr.mxu0 0.0
      %4358 = vmatpush2.msra.mxu0 0.0
      %4359 = vmatprep.subr.mxu0 0.0
      %4360 = vmatpush2.msra.mxu0 0.0
      %4361 = vmatprep.subr.mxu0 0.0
      %4362 = vmatpush2.msra.mxu0 0.0
      %4363 = vmatprep.subr.mxu0 0.0
      %4364 = vmatpush2.msra.mxu0 0.0
      %4365 = vmatprep.subr.mxu0 0.0
      %4366 = vmatpush2.msra.mxu0 0.0
      %4367 = vmatprep.subr.mxu0 0.0
      %4368 = vmatpush2.msra.mxu0 0.0
      %4369 = vmatprep.subr.mxu0 0.0
      %4370 = vmatpush2.msra.mxu0 0.0
      %4371 = vmatprep.subr.mxu0 0.0
      %4372 = vmatpush2.msra.mxu0 0.0
      %4373 = vmatprep.subr.mxu0 0.0
      %4374 = vmatpush2.msra.mxu0 0.0
      %4375 = vmatprep.subr.mxu0 0.0
      %4376 = vmatpush2.msra.mxu0 0.0
      %4377 = vmatprep.subr.mxu0 0.0
      %4378 = vmatpush2.msra.mxu0 0.0
      %4379 = vmatprep.subr.mxu0 0.0
      %4380 = vmatpush2.msra.mxu0 0.0
      %4381 = vmatprep.subr.mxu0 0.0
      %4382 = vmatpush2.msra.mxu0 0.0
      %4383 = vmatprep.subr.mxu0 0.0
      %4384 = vmatpush2.msra.mxu0 0.0
      %4385 = vmatprep.mubr.f32.mxu0 0.0
      %4386 = vmatmul.mubr.f32.gmra.mxu0 %v4319
      %v4387 = vpop.f32.mrf.mxu0
      %v4388 = vadd.f32 0.0, %v4387
      %v4389 = vpop.f32.mrf.mxu0
      %v4390 = vadd.f32 0.0, %v4389
      %4391 = vdwg.mxu0
      %v4392 = vadd.f32 %v4250, %v4388
      %v4393 = vadd.f32 %v4251, %v4390
      %4394 = vrot.lane.b32.xlu0 %v4013, 15
      %v4395 = vpop.permute.xlu0 %4394
      %4396 = vrot.lane.b32.xlu0 %v4015, 15
      %v4397 = vpop.permute.xlu0 %4396
      %4398 = vrot.lane.b32.xlu0 %v4017, 15
      %v4399 = vpop.permute.xlu0 %4398
      %4400 = vrot.lane.b32.xlu0 %v4019, 15
      %v4401 = vpop.permute.xlu0 %4400
      %4402 = vrot.lane.b32.xlu0 %v4021, 15
      %v4403 = vpop.permute.xlu0 %4402
      %4404 = vrot.lane.b32.xlu0 %v4023, 15
      %v4405 = vpop.permute.xlu0 %4404
      %4406 = vrot.lane.b32.xlu0 %v4025, 15
      %v4407 = vpop.permute.xlu0 %4406
      %4408 = vrot.lane.b32.xlu0 %v4027, 15
      %v4409 = vpop.permute.xlu0 %4408
      %4410 = vrot.lane.b32.xlu0 %v4014, 15
      %v4411 = vpop.permute.xlu0 %4410
      %4412 = vrot.lane.b32.xlu0 %v4016, 15
      %v4413 = vpop.permute.xlu0 %4412
      %4414 = vrot.lane.b32.xlu0 %v4018, 15
      %v4415 = vpop.permute.xlu0 %4414
      %4416 = vrot.lane.b32.xlu0 %v4020, 15
      %v4417 = vpop.permute.xlu0 %4416
      %4418 = vrot.lane.b32.xlu0 %v4022, 15
      %v4419 = vpop.permute.xlu0 %4418
      %4420 = vrot.lane.b32.xlu0 %v4024, 15
      %v4421 = vpop.permute.xlu0 %4420
      %4422 = vrot.lane.b32.xlu0 %v4026, 15
      %v4423 = vpop.permute.xlu0 %4422
      %4424 = vrot.lane.b32.xlu0 %v4028, 15
      %v4425 = vpop.permute.xlu0 %4424
      %v4426 = vsel %vm889, %v4395, %v4411
      %v4427 = vsel %vm889, %v4397, %v4413
      %v4428 = vsel %vm889, %v4399, %v4415
      %v4429 = vsel %vm889, %v4401, %v4417
      %v4430 = vsel %vm889, %v4403, %v4419
      %v4431 = vsel %vm889, %v4405, %v4421
      %v4432 = vsel %vm889, %v4407, %v4423
      %v4433 = vsel %vm889, %v4409, %v4425
      %v4434 = vsel %vm889, %v4411, %v4395
      %v4435 = vsel %vm889, %v4413, %v4397
      %v4436 = vsel %vm889, %v4415, %v4399
      %v4437 = vsel %vm889, %v4417, %v4401
      %v4438 = vsel %vm889, %v4419, %v4403
      %v4439 = vsel %vm889, %v4421, %v4405
      %v4440 = vsel %vm889, %v4423, %v4407
      %v4441 = vsel %vm889, %v4425, %v4409
      %v4442 = vmul.f32 %v4434, %v895
      %v4443 = vmul.f32 %v4426, %v899
      %v4444 = vmul.f32 %v4435, %v895
      %v4445 = vmul.f32 %v4427, %v899
      %v4446 = vmul.f32 %v4436, %v895
      %v4447 = vmul.f32 %v4428, %v899
      %v4448 = vmul.f32 %v4437, %v895
      %v4449 = vmul.f32 %v4429, %v899
      %v4450 = vmul.f32 %v4438, %v895
      %v4451 = vmul.f32 %v4430, %v899
      %v4452 = vmul.f32 %v4439, %v895
      %v4453 = vmul.f32 %v4431, %v899
      %v4454 = vmul.f32 %v4440, %v895
      %v4455 = vmul.f32 %v4432, %v899
      %v4456 = vmul.f32 %v4441, %v895
      %v4457 = vmul.f32 %v4433, %v899
      %s4458 = scalar_lea.vmem %s6, 8
      %v4459 = vld [vmem:[%s4458] sm:$0x7]
      %v4461 = vsel %vm2068, %v4459, 0
      %4463 = vmatprep.subr.mxu0 0.0
      %4464 = vmatpush1.msra.mxu0 0.0
      %4465 = vmatprep.subr.mxu0 0.0
      %4466 = vmatpush1.msra.mxu0 0.0
      %4467 = vmatprep.subr.mxu0 0.0
      %4468 = vmatpush1.msra.mxu0 0.0
      %4469 = vmatprep.subr.mxu0 0.0
      %4470 = vmatpush1.msra.mxu0 0.0
      %4471 = vmatprep.subr.mxu0 0.0
      %4472 = vmatpush1.msra.mxu0 0.0
      %4473 = vmatprep.subr.mxu0 0.0
      %4474 = vmatpush1.msra.mxu0 0.0
      %4475 = vmatprep.subr.mxu0 0.0
      %4476 = vmatpush1.msra.mxu0 0.0
      %4477 = vmatprep.subr.mxu0 0.0
      %4478 = vmatpush1.msra.mxu0 0.0
      %4479 = vmatprep.subr.mxu0 %v4457
      %4480 = vmatpush1.msra.mxu0 %v4456
      %4481 = vmatprep.subr.mxu0 %v4455
      %4482 = vmatpush1.msra.mxu0 %v4454
      %4483 = vmatprep.subr.mxu0 %v4453
      %4484 = vmatpush1.msra.mxu0 %v4452
      %4485 = vmatprep.subr.mxu0 %v4451
      %4486 = vmatpush1.msra.mxu0 %v4450
      %4487 = vmatprep.subr.mxu0 %v4449
      %4488 = vmatpush1.msra.mxu0 %v4448
      %4489 = vmatprep.subr.mxu0 %v4447
      %4490 = vmatpush1.msra.mxu0 %v4446
      %4491 = vmatprep.subr.mxu0 %v4445
      %4492 = vmatpush1.msra.mxu0 %v4444
      %4493 = vmatprep.subr.mxu0 %v4443
      %4494 = vmatpush1.msra.mxu0 %v4442
      %4495 = vmatprep.subr.mxu0 0.0
      %4496 = vmatpush2.msra.mxu0 0.0
      %4497 = vmatprep.subr.mxu0 0.0
      %4498 = vmatpush2.msra.mxu0 0.0
      %4499 = vmatprep.subr.mxu0 0.0
      %4500 = vmatpush2.msra.mxu0 0.0
      %4501 = vmatprep.subr.mxu0 0.0
      %4502 = vmatpush2.msra.mxu0 0.0
      %4503 = vmatprep.subr.mxu0 0.0
      %4504 = vmatpush2.msra.mxu0 0.0
      %4505 = vmatprep.subr.mxu0 0.0
      %4506 = vmatpush2.msra.mxu0 0.0
      %4507 = vmatprep.subr.mxu0 0.0
      %4508 = vmatpush2.msra.mxu0 0.0
      %4509 = vmatprep.subr.mxu0 0.0
      %4510 = vmatpush2.msra.mxu0 0.0
      %4511 = vmatprep.subr.mxu0 0.0
      %4512 = vmatpush2.msra.mxu0 0.0
      %4513 = vmatprep.subr.mxu0 0.0
      %4514 = vmatpush2.msra.mxu0 0.0
      %4515 = vmatprep.subr.mxu0 0.0
      %4516 = vmatpush2.msra.mxu0 0.0
      %4517 = vmatprep.subr.mxu0 0.0
      %4518 = vmatpush2.msra.mxu0 0.0
      %4519 = vmatprep.subr.mxu0 0.0
      %4520 = vmatpush2.msra.mxu0 0.0
      %4521 = vmatprep.subr.mxu0 0.0
      %4522 = vmatpush2.msra.mxu0 0.0
      %4523 = vmatprep.subr.mxu0 0.0
      %4524 = vmatpush2.msra.mxu0 0.0
      %4525 = vmatprep.subr.mxu0 0.0
      %4526 = vmatpush2.msra.mxu0 0.0
      %4527 = vmatprep.mubr.f32.mxu0 0.0
      %4528 = vmatmul.mubr.f32.gmra.mxu0 %v4461
      %v4529 = vpop.f32.mrf.mxu0
      %v4530 = vadd.f32 0.0, %v4529
      %v4531 = vpop.f32.mrf.mxu0
      %v4532 = vadd.f32 0.0, %v4531
      %4533 = vdwg.mxu0
      %v4534 = vadd.f32 %v4392, %v4530
      %v4535 = vadd.f32 %v4393, %v4532
      %4536 = vrot.lane.b32.xlu0 %v4013, 1
      %v4537 = vpop.permute.xlu0 %4536
      %4538 = vrot.lane.b32.xlu0 %v4015, 1
      %v4539 = vpop.permute.xlu0 %4538
      %4540 = vrot.lane.b32.xlu0 %v4017, 1
      %v4541 = vpop.permute.xlu0 %4540
      %4542 = vrot.lane.b32.xlu0 %v4019, 1
      %v4543 = vpop.permute.xlu0 %4542
      %4544 = vrot.lane.b32.xlu0 %v4021, 1
      %v4545 = vpop.permute.xlu0 %4544
      %4546 = vrot.lane.b32.xlu0 %v4023, 1
      %v4547 = vpop.permute.xlu0 %4546
      %4548 = vrot.lane.b32.xlu0 %v4025, 1
      %v4549 = vpop.permute.xlu0 %4548
      %4550 = vrot.lane.b32.xlu0 %v4027, 1
      %v4551 = vpop.permute.xlu0 %4550
      %4552 = vrot.lane.b32.xlu0 %v4014, 1
      %v4553 = vpop.permute.xlu0 %4552
      %4554 = vrot.lane.b32.xlu0 %v4016, 1
      %v4555 = vpop.permute.xlu0 %4554
      %4556 = vrot.lane.b32.xlu0 %v4018, 1
      %v4557 = vpop.permute.xlu0 %4556
      %4558 = vrot.lane.b32.xlu0 %v4020, 1
      %v4559 = vpop.permute.xlu0 %4558
      %4560 = vrot.lane.b32.xlu0 %v4022, 1
      %v4561 = vpop.permute.xlu0 %4560
      %4562 = vrot.lane.b32.xlu0 %v4024, 1
      %v4563 = vpop.permute.xlu0 %4562
      %4564 = vrot.lane.b32.xlu0 %v4026, 1
      %v4565 = vpop.permute.xlu0 %4564
      %4566 = vrot.lane.b32.xlu0 %v4028, 1
      %v4567 = vpop.permute.xlu0 %4566
      %v4568 = vsel %vm1074, %v4537, %v4553
      %v4569 = vsel %vm1074, %v4539, %v4555
      %v4570 = vsel %vm1074, %v4541, %v4557
      %v4571 = vsel %vm1074, %v4543, %v4559
      %v4572 = vsel %vm1074, %v4545, %v4561
      %v4573 = vsel %vm1074, %v4547, %v4563
      %v4574 = vsel %vm1074, %v4549, %v4565
      %v4575 = vsel %vm1074, %v4551, %v4567
      %v4576 = vsel %vm1074, %v4553, %v4537
      %v4577 = vsel %vm1074, %v4555, %v4539
      %v4578 = vsel %vm1074, %v4557, %v4541
      %v4579 = vsel %vm1074, %v4559, %v4543
      %v4580 = vsel %vm1074, %v4561, %v4545
      %v4581 = vsel %vm1074, %v4563, %v4547
      %v4582 = vsel %vm1074, %v4565, %v4549
      %v4583 = vsel %vm1074, %v4567, %v4551
      %v4584 = vmul.f32 %v4576, %v1080
      %v4585 = vmul.f32 %v4568, %v1084
      %v4586 = vmul.f32 %v4577, %v1080
      %v4587 = vmul.f32 %v4569, %v1084
      %v4588 = vmul.f32 %v4578, %v1080
      %v4589 = vmul.f32 %v4570, %v1084
      %v4590 = vmul.f32 %v4579, %v1080
      %v4591 = vmul.f32 %v4571, %v1084
      %v4592 = vmul.f32 %v4580, %v1080
      %v4593 = vmul.f32 %v4572, %v1084
      %v4594 = vmul.f32 %v4581, %v1080
      %v4595 = vmul.f32 %v4573, %v1084
      %v4596 = vmul.f32 %v4582, %v1080
      %v4597 = vmul.f32 %v4574, %v1084
      %v4598 = vmul.f32 %v4583, %v1080
      %v4599 = vmul.f32 %v4575, %v1084
      %s4600 = scalar_lea.vmem %s6, 12
      %v4601 = vld [vmem:[%s4600] sm:$0x7]
      %v4603 = vsel %vm2068, %v4601, 0
      %4605 = vmatprep.subr.mxu0 0.0
      %4606 = vmatpush1.msra.mxu0 0.0
      %4607 = vmatprep.subr.mxu0 0.0
      %4608 = vmatpush1.msra.mxu0 0.0
      %4609 = vmatprep.subr.mxu0 0.0
      %4610 = vmatpush1.msra.mxu0 0.0
      %4611 = vmatprep.subr.mxu0 0.0
      %4612 = vmatpush1.msra.mxu0 0.0
      %4613 = vmatprep.subr.mxu0 0.0
      %4614 = vmatpush1.msra.mxu0 0.0
      %4615 = vmatprep.subr.mxu0 0.0
      %4616 = vmatpush1.msra.mxu0 0.0
      %4617 = vmatprep.subr.mxu0 0.0
      %4618 = vmatpush1.msra.mxu0 0.0
      %4619 = vmatprep.subr.mxu0 0.0
      %4620 = vmatpush1.msra.mxu0 0.0
      %4621 = vmatprep.subr.mxu0 %v4599
      %4622 = vmatpush1.msra.mxu0 %v4598
      %4623 = vmatprep.subr.mxu0 %v4597
      %4624 = vmatpush1.msra.mxu0 %v4596
      %4625 = vmatprep.subr.mxu0 %v4595
      %4626 = vmatpush1.msra.mxu0 %v4594
      %4627 = vmatprep.subr.mxu0 %v4593
      %4628 = vmatpush1.msra.mxu0 %v4592
      %4629 = vmatprep.subr.mxu0 %v4591
      %4630 = vmatpush1.msra.mxu0 %v4590
      %4631 = vmatprep.subr.mxu0 %v4589
      %4632 = vmatpush1.msra.mxu0 %v4588
      %4633 = vmatprep.subr.mxu0 %v4587
      %4634 = vmatpush1.msra.mxu0 %v4586
      %4635 = vmatprep.subr.mxu0 %v4585
      %4636 = vmatpush1.msra.mxu0 %v4584
      %4637 = vmatprep.subr.mxu0 0.0
      %4638 = vmatpush2.msra.mxu0 0.0
      %4639 = vmatprep.subr.mxu0 0.0
      %4640 = vmatpush2.msra.mxu0 0.0
      %4641 = vmatprep.subr.mxu0 0.0
      %4642 = vmatpush2.msra.mxu0 0.0
      %4643 = vmatprep.subr.mxu0 0.0
      %4644 = vmatpush2.msra.mxu0 0.0
      %4645 = vmatprep.subr.mxu0 0.0
      %4646 = vmatpush2.msra.mxu0 0.0
      %4647 = vmatprep.subr.mxu0 0.0
      %4648 = vmatpush2.msra.mxu0 0.0
      %4649 = vmatprep.subr.mxu0 0.0
      %4650 = vmatpush2.msra.mxu0 0.0
      %4651 = vmatprep.subr.mxu0 0.0
      %4652 = vmatpush2.msra.mxu0 0.0
      %4653 = vmatprep.subr.mxu0 0.0
      %4654 = vmatpush2.msra.mxu0 0.0
      %4655 = vmatprep.subr.mxu0 0.0
      %4656 = vmatpush2.msra.mxu0 0.0
      %4657 = vmatprep.subr.mxu0 0.0
      %4658 = vmatpush2.msra.mxu0 0.0
      %4659 = vmatprep.subr.mxu0 0.0
      %4660 = vmatpush2.msra.mxu0 0.0
      %4661 = vmatprep.subr.mxu0 0.0
      %4662 = vmatpush2.msra.mxu0 0.0
      %4663 = vmatprep.subr.mxu0 0.0
      %4664 = vmatpush2.msra.mxu0 0.0
      %4665 = vmatprep.subr.mxu0 0.0
      %4666 = vmatpush2.msra.mxu0 0.0
      %4667 = vmatprep.subr.mxu0 0.0
      %4668 = vmatpush2.msra.mxu0 0.0
      %4669 = vmatprep.mubr.f32.mxu0 0.0
      %4670 = vmatmul.mubr.f32.gmra.mxu0 %v4603
      %v4671 = vpop.f32.mrf.mxu0
      %v4672 = vadd.f32 0.0, %v4671
      %v4673 = vpop.f32.mrf.mxu0
      %v4674 = vadd.f32 0.0, %v4673
      %4675 = vdwg.mxu0
      %v4676 = vadd.f32 %v4534, %v4672
      %v4677 = vadd.f32 %v4535, %v4674
      %4678 = vrot.lane.b32.xlu0 %v4013, 127
      %v4679 = vpop.permute.xlu0 %4678
      %4680 = vrot.lane.b32.xlu0 %v4015, 127
      %v4681 = vpop.permute.xlu0 %4680
      %4682 = vrot.lane.b32.xlu0 %v4017, 127
      %v4683 = vpop.permute.xlu0 %4682
      %4684 = vrot.lane.b32.xlu0 %v4019, 127
      %v4685 = vpop.permute.xlu0 %4684
      %4686 = vrot.lane.b32.xlu0 %v4021, 127
      %v4687 = vpop.permute.xlu0 %4686
      %4688 = vrot.lane.b32.xlu0 %v4023, 127
      %v4689 = vpop.permute.xlu0 %4688
      %4690 = vrot.lane.b32.xlu0 %v4025, 127
      %v4691 = vpop.permute.xlu0 %4690
      %4692 = vrot.lane.b32.xlu0 %v4027, 127
      %v4693 = vpop.permute.xlu0 %4692
      %4694 = vrot.lane.b32.xlu0 %v4014, 127
      %v4695 = vpop.permute.xlu0 %4694
      %4696 = vrot.lane.b32.xlu0 %v4016, 127
      %v4697 = vpop.permute.xlu0 %4696
      %4698 = vrot.lane.b32.xlu0 %v4018, 127
      %v4699 = vpop.permute.xlu0 %4698
      %4700 = vrot.lane.b32.xlu0 %v4020, 127
      %v4701 = vpop.permute.xlu0 %4700
      %4702 = vrot.lane.b32.xlu0 %v4022, 127
      %v4703 = vpop.permute.xlu0 %4702
      %4704 = vrot.lane.b32.xlu0 %v4024, 127
      %v4705 = vpop.permute.xlu0 %4704
      %4706 = vrot.lane.b32.xlu0 %v4026, 127
      %v4707 = vpop.permute.xlu0 %4706
      %4708 = vrot.lane.b32.xlu0 %v4028, 127
      %v4709 = vpop.permute.xlu0 %4708
      %v4710 = vsel %vm1259, %v4679, %v4695
      %v4711 = vsel %vm1259, %v4681, %v4697
      %v4712 = vsel %vm1259, %v4683, %v4699
      %v4713 = vsel %vm1259, %v4685, %v4701
      %v4714 = vsel %vm1259, %v4687, %v4703
      %v4715 = vsel %vm1259, %v4689, %v4705
      %v4716 = vsel %vm1259, %v4691, %v4707
      %v4717 = vsel %vm1259, %v4693, %v4709
      %v4718 = vsel %vm1259, %v4695, %v4679
      %v4719 = vsel %vm1259, %v4697, %v4681
      %v4720 = vsel %vm1259, %v4699, %v4683
      %v4721 = vsel %vm1259, %v4701, %v4685
      %v4722 = vsel %vm1259, %v4703, %v4687
      %v4723 = vsel %vm1259, %v4705, %v4689
      %v4724 = vsel %vm1259, %v4707, %v4691
      %v4725 = vsel %vm1259, %v4709, %v4693
      %v4726 = vmul.f32 %v4710, %v1265
      %v4727 = vmul.f32 %v4718, %v1269
      %v4728 = vmul.f32 %v4711, %v1265
      %v4729 = vmul.f32 %v4719, %v1269
      %v4730 = vmul.f32 %v4712, %v1265
      %v4731 = vmul.f32 %v4720, %v1269
      %v4732 = vmul.f32 %v4713, %v1265
      %v4733 = vmul.f32 %v4721, %v1269
      %v4734 = vmul.f32 %v4714, %v1265
      %v4735 = vmul.f32 %v4722, %v1269
      %v4736 = vmul.f32 %v4715, %v1265
      %v4737 = vmul.f32 %v4723, %v1269
      %v4738 = vmul.f32 %v4716, %v1265
      %v4739 = vmul.f32 %v4724, %v1269
      %v4740 = vmul.f32 %v4717, %v1265
      %v4741 = vmul.f32 %v4725, %v1269
      %s4742 = scalar_lea.vmem %s6, 20
      %v4743 = vld [vmem:[%s4742] sm:$0x7]
      %v4745 = vsel %vm2068, %v4743, 0
      %4747 = vmatprep.subr.mxu0 0.0
      %4748 = vmatpush1.msra.mxu0 0.0
      %4749 = vmatprep.subr.mxu0 0.0
      %4750 = vmatpush1.msra.mxu0 0.0
      %4751 = vmatprep.subr.mxu0 0.0
      %4752 = vmatpush1.msra.mxu0 0.0
      %4753 = vmatprep.subr.mxu0 0.0
      %4754 = vmatpush1.msra.mxu0 0.0
      %4755 = vmatprep.subr.mxu0 0.0
      %4756 = vmatpush1.msra.mxu0 0.0
      %4757 = vmatprep.subr.mxu0 0.0
      %4758 = vmatpush1.msra.mxu0 0.0
      %4759 = vmatprep.subr.mxu0 0.0
      %4760 = vmatpush1.msra.mxu0 0.0
      %4761 = vmatprep.subr.mxu0 0.0
      %4762 = vmatpush1.msra.mxu0 0.0
      %4763 = vmatprep.subr.mxu0 %v4741
      %4764 = vmatpush1.msra.mxu0 %v4740
      %4765 = vmatprep.subr.mxu0 %v4739
      %4766 = vmatpush1.msra.mxu0 %v4738
      %4767 = vmatprep.subr.mxu0 %v4737
      %4768 = vmatpush1.msra.mxu0 %v4736
      %4769 = vmatprep.subr.mxu0 %v4735
      %4770 = vmatpush1.msra.mxu0 %v4734
      %4771 = vmatprep.subr.mxu0 %v4733
      %4772 = vmatpush1.msra.mxu0 %v4732
      %4773 = vmatprep.subr.mxu0 %v4731
      %4774 = vmatpush1.msra.mxu0 %v4730
      %4775 = vmatprep.subr.mxu0 %v4729
      %4776 = vmatpush1.msra.mxu0 %v4728
      %4777 = vmatprep.subr.mxu0 %v4727
      %4778 = vmatpush1.msra.mxu0 %v4726
      %4779 = vmatprep.subr.mxu0 0.0
      %4780 = vmatpush2.msra.mxu0 0.0
      %4781 = vmatprep.subr.mxu0 0.0
      %4782 = vmatpush2.msra.mxu0 0.0
      %4783 = vmatprep.subr.mxu0 0.0
      %4784 = vmatpush2.msra.mxu0 0.0
      %4785 = vmatprep.subr.mxu0 0.0
      %4786 = vmatpush2.msra.mxu0 0.0
      %4787 = vmatprep.subr.mxu0 0.0
      %4788 = vmatpush2.msra.mxu0 0.0
      %4789 = vmatprep.subr.mxu0 0.0
      %4790 = vmatpush2.msra.mxu0 0.0
      %4791 = vmatprep.subr.mxu0 0.0
      %4792 = vmatpush2.msra.mxu0 0.0
      %4793 = vmatprep.subr.mxu0 0.0
      %4794 = vmatpush2.msra.mxu0 0.0
      %4795 = vmatprep.subr.mxu0 0.0
      %4796 = vmatpush2.msra.mxu0 0.0
      %4797 = vmatprep.subr.mxu0 0.0
      %4798 = vmatpush2.msra.mxu0 0.0
      %4799 = vmatprep.subr.mxu0 0.0
      %4800 = vmatpush2.msra.mxu0 0.0
      %4801 = vmatprep.subr.mxu0 0.0
      %4802 = vmatpush2.msra.mxu0 0.0
      %4803 = vmatprep.subr.mxu0 0.0
      %4804 = vmatpush2.msra.mxu0 0.0
      %4805 = vmatprep.subr.mxu0 0.0
      %4806 = vmatpush2.msra.mxu0 0.0
      %4807 = vmatprep.subr.mxu0 0.0
      %4808 = vmatpush2.msra.mxu0 0.0
      %4809 = vmatprep.subr.mxu0 0.0
      %4810 = vmatpush2.msra.mxu0 0.0
      %4811 = vmatprep.mubr.f32.mxu0 0.0
      %4812 = vmatmul.mubr.f32.gmra.mxu0 %v4745
      %v4813 = vpop.f32.mrf.mxu0
      %v4814 = vadd.f32 0.0, %v4813
      %v4815 = vpop.f32.mrf.mxu0
      %v4816 = vadd.f32 0.0, %v4815
      %4817 = vdwg.mxu0
      %v4818 = vadd.f32 %v4676, %v4814
      %v4819 = vadd.f32 %v4677, %v4816
      %4820 = vrot.lane.b32.xlu0 %v4013, 113
      %v4821 = vpop.permute.xlu0 %4820
      %4822 = vrot.lane.b32.xlu0 %v4015, 113
      %v4823 = vpop.permute.xlu0 %4822
      %4824 = vrot.lane.b32.xlu0 %v4017, 113
      %v4825 = vpop.permute.xlu0 %4824
      %4826 = vrot.lane.b32.xlu0 %v4019, 113
      %v4827 = vpop.permute.xlu0 %4826
      %4828 = vrot.lane.b32.xlu0 %v4021, 113
      %v4829 = vpop.permute.xlu0 %4828
      %4830 = vrot.lane.b32.xlu0 %v4023, 113
      %v4831 = vpop.permute.xlu0 %4830
      %4832 = vrot.lane.b32.xlu0 %v4025, 113
      %v4833 = vpop.permute.xlu0 %4832
      %4834 = vrot.lane.b32.xlu0 %v4027, 113
      %v4835 = vpop.permute.xlu0 %4834
      %4836 = vrot.lane.b32.xlu0 %v4014, 113
      %v4837 = vpop.permute.xlu0 %4836
      %4838 = vrot.lane.b32.xlu0 %v4016, 113
      %v4839 = vpop.permute.xlu0 %4838
      %4840 = vrot.lane.b32.xlu0 %v4018, 113
      %v4841 = vpop.permute.xlu0 %4840
      %4842 = vrot.lane.b32.xlu0 %v4020, 113
      %v4843 = vpop.permute.xlu0 %4842
      %4844 = vrot.lane.b32.xlu0 %v4022, 113
      %v4845 = vpop.permute.xlu0 %4844
      %4846 = vrot.lane.b32.xlu0 %v4024, 113
      %v4847 = vpop.permute.xlu0 %4846
      %4848 = vrot.lane.b32.xlu0 %v4026, 113
      %v4849 = vpop.permute.xlu0 %4848
      %4850 = vrot.lane.b32.xlu0 %v4028, 113
      %v4851 = vpop.permute.xlu0 %4850
      %v4852 = vsel %vm1444, %v4821, %v4837
      %v4853 = vsel %vm1444, %v4823, %v4839
      %v4854 = vsel %vm1444, %v4825, %v4841
      %v4855 = vsel %vm1444, %v4827, %v4843
      %v4856 = vsel %vm1444, %v4829, %v4845
      %v4857 = vsel %vm1444, %v4831, %v4847
      %v4858 = vsel %vm1444, %v4833, %v4849
      %v4859 = vsel %vm1444, %v4835, %v4851
      %v4860 = vsel %vm1444, %v4837, %v4821
      %v4861 = vsel %vm1444, %v4839, %v4823
      %v4862 = vsel %vm1444, %v4841, %v4825
      %v4863 = vsel %vm1444, %v4843, %v4827
      %v4864 = vsel %vm1444, %v4845, %v4829
      %v4865 = vsel %vm1444, %v4847, %v4831
      %v4866 = vsel %vm1444, %v4849, %v4833
      %v4867 = vsel %vm1444, %v4851, %v4835
      %v4868 = vmul.f32 %v4852, %v1450
      %v4869 = vmul.f32 %v4860, %v1454
      %v4870 = vmul.f32 %v4853, %v1450
      %v4871 = vmul.f32 %v4861, %v1454
      %v4872 = vmul.f32 %v4854, %v1450
      %v4873 = vmul.f32 %v4862, %v1454
      %v4874 = vmul.f32 %v4855, %v1450
      %v4875 = vmul.f32 %v4863, %v1454
      %v4876 = vmul.f32 %v4856, %v1450
      %v4877 = vmul.f32 %v4864, %v1454
      %v4878 = vmul.f32 %v4857, %v1450
      %v4879 = vmul.f32 %v4865, %v1454
      %v4880 = vmul.f32 %v4858, %v1450
      %v4881 = vmul.f32 %v4866, %v1454
      %v4882 = vmul.f32 %v4859, %v1450
      %v4883 = vmul.f32 %v4867, %v1454
      %s4884 = scalar_lea.vmem %s6, 24
      %v4885 = vld [vmem:[%s4884] sm:$0x7]
      %v4887 = vsel %vm2068, %v4885, 0
      %4889 = vmatprep.subr.mxu0 0.0
      %4890 = vmatpush1.msra.mxu0 0.0
      %4891 = vmatprep.subr.mxu0 0.0
      %4892 = vmatpush1.msra.mxu0 0.0
      %4893 = vmatprep.subr.mxu0 0.0
      %4894 = vmatpush1.msra.mxu0 0.0
      %4895 = vmatprep.subr.mxu0 0.0
      %4896 = vmatpush1.msra.mxu0 0.0
      %4897 = vmatprep.subr.mxu0 0.0
      %4898 = vmatpush1.msra.mxu0 0.0
      %4899 = vmatprep.subr.mxu0 0.0
      %4900 = vmatpush1.msra.mxu0 0.0
      %4901 = vmatprep.subr.mxu0 0.0
      %4902 = vmatpush1.msra.mxu0 0.0
      %4903 = vmatprep.subr.mxu0 0.0
      %4904 = vmatpush1.msra.mxu0 0.0
      %4905 = vmatprep.subr.mxu0 %v4883
      %4906 = vmatpush1.msra.mxu0 %v4882
      %4907 = vmatprep.subr.mxu0 %v4881
      %4908 = vmatpush1.msra.mxu0 %v4880
      %4909 = vmatprep.subr.mxu0 %v4879
      %4910 = vmatpush1.msra.mxu0 %v4878
      %4911 = vmatprep.subr.mxu0 %v4877
      %4912 = vmatpush1.msra.mxu0 %v4876
      %4913 = vmatprep.subr.mxu0 %v4875
      %4914 = vmatpush1.msra.mxu0 %v4874
      %4915 = vmatprep.subr.mxu0 %v4873
      %4916 = vmatpush1.msra.mxu0 %v4872
      %4917 = vmatprep.subr.mxu0 %v4871
      %4918 = vmatpush1.msra.mxu0 %v4870
      %4919 = vmatprep.subr.mxu0 %v4869
      %4920 = vmatpush1.msra.mxu0 %v4868
      %4921 = vmatprep.subr.mxu0 0.0
      %4922 = vmatpush2.msra.mxu0 0.0
      %4923 = vmatprep.subr.mxu0 0.0
      %4924 = vmatpush2.msra.mxu0 0.0
      %4925 = vmatprep.subr.mxu0 0.0
      %4926 = vmatpush2.msra.mxu0 0.0
      %4927 = vmatprep.subr.mxu0 0.0
      %4928 = vmatpush2.msra.mxu0 0.0
      %4929 = vmatprep.subr.mxu0 0.0
      %4930 = vmatpush2.msra.mxu0 0.0
      %4931 = vmatprep.subr.mxu0 0.0
      %4932 = vmatpush2.msra.mxu0 0.0
      %4933 = vmatprep.subr.mxu0 0.0
      %4934 = vmatpush2.msra.mxu0 0.0
      %4935 = vmatprep.subr.mxu0 0.0
      %4936 = vmatpush2.msra.mxu0 0.0
      %4937 = vmatprep.subr.mxu0 0.0
      %4938 = vmatpush2.msra.mxu0 0.0
      %4939 = vmatprep.subr.mxu0 0.0
      %4940 = vmatpush2.msra.mxu0 0.0
      %4941 = vmatprep.subr.mxu0 0.0
      %4942 = vmatpush2.msra.mxu0 0.0
      %4943 = vmatprep.subr.mxu0 0.0
      %4944 = vmatpush2.msra.mxu0 0.0
      %4945 = vmatprep.subr.mxu0 0.0
      %4946 = vmatpush2.msra.mxu0 0.0
      %4947 = vmatprep.subr.mxu0 0.0
      %4948 = vmatpush2.msra.mxu0 0.0
      %4949 = vmatprep.subr.mxu0 0.0
      %4950 = vmatpush2.msra.mxu0 0.0
      %4951 = vmatprep.subr.mxu0 0.0
      %4952 = vmatpush2.msra.mxu0 0.0
      %4953 = vmatprep.mubr.f32.mxu0 0.0
      %4954 = vmatmul.mubr.f32.gmra.mxu0 %v4887
      %v4955 = vpop.f32.mrf.mxu0
      %v4956 = vadd.f32 0.0, %v4955
      %v4957 = vpop.f32.mrf.mxu0
      %v4958 = vadd.f32 0.0, %v4957
      %4959 = vdwg.mxu0
      %v4960 = vadd.f32 %v4818, %v4956
      %v4961 = vadd.f32 %v4819, %v4958
      %4962 = vrot.lane.b32.xlu0 %v4013, 112
      %v4963 = vpop.permute.xlu0 %4962
      %4964 = vrot.lane.b32.xlu0 %v4015, 112
      %v4965 = vpop.permute.xlu0 %4964
      %4966 = vrot.lane.b32.xlu0 %v4017, 112
      %v4967 = vpop.permute.xlu0 %4966
      %4968 = vrot.lane.b32.xlu0 %v4019, 112
      %v4969 = vpop.permute.xlu0 %4968
      %4970 = vrot.lane.b32.xlu0 %v4021, 112
      %v4971 = vpop.permute.xlu0 %4970
      %4972 = vrot.lane.b32.xlu0 %v4023, 112
      %v4973 = vpop.permute.xlu0 %4972
      %4974 = vrot.lane.b32.xlu0 %v4025, 112
      %v4975 = vpop.permute.xlu0 %4974
      %4976 = vrot.lane.b32.xlu0 %v4027, 112
      %v4977 = vpop.permute.xlu0 %4976
      %4978 = vrot.lane.b32.xlu0 %v4014, 112
      %v4979 = vpop.permute.xlu0 %4978
      %4980 = vrot.lane.b32.xlu0 %v4016, 112
      %v4981 = vpop.permute.xlu0 %4980
      %4982 = vrot.lane.b32.xlu0 %v4018, 112
      %v4983 = vpop.permute.xlu0 %4982
      %4984 = vrot.lane.b32.xlu0 %v4020, 112
      %v4985 = vpop.permute.xlu0 %4984
      %4986 = vrot.lane.b32.xlu0 %v4022, 112
      %v4987 = vpop.permute.xlu0 %4986
      %4988 = vrot.lane.b32.xlu0 %v4024, 112
      %v4989 = vpop.permute.xlu0 %4988
      %4990 = vrot.lane.b32.xlu0 %v4026, 112
      %v4991 = vpop.permute.xlu0 %4990
      %4992 = vrot.lane.b32.xlu0 %v4028, 112
      %v4993 = vpop.permute.xlu0 %4992
      %v4994 = vsel %vm1629, %v4963, %v4979
      %v4995 = vsel %vm1629, %v4965, %v4981
      %v4996 = vsel %vm1629, %v4967, %v4983
      %v4997 = vsel %vm1629, %v4969, %v4985
      %v4998 = vsel %vm1629, %v4971, %v4987
      %v4999 = vsel %vm1629, %v4973, %v4989
      %v5000 = vsel %vm1629, %v4975, %v4991
      %v5001 = vsel %vm1629, %v4977, %v4993
      %v5002 = vsel %vm1629, %v4979, %v4963
      %v5003 = vsel %vm1629, %v4981, %v4965
      %v5004 = vsel %vm1629, %v4983, %v4967
      %v5005 = vsel %vm1629, %v4985, %v4969
      %v5006 = vsel %vm1629, %v4987, %v4971
      %v5007 = vsel %vm1629, %v4989, %v4973
      %v5008 = vsel %vm1629, %v4991, %v4975
      %v5009 = vsel %vm1629, %v4993, %v4977
      %v5010 = vmul.f32 %v4994, %v1635
      %v5011 = vmul.f32 %v5002, %v1639
      %v5012 = vmul.f32 %v4995, %v1635
      %v5013 = vmul.f32 %v5003, %v1639
      %v5014 = vmul.f32 %v4996, %v1635
      %v5015 = vmul.f32 %v5004, %v1639
      %v5016 = vmul.f32 %v4997, %v1635
      %v5017 = vmul.f32 %v5005, %v1639
      %v5018 = vmul.f32 %v4998, %v1635
      %v5019 = vmul.f32 %v5006, %v1639
      %v5020 = vmul.f32 %v4999, %v1635
      %v5021 = vmul.f32 %v5007, %v1639
      %v5022 = vmul.f32 %v5000, %v1635
      %v5023 = vmul.f32 %v5008, %v1639
      %v5024 = vmul.f32 %v5001, %v1635
      %v5025 = vmul.f32 %v5009, %v1639
      %s5026 = scalar_lea.vmem %s6, 28
      %v5027 = vld [vmem:[%s5026] sm:$0x7]
      %v5029 = vsel %vm2068, %v5027, 0
      %5031 = vmatprep.subr.mxu0 0.0
      %5032 = vmatpush1.msra.mxu0 0.0
      %5033 = vmatprep.subr.mxu0 0.0
      %5034 = vmatpush1.msra.mxu0 0.0
      %5035 = vmatprep.subr.mxu0 0.0
      %5036 = vmatpush1.msra.mxu0 0.0
      %5037 = vmatprep.subr.mxu0 0.0
      %5038 = vmatpush1.msra.mxu0 0.0
      %5039 = vmatprep.subr.mxu0 0.0
      %5040 = vmatpush1.msra.mxu0 0.0
      %5041 = vmatprep.subr.mxu0 0.0
      %5042 = vmatpush1.msra.mxu0 0.0
      %5043 = vmatprep.subr.mxu0 0.0
      %5044 = vmatpush1.msra.mxu0 0.0
      %5045 = vmatprep.subr.mxu0 0.0
      %5046 = vmatpush1.msra.mxu0 0.0
      %5047 = vmatprep.subr.mxu0 %v5025
      %5048 = vmatpush1.msra.mxu0 %v5024
      %5049 = vmatprep.subr.mxu0 %v5023
      %5050 = vmatpush1.msra.mxu0 %v5022
      %5051 = vmatprep.subr.mxu0 %v5021
      %5052 = vmatpush1.msra.mxu0 %v5020
      %5053 = vmatprep.subr.mxu0 %v5019
      %5054 = vmatpush1.msra.mxu0 %v5018
      %5055 = vmatprep.subr.mxu0 %v5017
      %5056 = vmatpush1.msra.mxu0 %v5016
      %5057 = vmatprep.subr.mxu0 %v5015
      %5058 = vmatpush1.msra.mxu0 %v5014
      %5059 = vmatprep.subr.mxu0 %v5013
      %5060 = vmatpush1.msra.mxu0 %v5012
      %5061 = vmatprep.subr.mxu0 %v5011
      %5062 = vmatpush1.msra.mxu0 %v5010
      %5063 = vmatprep.subr.mxu0 0.0
      %5064 = vmatpush2.msra.mxu0 0.0
      %5065 = vmatprep.subr.mxu0 0.0
      %5066 = vmatpush2.msra.mxu0 0.0
      %5067 = vmatprep.subr.mxu0 0.0
      %5068 = vmatpush2.msra.mxu0 0.0
      %5069 = vmatprep.subr.mxu0 0.0
      %5070 = vmatpush2.msra.mxu0 0.0
      %5071 = vmatprep.subr.mxu0 0.0
      %5072 = vmatpush2.msra.mxu0 0.0
      %5073 = vmatprep.subr.mxu0 0.0
      %5074 = vmatpush2.msra.mxu0 0.0
      %5075 = vmatprep.subr.mxu0 0.0
      %5076 = vmatpush2.msra.mxu0 0.0
      %5077 = vmatprep.subr.mxu0 0.0
      %5078 = vmatpush2.msra.mxu0 0.0
      %5079 = vmatprep.subr.mxu0 0.0
      %5080 = vmatpush2.msra.mxu0 0.0
      %5081 = vmatprep.subr.mxu0 0.0
      %5082 = vmatpush2.msra.mxu0 0.0
      %5083 = vmatprep.subr.mxu0 0.0
      %5084 = vmatpush2.msra.mxu0 0.0
      %5085 = vmatprep.subr.mxu0 0.0
      %5086 = vmatpush2.msra.mxu0 0.0
      %5087 = vmatprep.subr.mxu0 0.0
      %5088 = vmatpush2.msra.mxu0 0.0
      %5089 = vmatprep.subr.mxu0 0.0
      %5090 = vmatpush2.msra.mxu0 0.0
      %5091 = vmatprep.subr.mxu0 0.0
      %5092 = vmatpush2.msra.mxu0 0.0
      %5093 = vmatprep.subr.mxu0 0.0
      %5094 = vmatpush2.msra.mxu0 0.0
      %5095 = vmatprep.mubr.f32.mxu0 0.0
      %5096 = vmatmul.mubr.f32.gmra.mxu0 %v5029
      %v5097 = vpop.f32.mrf.mxu0
      %v5098 = vadd.f32 0.0, %v5097
      %v5099 = vpop.f32.mrf.mxu0
      %v5100 = vadd.f32 0.0, %v5099
      %5101 = vdwg.mxu0
      %v5102 = vadd.f32 %v4960, %v5098
      %v5103 = vadd.f32 %v4961, %v5100
      %5104 = vrot.lane.b32.xlu0 %v4013, 111
      %v5105 = vpop.permute.xlu0 %5104
      %5106 = vrot.lane.b32.xlu0 %v4015, 111
      %v5107 = vpop.permute.xlu0 %5106
      %5108 = vrot.lane.b32.xlu0 %v4017, 111
      %v5109 = vpop.permute.xlu0 %5108
      %5110 = vrot.lane.b32.xlu0 %v4019, 111
      %v5111 = vpop.permute.xlu0 %5110
      %5112 = vrot.lane.b32.xlu0 %v4021, 111
      %v5113 = vpop.permute.xlu0 %5112
      %5114 = vrot.lane.b32.xlu0 %v4023, 111
      %v5115 = vpop.permute.xlu0 %5114
      %5116 = vrot.lane.b32.xlu0 %v4025, 111
      %v5117 = vpop.permute.xlu0 %5116
      %5118 = vrot.lane.b32.xlu0 %v4027, 111
      %v5119 = vpop.permute.xlu0 %5118
      %5120 = vrot.lane.b32.xlu0 %v4014, 111
      %v5121 = vpop.permute.xlu0 %5120
      %5122 = vrot.lane.b32.xlu0 %v4016, 111
      %v5123 = vpop.permute.xlu0 %5122
      %5124 = vrot.lane.b32.xlu0 %v4018, 111
      %v5125 = vpop.permute.xlu0 %5124
      %5126 = vrot.lane.b32.xlu0 %v4020, 111
      %v5127 = vpop.permute.xlu0 %5126
      %5128 = vrot.lane.b32.xlu0 %v4022, 111
      %v5129 = vpop.permute.xlu0 %5128
      %5130 = vrot.lane.b32.xlu0 %v4024, 111
      %v5131 = vpop.permute.xlu0 %5130
      %5132 = vrot.lane.b32.xlu0 %v4026, 111
      %v5133 = vpop.permute.xlu0 %5132
      %5134 = vrot.lane.b32.xlu0 %v4028, 111
      %v5135 = vpop.permute.xlu0 %5134
      %v5136 = vsel %vm1814, %v5105, %v5121
      %v5137 = vsel %vm1814, %v5107, %v5123
      %v5138 = vsel %vm1814, %v5109, %v5125
      %v5139 = vsel %vm1814, %v5111, %v5127
      %v5140 = vsel %vm1814, %v5113, %v5129
      %v5141 = vsel %vm1814, %v5115, %v5131
      %v5142 = vsel %vm1814, %v5117, %v5133
      %v5143 = vsel %vm1814, %v5119, %v5135
      %v5144 = vsel %vm1814, %v5121, %v5105
      %v5145 = vsel %vm1814, %v5123, %v5107
      %v5146 = vsel %vm1814, %v5125, %v5109
      %v5147 = vsel %vm1814, %v5127, %v5111
      %v5148 = vsel %vm1814, %v5129, %v5113
      %v5149 = vsel %vm1814, %v5131, %v5115
      %v5150 = vsel %vm1814, %v5133, %v5117
      %v5151 = vsel %vm1814, %v5135, %v5119
      %v5152 = vmul.f32 %v5136, %v1820
      %v5153 = vmul.f32 %v5144, %v1824
      %v5154 = vmul.f32 %v5137, %v1820
      %v5155 = vmul.f32 %v5145, %v1824
      %v5156 = vmul.f32 %v5138, %v1820
      %v5157 = vmul.f32 %v5146, %v1824
      %v5158 = vmul.f32 %v5139, %v1820
      %v5159 = vmul.f32 %v5147, %v1824
      %v5160 = vmul.f32 %v5140, %v1820
      %v5161 = vmul.f32 %v5148, %v1824
      %v5162 = vmul.f32 %v5141, %v1820
      %v5163 = vmul.f32 %v5149, %v1824
      %v5164 = vmul.f32 %v5142, %v1820
      %v5165 = vmul.f32 %v5150, %v1824
      %v5166 = vmul.f32 %v5143, %v1820
      %v5167 = vmul.f32 %v5151, %v1824
      %s5168 = scalar_lea.vmem %s6, 32
      %v5169 = vld [vmem:[%s5168] sm:$0x7]
      %v5171 = vsel %vm2068, %v5169, 0
      %5173 = vmatprep.subr.mxu0 0.0
      %5174 = vmatpush1.msra.mxu0 0.0
      %5175 = vmatprep.subr.mxu0 0.0
      %5176 = vmatpush1.msra.mxu0 0.0
      %5177 = vmatprep.subr.mxu0 0.0
      %5178 = vmatpush1.msra.mxu0 0.0
      %5179 = vmatprep.subr.mxu0 0.0
      %5180 = vmatpush1.msra.mxu0 0.0
      %5181 = vmatprep.subr.mxu0 0.0
      %5182 = vmatpush1.msra.mxu0 0.0
      %5183 = vmatprep.subr.mxu0 0.0
      %5184 = vmatpush1.msra.mxu0 0.0
      %5185 = vmatprep.subr.mxu0 0.0
      %5186 = vmatpush1.msra.mxu0 0.0
      %5187 = vmatprep.subr.mxu0 0.0
      %5188 = vmatpush1.msra.mxu0 0.0
      %5189 = vmatprep.subr.mxu0 %v5167
      %5190 = vmatpush1.msra.mxu0 %v5166
      %5191 = vmatprep.subr.mxu0 %v5165
      %5192 = vmatpush1.msra.mxu0 %v5164
      %5193 = vmatprep.subr.mxu0 %v5163
      %5194 = vmatpush1.msra.mxu0 %v5162
      %5195 = vmatprep.subr.mxu0 %v5161
      %5196 = vmatpush1.msra.mxu0 %v5160
      %5197 = vmatprep.subr.mxu0 %v5159
      %5198 = vmatpush1.msra.mxu0 %v5158
      %5199 = vmatprep.subr.mxu0 %v5157
      %5200 = vmatpush1.msra.mxu0 %v5156
      %5201 = vmatprep.subr.mxu0 %v5155
      %5202 = vmatpush1.msra.mxu0 %v5154
      %5203 = vmatprep.subr.mxu0 %v5153
      %5204 = vmatpush1.msra.mxu0 %v5152
      %5205 = vmatprep.subr.mxu0 0.0
      %5206 = vmatpush2.msra.mxu0 0.0
      %5207 = vmatprep.subr.mxu0 0.0
      %5208 = vmatpush2.msra.mxu0 0.0
      %5209 = vmatprep.subr.mxu0 0.0
      %5210 = vmatpush2.msra.mxu0 0.0
      %5211 = vmatprep.subr.mxu0 0.0
      %5212 = vmatpush2.msra.mxu0 0.0
      %5213 = vmatprep.subr.mxu0 0.0
      %5214 = vmatpush2.msra.mxu0 0.0
      %5215 = vmatprep.subr.mxu0 0.0
      %5216 = vmatpush2.msra.mxu0 0.0
      %5217 = vmatprep.subr.mxu0 0.0
      %5218 = vmatpush2.msra.mxu0 0.0
      %5219 = vmatprep.subr.mxu0 0.0
      %5220 = vmatpush2.msra.mxu0 0.0
      %5221 = vmatprep.subr.mxu0 0.0
      %5222 = vmatpush2.msra.mxu0 0.0
      %5223 = vmatprep.subr.mxu0 0.0
      %5224 = vmatpush2.msra.mxu0 0.0
      %5225 = vmatprep.subr.mxu0 0.0
      %5226 = vmatpush2.msra.mxu0 0.0
      %5227 = vmatprep.subr.mxu0 0.0
      %5228 = vmatpush2.msra.mxu0 0.0
      %5229 = vmatprep.subr.mxu0 0.0
      %5230 = vmatpush2.msra.mxu0 0.0
      %5231 = vmatprep.subr.mxu0 0.0
      %5232 = vmatpush2.msra.mxu0 0.0
      %5233 = vmatprep.subr.mxu0 0.0
      %5234 = vmatpush2.msra.mxu0 0.0
      %5235 = vmatprep.subr.mxu0 0.0
      %5236 = vmatpush2.msra.mxu0 0.0
      %5237 = vmatprep.mubr.f32.mxu0 0.0
      %5238 = vmatmul.mubr.f32.gmra.mxu0 %v5171
      %v5239 = vpop.f32.mrf.mxu0
      %v5240 = vadd.f32 0.0, %v5239
      %v5241 = vpop.f32.mrf.mxu0
      %v5242 = vadd.f32 0.0, %v5241
      %5243 = vdwg.mxu0
      %v5244 = vadd.f32 %v5102, %v5240
      %v5245 = vadd.f32 %v5103, %v5242
      %v5246 = vtanh.pop %v5244
      %v5247 = vtanh.pop %v5245
      %v5250 = vcombine.low %v5246, %v5247
      %5252 = vst [vmem:[%s305] sm:$0x77] %v5250
      %p5253 = scmp.lt.s32.totalorder %s19, 1
      %s5254 = scalar_select %p5253, %s19, 1
      %s5255 = smul.addr %s5254, 2
      %s5256 = smul.addr %s5255, 4
      %s5257 = scalar_lea.vmem %s8, %s5256
      // Predicated region
      $region53: #{g_forward.1} parent=51 // pred_check
        %p5258 = pneg %p210
      $region54: #{g_forward.1} parent=51 // pred_check_branch
        %5260 = sbr.rel (%p5258) target = $region56
      $region55: #{g_forward.1} parent=51 // pred_region
        _
      $region56: #{g_forward.1} parent=51 // pred_fallthru
        _
    $region52: #{g_forward.1} parent=5 // pred_fallthru
      _
    %p5261 = scmp.le.s32.totalorder 2, %s14
    // Predicated region
    $region57: #{g_forward.1} parent=5 // pred_check
      %p5262 = pneg %p5261
    $region58: #{g_forward.1} parent=5 // pred_check_branch
      %5264 = sbr.rel (%p5262) target = $region60
    $region59: #{g_forward.1} parent=5 // pred_region
      %s5265 = ssub.s32 %s14, 2
      // Predicated region
      $region61: #{g_forward.1} parent=59 // pred_check
        %p5266 = pneg %p216
      $region62: #{g_forward.1} parent=59 // pred_check_branch
        %5268 = sbr.rel (%p5266) target = $region64
      $region63: #{g_forward.1} parent=59 // pred_region
        %p5269 = scmp.lt.s32.totalorder %s20, 1
        %s5270 = scalar_select %p5269, %s20, 1
        %s5271 = smul.addr %s5270, 2
        %s5272 = smul.addr %s5271, 4
        %s5273 = scalar_lea.vmem %s8, %s5272
      $region64: #{g_forward.1} parent=59 // pred_fallthru
        _
    $region60: #{g_forward.1} parent=5 // pred_fallthru
      _
  $region6: #{g_forward.1} parent=0 // loop_footer
    %s18 = sadd.s32 1, %s14
  $region7: #{g_forward.1} parent=0 // loop_footer_branch
    %13 = sbr.rel target = $region3
  $region8: #{g_forward.1} parent=0 // loop_exit
    _

</llo_original>
